<compile_context>
chip_gen: v7x
topology: tpu7x:2x2x1
jax: 0.10.0
libtpu: 0.0.40
codegen_flags: <defaults>
</compile_context>

<pallas_src>
import functools
import math

import jax
import jax.numpy as jnp
from jax import lax
from jax.experimental import pallas as pl
from jax.experimental.pallas import tpu as pltpu


def _round_up(x, m):
    return ((x + m - 1) // m) * m


def _tiled_bytes(shape, itemsize):
    """VMEM bytes of one buffer holding `shape`: last dim padded to 128 lanes,
    second-to-last padded to the dtype sublane pack (8 f32 / 16 bf16 / 32 i8)."""
    shape = tuple(int(d) for d in shape)
    if len(shape) == 1:
        shape = (1,) + shape
    lead = 1
    for d in shape[:-2]:
        lead *= d
    sub = _round_up(shape[-2], 32 // itemsize)
    lane = _round_up(shape[-1], 128)
    return lead * sub * lane * itemsize


def gat_kernel(x_ref, bias_ref, wqkv_ref, bqkv_ref, wo_ref, bo_ref, out_ref, *,
               slab):
    """One grid step == `block_b` batch elements, full attention per element."""
    G, N, Cin = x_ref.shape
    Ep, E = wo_ref.shape                     # Ep: 128-lane-padded Q/K/V width
    cd = wqkv_ref.dtype                      # MXU operand dtype (f32 or bf16)
    f32 = jnp.float32

    # Packed, fused QKV projection: one wide MXU matmul for all G*N rows.
    x2 = x_ref[...].reshape(G * N, Cin)
    qkv = jnp.dot(x2, wqkv_ref[...], preferred_element_type=f32) + bqkv_ref[...]

    # Per-stream slices are 128-lane aligned (each stream zero-padded to Ep);
    # the 1/sqrt(E) scale is already folded into the Q columns.
    q = qkv[:, 0 * Ep:1 * Ep].astype(cd).reshape(G, N, Ep)
    k = qkv[:, 1 * Ep:2 * Ep].astype(cd).reshape(G, N, Ep)
    v = qkv[:, 2 * Ep:3 * Ep].astype(cd).reshape(G, N, Ep)

    # Scores: batched contraction over the (padded) feature dim.  Padded columns
    # are exactly zero in both q and k, so the result is unchanged.
    scores = lax.dot_general(
        q, k, dimension_numbers=(((2,), (2,)), ((0,), (0,))),
        preferred_element_type=f32)                                  # [G, N, N]

    # Additive adjacency mask (0 = edge, -1e30 = no edge): a single VPU add,
    # no compare/select.  Large finite value keeps edge-less rows finite.
    scores = scores + bias_ref[...].astype(f32)

    # Softmax over keys, f32 math.
    m = jnp.max(scores, axis=-1, keepdims=True)
    p = jnp.exp(scores - m)
    s = jnp.sum(p, axis=-1, keepdims=True)
    if jnp.dtype(cd) == jnp.dtype(jnp.float32):
        attn = (p / s).astype(cd)                       # exact on the parity path
    else:
        attn = (p * pl.reciprocal(s, approx=True)).astype(cd)   # EUP reciprocal

    o = lax.dot_general(
        attn, v, dimension_numbers=(((2,), (1,)), ((0,), (0,))),
        preferred_element_type=f32)                                  # [G, N, Ep]

    out = jnp.dot(o.reshape(G * N, Ep).astype(cd), wo_ref[...],
                  preferred_element_type=f32) + bo_ref[...]          # [G*N, E]
    out = out.reshape(G, N, E).astype(out_ref.dtype)

    if slab:
        # Lane-dense f32 slab [G, 1, N*E]: HBM writeback stays at N*E*4 bytes
        # per node and the stored row width is a multiple of 128 lanes.
        for n in range(N):
            out_ref[:, 0, n * E:(n + 1) * E] = out[:, n, :]
    else:
        out_ref[...] = out


def gat_forward(node_encodings, adj_mat, params, *, block_b=None,
                compute_dtype=jnp.bfloat16):
    """node_encodings: [B, N, Cin]; adj_mat: [B, N, N] bool -> [B, N, E] f32."""
    compute_dtype = jnp.dtype(compute_dtype)
    B, N, Cin = node_encodings.shape
    E = params["wq"].shape[0]
    Ep = _round_up(E, 128)                   # per-stream lane-aligned Q/K/V width
    NE = N * E
    slab = (NE % 128 == 0)                   # lane-dense f32 output slab possible?
    out_dtype = jnp.float32 if (slab or compute_dtype == jnp.dtype(jnp.float32)) \
        else jnp.bfloat16

    # ---- Fuse emb linear with MHA in_proj per stream (linear∘linear = linear),
    # fold 1/sqrt(E) into Q, pack into one [Cin, 3*Ep] matrix (zero-padded per
    # stream so in-kernel slices are whole-128-lane slices).
    scale = 1.0 / math.sqrt(E)
    wq_f = (params["wiq"] @ params["wq"]) * scale                    # [E, Cin]
    bq_f = (params["wiq"] @ params["bq"] + params["biq"]) * scale
    wk_f = params["wik"] @ params["wk"]
    bk_f = params["wik"] @ params["bk"] + params["bik"]
    wv_f = params["wiv"] @ params["wv"]
    bv_f = params["wiv"] @ params["bv"] + params["biv"]

    wqkv = jnp.zeros((Cin, 3 * Ep), jnp.float32)
    bqkv = jnp.zeros((1, 3 * Ep), jnp.float32)
    for i, (w_f, b_f) in enumerate(((wq_f, bq_f), (wk_f, bk_f), (wv_f, bv_f))):
        wqkv = wqkv.at[:, i * Ep:i * Ep + E].set(w_f.T)
        bqkv = bqkv.at[0, i * Ep:i * Ep + E].set(b_f)
    wqkv = wqkv.astype(compute_dtype)

    # Out-projection consumes the padded Ep rows (extra rows are zero).
    wo = jnp.zeros((Ep, E), jnp.float32).at[:E, :].set(params["wo"].T)
    wo = wo.astype(compute_dtype)
    bo = params["bo"].reshape(1, E).astype(jnp.float32)

    x = node_encodings.astype(compute_dtype)
    # Additive mask bias (0 = keep, -1e30 = masked).  Edge-less / padded rows
    # stay finite (PyTorch's MHA would return NaN for fully-masked rows).
    mask_bias = jnp.where(adj_mat, 0.0, jnp.float32(-1e30)).astype(compute_dtype)

    cd_bytes = compute_dtype.itemsize
    out_bytes = jnp.dtype(out_dtype).itemsize

    # ---- Per-step VMEM estimate in *tiled* bytes (grid tiles double-buffered).
    def vmem_est(g):
        out_tile = (_tiled_bytes((g, 1, NE), 4) if slab
                    else _tiled_bytes((g, N, E), out_bytes))
        tiles = 2 * (_tiled_bytes((g, N, Cin), cd_bytes)
                     + _tiled_bytes((g, N, N), cd_bytes)
                     + out_tile)
        weights = 2 * (_tiled_bytes((Cin, 3 * Ep), cd_bytes)
                       + _tiled_bytes((1, 3 * Ep), 4)
                       + _tiled_bytes((Ep, E), cd_bytes)
                       + _tiled_bytes((1, E), 4))
        inter = (_tiled_bytes((g * N, 3 * Ep), 4)             # qkv (f32)
                 + 3 * _tiled_bytes((g, N, Ep), cd_bytes)      # q, k, v
                 + 3 * _tiled_bytes((g, N, N), 4)              # scores / p / attn
                 + _tiled_bytes((g, N, Ep), 4)                 # attn @ v
                 + _tiled_bytes((g * N, E), 4))                # out-proj result
        return tiles + weights + inter

    # ---- Generation-aware VMEM limit (v5e/v6e: 128 MiB physical, v7x: 64/TC).
    def _vmem_capacity_bytes():
        try:
            info = pltpu.get_tpu_info()
            for attr in ("vmem_capacity_bytes", "vmem_bytes", "vmem_size_bytes"):
                v = getattr(info, attr, None)
                if v:
                    return int(v)
        except Exception:
            pass
        return 64 * 1024 * 1024              # conservative: v7x per-core VMEM

    vmem_cap = _vmem_capacity_bytes()
    vmem_limit = int(min(max(vmem_cap // 2, 16 * 1024 * 1024), 64 * 1024 * 1024))
    budget = (3 * vmem_limit) // 4

    # ---- Batch-block size: amortize per-step overhead while keeping >= 2 grid
    # steps per TensorCore (v7x has 2 TCs) and fitting the tiled-VMEM budget.
    if block_b is None:
        block_b = max(1, B // 8)
    block_b = int(max(1, min(block_b, B, 512)))
    while block_b > 1 and vmem_est(block_b) > budget:
        block_b //= 2
    if vmem_est(block_b) > budget:           # huge N even at block_b == 1
        vmem_limit = int(min(vmem_cap * 9 // 10, vmem_est(block_b) * 5 // 4))

    Bp = _round_up(B, block_b)
    if Bp != B:                              # zero-pad; padded rows sliced off
        x = jnp.pad(x, ((0, Bp - B), (0, 0), (0, 0)))
        mask_bias = jnp.pad(mask_bias, ((0, Bp - B), (0, 0), (0, 0)))

    def _rep(shape):
        # Full-array weight block, constant block index across the grid.
        # NOTE: pipeline_mode=pl.Buffered(1) would halve weight VMEM; skipped
        # for lowering compatibility (weights are tiny at these dims).
        return pl.BlockSpec(shape, lambda b: (0,) * len(shape))

    if slab:
        out_shape = jax.ShapeDtypeStruct((Bp, 1, NE), jnp.float32)
        out_spec = pl.BlockSpec((block_b, 1, NE), lambda b: (b, 0, 0))
    else:
        out_shape = jax.ShapeDtypeStruct((Bp, N, E), out_dtype)
        out_spec = pl.BlockSpec((block_b, N, E), lambda b: (b, 0, 0))

    grid_spec = pltpu.PrefetchScalarGridSpec(
        num_scalar_prefetch=0,
        grid=(Bp // block_b,),
        in_specs=[
            pl.BlockSpec((block_b, N, Cin), lambda b: (b, 0, 0)),   # x
            pl.BlockSpec((block_b, N, N), lambda b: (b, 0, 0)),     # mask bias
            _rep((Cin, 3 * Ep)), _rep((1, 3 * Ep)),                 # packed QKV
            _rep((Ep, E)), _rep((1, E)),                            # out-proj
        ],
        out_specs=out_spec,
    )

    # Advisory cost estimate so XLA schedules the custom call sensibly.
    flops = 2 * Bp * N * (Cin * 3 * Ep + 2 * N * Ep + Ep * E)
    bytes_accessed = (int(x.size) * cd_bytes + int(mask_bias.size) * cd_bytes
                      + int(wqkv.size) * cd_bytes + int(bqkv.size) * 4
                      + int(wo.size) * cd_bytes + int(bo.size) * 4
                      + (Bp * NE * 4 if slab else Bp * N * E * out_bytes))
    cost = pl.CostEstimate(flops=int(flops), transcendentals=int(Bp * N * N),
                           bytes_accessed=int(bytes_accessed))

    out = pl.pallas_call(
        functools.partial(gat_kernel, slab=slab),
        out_shape=out_shape,
        grid_spec=grid_spec,
        compiler_params=pltpu.CompilerParams(
            dimension_semantics=("parallel",),
            vmem_limit_bytes=int(vmem_limit)),
        cost_estimate=cost,
    )(x, mask_bias, wqkv, bqkv, wo, bo)

    if slab:
        return out[:B, 0, :].reshape(B, N, E)
    return out[:B].astype(jnp.float32)


def gat_reference(node_encodings, adj_mat, params):
    """Pure-JAX reference mirroring the PyTorch forward (unfused)."""
    x = node_encodings.astype(jnp.float32)               # [B, N, Cin]
    q = jnp.einsum("bnc,ec->bne", x, params["wq"]) + params["bq"]
    k = jnp.einsum("bnc,ec->bne", x, params["wk"]) + params["bk"]
    v = jnp.einsum("bnc,ec->bne", x, params["wv"]) + params["bv"]
    q = jnp.einsum("bne,fe->bnf", q, params["wiq"]) + params["biq"]
    k = jnp.einsum("bne,fe->bnf", k, params["wik"]) + params["bik"]
    v = jnp.einsum("bne,fe->bnf", v, params["wiv"]) + params["biv"]
    E = q.shape[-1]
    scores = jnp.einsum("bqe,bke->bqk", q, k) / jnp.sqrt(jnp.float32(E))
    scores = jnp.where(adj_mat, scores, -jnp.inf)
    attn = jax.nn.softmax(scores, axis=-1)
    o = jnp.einsum("bqk,bke->bqe", attn, v)
    out = jnp.einsum("bne,fe->bnf", o, params["wo"]) + params["bo"]
    return out


def init_params(key, in_channels, out_channels):
    ks = jax.random.split(key, 14)
    E, C = out_channels, in_channels

    def lin(kw, kb, fan_in, shape_w, shape_b):
        bound = 1.0 / math.sqrt(fan_in)
        w = jax.random.uniform(kw, shape_w, jnp.float32, -bound, bound)
        b = jax.random.uniform(kb, shape_b, jnp.float32, -bound, bound)
        return w, b

    wq, bq = lin(ks[0], ks[1], C, (E, C), (E,))
    wk, bk = lin(ks[2], ks[3], C, (E, C), (E,))
    wv, bv = lin(ks[4], ks[5], C, (E, C), (E,))
    wiq, biq = lin(ks[6], ks[7], E, (E, E), (E,))
    wik, bik = lin(ks[8], ks[9], E, (E, E), (E,))
    wiv, biv = lin(ks[10], ks[11], E, (E, E), (E,))
    wo, bo = lin(ks[12], ks[13], E, (E, E), (E,))
    return dict(wq=wq, bq=bq, wk=wk, bk=bk, wv=wv, bv=bv,
                wiq=wiq, biq=biq, wik=wik, bik=bik, wiv=wiv, biv=biv,
                wo=wo, bo=bo)


if __name__ == "__main__":
    # Full-f32 matmul precision for the host-side weight fusion and reference so
    # the kernel-vs-reference comparison is tight.
    jax.config.update("jax_default_matmul_precision", "highest")

    B, N, C_IN, C_OUT = 2, 8, 16, 32

    key = jax.random.PRNGKey(0)
    k_x, k_adj, k_p = jax.random.split(key, 3)

    node_encodings = jax.random.normal(k_x, (B, N, C_IN), jnp.float32)

    # Random adjacency; force self-loops so no row is fully masked (a fully
    # masked row is NaN in PyTorch's MHA; the kernel returns a finite uniform
    # average instead, so keep that degenerate case out of the comparison).
    adj = jax.random.bernoulli(k_adj, 0.5, (B, N, N))
    adj = jnp.logical_or(adj, jnp.eye(N, dtype=bool)[None, :, :])

    params = init_params(k_p, C_IN, C_OUT)

    ref = gat_reference(node_encodings, adj, params)

    # f32 compute path: tight parity check (exact softmax division; tolerance
    # covers the fused-projection rounding-order change only).
    out = gat_forward(node_encodings, adj, params, compute_dtype=jnp.float32)
    out = jax.block_until_ready(out)
    assert out.shape == (B, N, C_OUT)
    max_err = float(jnp.max(jnp.abs(out - ref)))
    assert jnp.allclose(out, ref, atol=5e-3, rtol=5e-3), max_err

    # Default bf16 MXU-fed path (production mode): loose sanity check only.
    out_bf16 = gat_forward(node_encodings, adj, params)
    out_bf16 = jax.block_until_ready(out_bf16)
    assert out_bf16.shape == (B, N, C_OUT)
    assert bool(jnp.all(jnp.isfinite(out_bf16)))
    assert float(jnp.max(jnp.abs(out_bf16 - ref))) < 0.5

    print("KERNEL_OK")
</pallas_src>

<mosaic_0001>
module attributes {stable_mosaic.version = 11 : i64} {
  func.func @gat_kernel(%arg0: i32, %arg1: memref<1x8x16xf32, #tpu.memory_space<vmem>>, %arg2: memref<1x8x8xf32, #tpu.memory_space<vmem>>, %arg3: memref<16x384xf32, #tpu.memory_space<vmem>>, %arg4: memref<1x384xf32, #tpu.memory_space<vmem>>, %arg5: memref<128x32xf32, #tpu.memory_space<vmem>>, %arg6: memref<1x32xf32, #tpu.memory_space<vmem>>, %arg7: memref<1x1x256xf32, #tpu.memory_space<vmem>>) attributes {dimension_semantics = [#tpu.dimension_semantics<parallel>], iteration_bounds = array<i64: 2>, scalar_prefetch = 0 : i64, scratch_operands = 0 : i64, tpu.core_type = #tpu.core_type<tc>, window_params = [{transform_indices = @transform_0, window_bounds = array<i64: 1, 8, 16>}, {transform_indices = @transform_1, window_bounds = array<i64: 1, 8, 8>}, {pipeline_mode = #tpu.pipeline_mode<synchronous>, transform_indices = @transform_2, window_bounds = array<i64: 16, 384>}, {pipeline_mode = #tpu.pipeline_mode<synchronous>, transform_indices = @transform_3, window_bounds = array<i64: 1, 384>}, {pipeline_mode = #tpu.pipeline_mode<synchronous>, transform_indices = @transform_4, window_bounds = array<i64: 128, 32>}, {pipeline_mode = #tpu.pipeline_mode<synchronous>, transform_indices = @transform_5, window_bounds = array<i64: 1, 32>}, {transform_indices = @transform_6, window_bounds = array<i64: 1, 1, 256>}]} {
    %c0 = arith.constant 0 : index
    %c0_0 = arith.constant 0 : index
    %c0_1 = arith.constant 0 : index
    %0 = vector.load %arg1[%c0, %c0_0, %c0_1] : memref<1x8x16xf32, #tpu.memory_space<vmem>>, vector<1x8x16xf32>
    %1 = vector.shape_cast %0 : vector<1x8x16xf32> to vector<8x16xf32>
    %c0_2 = arith.constant 0 : index
    %c0_3 = arith.constant 0 : index
    %2 = vector.load %arg3[%c0_2, %c0_3] : memref<16x384xf32, #tpu.memory_space<vmem>>, vector<16x384xf32>
    %cst = arith.constant dense<0.000000e+00> : vector<8x384xf32>
    %3 = tpu.matmul %1, %2, %cst {dimension_numbers = #tpu.dot_dimension_numbers<[1], [0], [0], [1], [0, 0, 1, 1], [], []>, precision = #tpu.contract_precision<fp32>} : vector<8x16xf32>, vector<16x384xf32>, vector<8x384xf32> -> vector<8x384xf32>
    %c0_4 = arith.constant 0 : index
    %c0_5 = arith.constant 0 : index
    %4 = vector.load %arg4[%c0_4, %c0_5] : memref<1x384xf32, #tpu.memory_space<vmem>>, vector<1x384xf32>
    %5 = vector.broadcast %4 : vector<1x384xf32> to vector<8x384xf32>
    %6 = arith.addf %3, %5 : vector<8x384xf32>
    %7 = vector.extract_strided_slice %6 {offsets = [0, 0], sizes = [8, 128], strides = [1, 1]} : vector<8x384xf32> to vector<8x128xf32>
    %8 = vector.shape_cast %7 : vector<8x128xf32> to vector<1x8x128xf32>
    %9 = vector.extract_strided_slice %6 {offsets = [0, 128], sizes = [8, 128], strides = [1, 1]} : vector<8x384xf32> to vector<8x128xf32>
    %10 = vector.shape_cast %9 : vector<8x128xf32> to vector<1x8x128xf32>
    %11 = vector.extract_strided_slice %6 {offsets = [0, 256], sizes = [8, 128], strides = [1, 1]} : vector<8x384xf32> to vector<8x128xf32>
    %12 = vector.shape_cast %11 : vector<8x128xf32> to vector<1x8x128xf32>
    %cst_6 = arith.constant dense<0.000000e+00> : vector<1x8x8xf32>
    %13 = tpu.matmul %8, %10, %cst_6 {dimension_numbers = #tpu.dot_dimension_numbers<[2], [2], [1], [1], [0, 0, 0, 1, 1, 1], [0], [0]>, precision = #tpu.contract_precision<fp32>} : vector<1x8x128xf32>, vector<1x8x128xf32>, vector<1x8x8xf32> -> vector<1x8x8xf32>
    %c0_7 = arith.constant 0 : index
    %c0_8 = arith.constant 0 : index
    %c0_9 = arith.constant 0 : index
    %14 = vector.load %arg2[%c0_7, %c0_8, %c0_9] : memref<1x8x8xf32, #tpu.memory_space<vmem>>, vector<1x8x8xf32>
    %15 = arith.addf %13, %14 : vector<1x8x8xf32>
    %cst_10 = arith.constant dense<0xFF800000> : vector<1x8xf32>
    %16 = vector.multi_reduction <maximumf>, %15, %cst_10 [2] : vector<1x8x8xf32> to vector<1x8xf32>
    %17 = vector.shape_cast %16 : vector<1x8xf32> to vector<1x8x1xf32>
    %18 = vector.broadcast %17 : vector<1x8x1xf32> to vector<1x8x8xf32>
    %19 = arith.subf %15, %18 : vector<1x8x8xf32>
    %20 = math.exp %19 : vector<1x8x8xf32>
    %cst_11 = arith.constant dense<0.000000e+00> : vector<1x8xf32>
    %21 = vector.multi_reduction <add>, %20, %cst_11 [2] : vector<1x8x8xf32> to vector<1x8xf32>
    %22 = vector.shape_cast %21 : vector<1x8xf32> to vector<1x8x1xf32>
    %23 = vector.broadcast %22 : vector<1x8x1xf32> to vector<1x8x8xf32>
    %24 = arith.divf %20, %23 : vector<1x8x8xf32>
    %cst_12 = arith.constant dense<0.000000e+00> : vector<1x8x128xf32>
    %25 = tpu.matmul %24, %12, %cst_12 {dimension_numbers = #tpu.dot_dimension_numbers<[2], [1], [1], [2], [0, 0, 0, 1, 1, 2], [0], [0]>, precision = #tpu.contract_precision<fp32>} : vector<1x8x8xf32>, vector<1x8x128xf32>, vector<1x8x128xf32> -> vector<1x8x128xf32>
    %26 = vector.shape_cast %25 : vector<1x8x128xf32> to vector<8x128xf32>
    %c0_13 = arith.constant 0 : index
    %c0_14 = arith.constant 0 : index
    %27 = vector.load %arg5[%c0_13, %c0_14] : memref<128x32xf32, #tpu.memory_space<vmem>>, vector<128x32xf32>
    %cst_15 = arith.constant dense<0.000000e+00> : vector<8x32xf32>
    %28 = tpu.matmul %26, %27, %cst_15 {dimension_numbers = #tpu.dot_dimension_numbers<[1], [0], [0], [1], [0, 0, 1, 1], [], []>, precision = #tpu.contract_precision<fp32>} : vector<8x128xf32>, vector<128x32xf32>, vector<8x32xf32> -> vector<8x32xf32>
    %c0_16 = arith.constant 0 : index
    %c0_17 = arith.constant 0 : index
    %29 = vector.load %arg6[%c0_16, %c0_17] : memref<1x32xf32, #tpu.memory_space<vmem>>, vector<1x32xf32>
    %30 = vector.broadcast %29 : vector<1x32xf32> to vector<8x32xf32>
    %31 = arith.addf %28, %30 : vector<8x32xf32>
    %32 = vector.shape_cast %31 : vector<8x32xf32> to vector<1x8x32xf32>
    %33 = vector.extract_strided_slice %32 {offsets = [0, 0, 0], sizes = [1, 1, 32], strides = [1, 1, 1]} : vector<1x8x32xf32> to vector<1x1x32xf32>
    %34 = vector.shape_cast %33 : vector<1x1x32xf32> to vector<1x32xf32>
    %c0_18 = arith.constant 0 : index
    %c0_19 = arith.constant 0 : index
    %c0_20 = arith.constant 0 : index
    %35 = vector.load %arg7[%c0_18, %c0_19, %c0_20] : memref<1x1x256xf32, #tpu.memory_space<vmem>>, vector<1x1x32xf32>
    %36 = vector.shape_cast %35 : vector<1x1x32xf32> to vector<1x32xf32>
    %37 = vector.shape_cast %34 : vector<1x32xf32> to vector<1x1x32xf32>
    tpu.vector_store %arg7[%c0_18, %c0_19, %c0_20], %37 {strides = array<i32>} : memref<1x1x256xf32, #tpu.memory_space<vmem>>, vector<1x1x32xf32>,
    %38 = vector.extract_strided_slice %32 {offsets = [0, 1, 0], sizes = [1, 1, 32], strides = [1, 1, 1]} : vector<1x8x32xf32> to vector<1x1x32xf32>
    %39 = vector.shape_cast %38 : vector<1x1x32xf32> to vector<1x32xf32>
    %c0_21 = arith.constant 0 : index
    %c0_22 = arith.constant 0 : index
    %c32 = arith.constant 32 : index
    %40 = vector.load %arg7[%c0_21, %c0_22, %c32] : memref<1x1x256xf32, #tpu.memory_space<vmem>>, vector<1x1x32xf32>
    %41 = vector.shape_cast %40 : vector<1x1x32xf32> to vector<1x32xf32>
    %42 = vector.shape_cast %39 : vector<1x32xf32> to vector<1x1x32xf32>
    tpu.vector_store %arg7[%c0_21, %c0_22, %c32], %42 {strides = array<i32>} : memref<1x1x256xf32, #tpu.memory_space<vmem>>, vector<1x1x32xf32>,
    %43 = vector.extract_strided_slice %32 {offsets = [0, 2, 0], sizes = [1, 1, 32], strides = [1, 1, 1]} : vector<1x8x32xf32> to vector<1x1x32xf32>
    %44 = vector.shape_cast %43 : vector<1x1x32xf32> to vector<1x32xf32>
    %c0_23 = arith.constant 0 : index
    %c0_24 = arith.constant 0 : index
    %c64 = arith.constant 64 : index
    %45 = vector.load %arg7[%c0_23, %c0_24, %c64] : memref<1x1x256xf32, #tpu.memory_space<vmem>>, vector<1x1x32xf32>
    %46 = vector.shape_cast %45 : vector<1x1x32xf32> to vector<1x32xf32>
    %47 = vector.shape_cast %44 : vector<1x32xf32> to vector<1x1x32xf32>
    tpu.vector_store %arg7[%c0_23, %c0_24, %c64], %47 {strides = array<i32>} : memref<1x1x256xf32, #tpu.memory_space<vmem>>, vector<1x1x32xf32>,
    %48 = vector.extract_strided_slice %32 {offsets = [0, 3, 0], sizes = [1, 1, 32], strides = [1, 1, 1]} : vector<1x8x32xf32> to vector<1x1x32xf32>
    %49 = vector.shape_cast %48 : vector<1x1x32xf32> to vector<1x32xf32>
    %c0_25 = arith.constant 0 : index
    %c0_26 = arith.constant 0 : index
    %c96 = arith.constant 96 : index
    %50 = vector.load %arg7[%c0_25, %c0_26, %c96] : memref<1x1x256xf32, #tpu.memory_space<vmem>>, vector<1x1x32xf32>
    %51 = vector.shape_cast %50 : vector<1x1x32xf32> to vector<1x32xf32>
    %52 = vector.shape_cast %49 : vector<1x32xf32> to vector<1x1x32xf32>
    tpu.vector_store %arg7[%c0_25, %c0_26, %c96], %52 {strides = array<i32>} : memref<1x1x256xf32, #tpu.memory_space<vmem>>, vector<1x1x32xf32>,
    %53 = vector.extract_strided_slice %32 {offsets = [0, 4, 0], sizes = [1, 1, 32], strides = [1, 1, 1]} : vector<1x8x32xf32> to vector<1x1x32xf32>
    %54 = vector.shape_cast %53 : vector<1x1x32xf32> to vector<1x32xf32>
    %c0_27 = arith.constant 0 : index
    %c0_28 = arith.constant 0 : index
    %c128 = arith.constant 128 : index
    %55 = vector.load %arg7[%c0_27, %c0_28, %c128] : memref<1x1x256xf32, #tpu.memory_space<vmem>>, vector<1x1x32xf32>
    %56 = vector.shape_cast %55 : vector<1x1x32xf32> to vector<1x32xf32>
    %57 = vector.shape_cast %54 : vector<1x32xf32> to vector<1x1x32xf32>
    tpu.vector_store %arg7[%c0_27, %c0_28, %c128], %57 {strides = array<i32>} : memref<1x1x256xf32, #tpu.memory_space<vmem>>, vector<1x1x32xf32>,
    %58 = vector.extract_strided_slice %32 {offsets = [0, 5, 0], sizes = [1, 1, 32], strides = [1, 1, 1]} : vector<1x8x32xf32> to vector<1x1x32xf32>
    %59 = vector.shape_cast %58 : vector<1x1x32xf32> to vector<1x32xf32>
    %c0_29 = arith.constant 0 : index
    %c0_30 = arith.constant 0 : index
    %c160 = arith.constant 160 : index
    %60 = vector.load %arg7[%c0_29, %c0_30, %c160] : memref<1x1x256xf32, #tpu.memory_space<vmem>>, vector<1x1x32xf32>
    %61 = vector.shape_cast %60 : vector<1x1x32xf32> to vector<1x32xf32>
    %62 = vector.shape_cast %59 : vector<1x32xf32> to vector<1x1x32xf32>
    tpu.vector_store %arg7[%c0_29, %c0_30, %c160], %62 {strides = array<i32>} : memref<1x1x256xf32, #tpu.memory_space<vmem>>, vector<1x1x32xf32>,
    %63 = vector.extract_strided_slice %32 {offsets = [0, 6, 0], sizes = [1, 1, 32], strides = [1, 1, 1]} : vector<1x8x32xf32> to vector<1x1x32xf32>
    %64 = vector.shape_cast %63 : vector<1x1x32xf32> to vector<1x32xf32>
    %c0_31 = arith.constant 0 : index
    %c0_32 = arith.constant 0 : index
    %c192 = arith.constant 192 : index
    %65 = vector.load %arg7[%c0_31, %c0_32, %c192] : memref<1x1x256xf32, #tpu.memory_space<vmem>>, vector<1x1x32xf32>
    %66 = vector.shape_cast %65 : vector<1x1x32xf32> to vector<1x32xf32>
    %67 = vector.shape_cast %64 : vector<1x32xf32> to vector<1x1x32xf32>
    tpu.vector_store %arg7[%c0_31, %c0_32, %c192], %67 {strides = array<i32>} : memref<1x1x256xf32, #tpu.memory_space<vmem>>, vector<1x1x32xf32>,
    %68 = vector.extract_strided_slice %32 {offsets = [0, 7, 0], sizes = [1, 1, 32], strides = [1, 1, 1]} : vector<1x8x32xf32> to vector<1x1x32xf32>
    %69 = vector.shape_cast %68 : vector<1x1x32xf32> to vector<1x32xf32>
    %c0_33 = arith.constant 0 : index
    %c0_34 = arith.constant 0 : index
    %c224 = arith.constant 224 : index
    %70 = vector.load %arg7[%c0_33, %c0_34, %c224] : memref<1x1x256xf32, #tpu.memory_space<vmem>>, vector<1x1x32xf32>
    %71 = vector.shape_cast %70 : vector<1x1x32xf32> to vector<1x32xf32>
    %72 = vector.shape_cast %69 : vector<1x32xf32> to vector<1x1x32xf32>
    tpu.vector_store %arg7[%c0_33, %c0_34, %c224], %72 {strides = array<i32>} : memref<1x1x256xf32, #tpu.memory_space<vmem>>, vector<1x1x32xf32>,
    return
  }
  func.func @transform_0(%arg0: i32) -> (i32, i32, i32) {
    %c0_i32 = arith.constant 0 : i32
    %c0_i32_0 = arith.constant 0 : i32
    %c0_i32_1 = arith.constant 0 : i32
    return %arg0, %c0_i32, %c0_i32_0 : i32, i32, i32
  }
  func.func @transform_1(%arg0: i32) -> (i32, i32, i32) {
    %c0_i32 = arith.constant 0 : i32
    %c0_i32_0 = arith.constant 0 : i32
    %c0_i32_1 = arith.constant 0 : i32
    return %arg0, %c0_i32, %c0_i32_0 : i32, i32, i32
  }
  func.func @transform_2(%arg0: i32) -> (i32, i32) {
    %c0_i32 = arith.constant 0 : i32
    %c0_i32_0 = arith.constant 0 : i32
    %c0_i32_1 = arith.constant 0 : i32
    return %c0_i32, %c0_i32_0 : i32, i32
  }
  func.func @transform_3(%arg0: i32) -> (i32, i32) {
    %c0_i32 = arith.constant 0 : i32
    %c0_i32_0 = arith.constant 0 : i32
    %c0_i32_1 = arith.constant 0 : i32
    return %c0_i32, %c0_i32_0 : i32, i32
  }
  func.func @transform_4(%arg0: i32) -> (i32, i32) {
    %c0_i32 = arith.constant 0 : i32
    %c0_i32_0 = arith.constant 0 : i32
    %c0_i32_1 = arith.constant 0 : i32
    return %c0_i32, %c0_i32_0 : i32, i32
  }
  func.func @transform_5(%arg0: i32) -> (i32, i32) {
    %c0_i32 = arith.constant 0 : i32
    %c0_i32_0 = arith.constant 0 : i32
    %c0_i32_1 = arith.constant 0 : i32
    return %c0_i32, %c0_i32_0 : i32, i32
  }
  func.func @transform_6(%arg0: i32) -> (i32, i32, i32) {
    %c0_i32 = arith.constant 0 : i32
    %c0_i32_0 = arith.constant 0 : i32
    %c0_i32_1 = arith.constant 0 : i32
    return %arg0, %c0_i32, %c0_i32_0 : i32, i32, i32
  }
}

</mosaic_0001>

<llo_original>
// kernel: tpu_custom_call.1
$region0: #{tpu_custom_call.1}
  #allocation0 [shape = 'u32[]', space=smem, size = 0x4, offset = 0x4, fixed_abs, tag = 'smem constant byte address 0x4 - core index']
  #allocation1 [shape = 'u32[144,128]{1,0:T(1,128)}', space=vmem, size = 0x12000, scoped, tag = 'internal scratch']
  %s0 = inlined_call_operand.vmem [shape: f32[2,8,16], index: 0, kind: input, shape index: {}]
  %s1 = inlined_call_operand.vmem [shape: f32[2,8,8], index: 1, kind: input, shape index: {}]
  %s2 = inlined_call_operand.vmem [shape: f32[16,384], index: 2, kind: input, shape index: {}]
  %s3 = inlined_call_operand.vmem [shape: f32[1,384], index: 3, kind: input, shape index: {}]
  %s4 = inlined_call_operand.vmem [shape: f32[128,32], index: 4, kind: input, shape index: {}]
  %s5 = inlined_call_operand.vmem [shape: f32[1,32], index: 5, kind: input, shape index: {}]
  %s6 = inlined_call_operand.hbm [shape: f32[2,1,256], index: 6, kind: output, shape index: {}]
  %s7 = sld [smem:[#allocation0]]
  $region57: #{tpu_custom_call.1} parent=0
    _
  %s9 = ssub.s32 1, %s7
  %s10 = scalar_select 0, %s9, %s7
  $region1: #{tpu_custom_call.1} parent=0
    #allocation2 [shape = 'u8[2048]{0}', space=vmem, size = 0x800, scoped, tag = 'output window, operand 0']
    #allocation3 [shape = 's32[2]{0}', space=sflag, size = 0x8, scoped, tag = 'scoped memory for tpu_custom_call.1']
    %11 = vsyncpa [#allocation3], 0
    %s12 = scalar_lea.sflag [#allocation3], 1
    %13 = vsyncpa %s12, 0
    loop: start=0, step=1, limit=4
    $region2: #{tpu_custom_call.1} parent=1 // loop_pre_header
      _
    $region3: #{tpu_custom_call.1} parent=1 // loop_header
      %s15 = sphi 0, %s19
      %p16 = scmp.ge.s32.totalorder %s15, 4
      %s25 = sphi 0, %s27
      %s28 = sphi 0, %s25
      %s29 = sphi 0, %s28
      %s45 = sphi 0, %s29
      %s51 = sphi 0, %s53
      %s54 = sphi 0, %s51
      %s55 = sphi 0, %s54
      %s71 = sphi 0, %s55
      %s75 = sphi 0, %s75
      %s77 = sphi 0, %s75
      %s78 = sphi 0, %s77
      %s92 = sphi 0, %s78
      %s96 = sphi 0, %s96
      %s98 = sphi 0, %s96
      %s99 = sphi 0, %s98
      %s113 = sphi 0, %s99
      %s117 = sphi 0, %s117
      %s119 = sphi 0, %s117
      %s120 = sphi 0, %s119
      %s134 = sphi 0, %s120
      %s138 = sphi 0, %s138
      %s140 = sphi 0, %s138
      %s141 = sphi 0, %s140
      %s155 = sphi 0, %s141
      %s161 = sphi 0, %s163
      %s164 = sphi 0, %s161
      %s165 = sphi 0, %s164
      %s181 = sphi 0, %s165
    $region4: #{tpu_custom_call.1} parent=1 // loop_header_branch
      %18 = sbr.rel (%p16) target = $region8
    $region5: #{tpu_custom_call.1} parent=1 // loop_body
      %s20 = ssub.s32 %s15, 1
      %s21 = ssub.s32 %s15, 2
      %s22 = sadd.s32 %s15, 1
      %s23 = ssub.s32 %s15, %s22
      %p24 = scmp.eq.s32.totalorder %s23, 0
      %s26 = sadd.s32 %s25, 1
      %s27 = scalar_select %p24, %s25, %s26
      %p30 = pneg %p24
      %p31 = scmp.eq.s32.totalorder %s15, 1
      %p32 = por %p30, %p31
      %p33 = scmp.ne.s32.totalorder %s25, %s28
      %p34 = scmp.eq.s32.totalorder %s15, 0
      %p35 = por %p33, %p34
      %p36 = scmp.ne.s32.totalorder %s25, %s28
      %p37 = scmp.eq.s32.totalorder %s20, 1
      %p38 = por %p36, %p37
      %p39 = scmp.ne.s32.totalorder %s28, %s29
      %p40 = scmp.eq.s32.totalorder %s20, 0
      %p41 = por %p39, %p40
      %p42 = scmp.ne.s32.totalorder %s28, %s29
      %p43 = scmp.eq.s32.totalorder %s21, 1
      %p44 = por %p42, %p43
      %p46 = scmp.ne.s32.totalorder %s29, %s45
      %p47 = scmp.eq.s32.totalorder %s21, 0
      %p48 = por %p46, %p47
      %s49 = ssub.s32 %s15, %s22
      %p50 = scmp.eq.s32.totalorder %s49, 0
      %s52 = sadd.s32 %s51, 1
      %s53 = scalar_select %p50, %s51, %s52
      %p56 = pneg %p50
      %p57 = scmp.eq.s32.totalorder %s15, 1
      %p58 = por %p56, %p57
      %p59 = scmp.ne.s32.totalorder %s51, %s54
      %p60 = scmp.eq.s32.totalorder %s15, 0
      %p61 = por %p59, %p60
      %p62 = scmp.ne.s32.totalorder %s51, %s54
      %p63 = scmp.eq.s32.totalorder %s20, 1
      %p64 = por %p62, %p63
      %p65 = scmp.ne.s32.totalorder %s54, %s55
      %p66 = scmp.eq.s32.totalorder %s20, 0
      %p67 = por %p65, %p66
      %p68 = scmp.ne.s32.totalorder %s54, %s55
      %p69 = scmp.eq.s32.totalorder %s21, 1
      %p70 = por %p68, %p69
      %p72 = scmp.ne.s32.totalorder %s55, %s71
      %p73 = scmp.eq.s32.totalorder %s21, 0
      %p74 = por %p72, %p73
      %s76 = sadd.s32 %s75, 1
      %p79 = scmp.eq.s32.totalorder %s15, 1
      %p80 = scmp.ne.s32.totalorder %s75, %s77
      %p81 = scmp.eq.s32.totalorder %s15, 0
      %p82 = por %p80, %p81
      %p83 = scmp.ne.s32.totalorder %s75, %s77
      %p84 = scmp.eq.s32.totalorder %s20, 1
      %p85 = por %p83, %p84
      %p86 = scmp.ne.s32.totalorder %s77, %s78
      %p87 = scmp.eq.s32.totalorder %s20, 0
      %p88 = por %p86, %p87
      %p89 = scmp.ne.s32.totalorder %s77, %s78
      %p90 = scmp.eq.s32.totalorder %s21, 1
      %p91 = por %p89, %p90
      %p93 = scmp.ne.s32.totalorder %s78, %s92
      %p94 = scmp.eq.s32.totalorder %s21, 0
      %p95 = por %p93, %p94
      %s97 = sadd.s32 %s96, 1
      %p100 = scmp.eq.s32.totalorder %s15, 1
      %p101 = scmp.ne.s32.totalorder %s96, %s98
      %p102 = scmp.eq.s32.totalorder %s15, 0
      %p103 = por %p101, %p102
      %p104 = scmp.ne.s32.totalorder %s96, %s98
      %p105 = scmp.eq.s32.totalorder %s20, 1
      %p106 = por %p104, %p105
      %p107 = scmp.ne.s32.totalorder %s98, %s99
      %p108 = scmp.eq.s32.totalorder %s20, 0
      %p109 = por %p107, %p108
      %p110 = scmp.ne.s32.totalorder %s98, %s99
      %p111 = scmp.eq.s32.totalorder %s21, 1
      %p112 = por %p110, %p111
      %p114 = scmp.ne.s32.totalorder %s99, %s113
      %p115 = scmp.eq.s32.totalorder %s21, 0
      %p116 = por %p114, %p115
      %s118 = sadd.s32 %s117, 1
      %p121 = scmp.eq.s32.totalorder %s15, 1
      %p122 = scmp.ne.s32.totalorder %s117, %s119
      %p123 = scmp.eq.s32.totalorder %s15, 0
      %p124 = por %p122, %p123
      %p125 = scmp.ne.s32.totalorder %s117, %s119
      %p126 = scmp.eq.s32.totalorder %s20, 1
      %p127 = por %p125, %p126
      %p128 = scmp.ne.s32.totalorder %s119, %s120
      %p129 = scmp.eq.s32.totalorder %s20, 0
      %p130 = por %p128, %p129
      %p131 = scmp.ne.s32.totalorder %s119, %s120
      %p132 = scmp.eq.s32.totalorder %s21, 1
      %p133 = por %p131, %p132
      %p135 = scmp.ne.s32.totalorder %s120, %s134
      %p136 = scmp.eq.s32.totalorder %s21, 0
      %p137 = por %p135, %p136
      %s139 = sadd.s32 %s138, 1
      %p142 = scmp.eq.s32.totalorder %s15, 1
      %p143 = scmp.ne.s32.totalorder %s138, %s140
      %p144 = scmp.eq.s32.totalorder %s15, 0
      %p145 = por %p143, %p144
      %p146 = scmp.ne.s32.totalorder %s138, %s140
      %p147 = scmp.eq.s32.totalorder %s20, 1
      %p148 = por %p146, %p147
      %p149 = scmp.ne.s32.totalorder %s140, %s141
      %p150 = scmp.eq.s32.totalorder %s20, 0
      %p151 = por %p149, %p150
      %p152 = scmp.ne.s32.totalorder %s140, %s141
      %p153 = scmp.eq.s32.totalorder %s21, 1
      %p154 = por %p152, %p153
      %p156 = scmp.ne.s32.totalorder %s141, %s155
      %p157 = scmp.eq.s32.totalorder %s21, 0
      %p158 = por %p156, %p157
      %s159 = ssub.s32 %s15, %s22
      %p160 = scmp.eq.s32.totalorder %s159, 0
      %s162 = sadd.s32 %s161, 1
      %s163 = scalar_select %p160, %s161, %s162
      %p166 = pneg %p160
      %p167 = scmp.eq.s32.totalorder %s15, 1
      %p168 = por %p166, %p167
      %p169 = scmp.ne.s32.totalorder %s161, %s164
      %p170 = scmp.eq.s32.totalorder %s15, 0
      %p171 = por %p169, %p170
      %p172 = scmp.ne.s32.totalorder %s161, %s164
      %p173 = scmp.eq.s32.totalorder %s20, 1
      %p174 = por %p172, %p173
      %p175 = scmp.ne.s32.totalorder %s164, %s165
      %p176 = scmp.eq.s32.totalorder %s20, 0
      %p177 = por %p175, %p176
      %p178 = scmp.ne.s32.totalorder %s164, %s165
      %p179 = scmp.eq.s32.totalorder %s21, 1
      %p180 = por %p178, %p179
      %p182 = scmp.ne.s32.totalorder %s165, %s181
      %p183 = scmp.eq.s32.totalorder %s21, 0
      %p184 = por %p182, %p183
      %p185 = scmp.le.s32.totalorder 1, %s15
      %p186 = scmp.lt.s32.totalorder %s15, 3
      %p187 = pnand %p185, %p186
      %p188 = pneg %p187
      // Predicated region
      $region9: #{tpu_custom_call.1} parent=5 // pred_check
        _
      $region10: #{tpu_custom_call.1} parent=5 // pred_check_branch
        %190 = sbr.rel (%p187) target = $region12
      $region11: #{tpu_custom_call.1} parent=5 // pred_region
        %s191 = ssub.s32 %s15, 1
        // Predicated region
        $region13: #{tpu_custom_call.1} parent=11 // pred_check
          %p192 = pneg %p88
        $region14: #{tpu_custom_call.1} parent=11 // pred_check_branch
          %194 = sbr.rel (%p192) target = $region16
        $region15: #{tpu_custom_call.1} parent=11 // pred_region
          _
        $region16: #{tpu_custom_call.1} parent=11 // pred_fallthru
          _
        // Predicated region
        $region17: #{tpu_custom_call.1} parent=11 // pred_check
          %p195 = pneg %p109
        $region18: #{tpu_custom_call.1} parent=11 // pred_check_branch
          %197 = sbr.rel (%p195) target = $region20
        $region19: #{tpu_custom_call.1} parent=11 // pred_region
          _
        $region20: #{tpu_custom_call.1} parent=11 // pred_fallthru
          _
        // Predicated region
        $region21: #{tpu_custom_call.1} parent=11 // pred_check
          %p198 = pneg %p130
        $region22: #{tpu_custom_call.1} parent=11 // pred_check_branch
          %200 = sbr.rel (%p198) target = $region24
        $region23: #{tpu_custom_call.1} parent=11 // pred_region
          _
        $region24: #{tpu_custom_call.1} parent=11 // pred_fallthru
          _
        // Predicated region
        $region25: #{tpu_custom_call.1} parent=11 // pred_check
          %p201 = pneg %p151
        $region26: #{tpu_custom_call.1} parent=11 // pred_check_branch
          %203 = sbr.rel (%p201) target = $region28
        $region27: #{tpu_custom_call.1} parent=11 // pred_region
          _
        $region28: #{tpu_custom_call.1} parent=11 // pred_fallthru
          _
      $region12: #{tpu_custom_call.1} parent=5 // pred_fallthru
        _
      %p204 = scmp.lt.s32.totalorder %s15, 2
      // Predicated region
      $region29: #{tpu_custom_call.1} parent=5 // pred_check
        %p205 = pneg %p204
      $region30: #{tpu_custom_call.1} parent=5 // pred_check_branch
        %207 = sbr.rel (%p205) target = $region32
      $region31: #{tpu_custom_call.1} parent=5 // pred_region
        // Predicated region
        $region33: #{tpu_custom_call.1} parent=31 // pred_check
          %p208 = pneg %p35
        $region34: #{tpu_custom_call.1} parent=31 // pred_check_branch
          %210 = sbr.rel (%p208) target = $region36
        $region35: #{tpu_custom_call.1} parent=31 // pred_region
          %p211 = scmp.lt.s32.totalorder %s15, 1
          %s212 = scalar_select %p211, %s15, 1
          %s213 = smul.addr %s212, 8
          %s214 = scalar_lea.vmem %s0, %s213
        $region36: #{tpu_custom_call.1} parent=31 // pred_fallthru
          _
        // Predicated region
        $region37: #{tpu_custom_call.1} parent=31 // pred_check
          %p215 = pneg %p61
        $region38: #{tpu_custom_call.1} parent=31 // pred_check_branch
          %217 = sbr.rel (%p215) target = $region40
        $region39: #{tpu_custom_call.1} parent=31 // pred_region
          %p218 = scmp.lt.s32.totalorder %s15, 1
          %s219 = scalar_select %p218, %s15, 1
          %s220 = smul.addr %s219, 8
          %s221 = scalar_lea.vmem %s1, %s220
        $region40: #{tpu_custom_call.1} parent=31 // pred_fallthru
          _
      $region32: #{tpu_custom_call.1} parent=5 // pred_fallthru
        _
      %p222 = scmp.le.s32.totalorder 1, %s15
      %p223 = scmp.lt.s32.totalorder %s15, 3
      %p224 = pnand %p222, %p223
      %p225 = pneg %p224
      // Predicated region
      $region41: #{tpu_custom_call.1} parent=5 // pred_check
        _
      $region42: #{tpu_custom_call.1} parent=5 // pred_check_branch
        %227 = sbr.rel (%p224) target = $region44
      $region43: #{tpu_custom_call.1} parent=5 // pred_region
        %s228 = ssub.s32 %s15, 1
        %p229 = scmp.lt.s32.totalorder %s20, 1
        %s230 = scalar_select %p229, %s20, 1
        %s231 = smul.addr %s230, 8
        %s232 = scalar_lea.vmem %s0, %s231
        %p233 = pneg %p41
        %p234 = pneg %p38
        %p235 = scmp.lt.s32.totalorder %s20, 1
        %s236 = scalar_select %p235, %s20, 1
        %s237 = smul.addr %s236, 8
        %s238 = scalar_lea.vmem %s1, %s237
        %p239 = pneg %p67
        %p240 = pneg %p64
        %p241 = pneg %p88
        %p242 = pneg %p85
        %p243 = pneg %p109
        %p244 = pneg %p106
        %p245 = pneg %p130
        %p246 = pneg %p127
        %p247 = pneg %p151
        %p248 = pneg %p148
        %p249 = pneg %p177
        %p250 = pneg %p174
        %s251 = sand.u32 %s164, 1
        %s252 = scalar_lea.sflag [#allocation3], %s251
        %s253 = sand.u32 %s164, 1
        %s254 = smul.addr %s253, 2
        %s255 = scalar_lea.vmem [#allocation2], %s254
        %p256 = scmp.lt.s32.totalorder %s20, 1
        %s257 = scalar_select %p256, %s20, 1
        %s258 = smul.addr %s257, 8
        %s259 = scalar_lea.vmem %s0, %s258
        %p260 = scmp.lt.s32.totalorder %s20, 1
        %s261 = scalar_select %p260, %s20, 1
        %s262 = smul.addr %s261, 8
        %s263 = scalar_lea.vmem %s1, %s262
        %v264 = vld [vmem:[%s259] sm:$0xff]
        %v265 = vld [vmem:[%s2] sm:$0xff]
        %v266 = vld [vmem:[%s2 + $0x8] sm:$0xff]
        %v267 = vld [vmem:[%s2 + $0x10] sm:$0xff]
        %v268 = vld [vmem:[%s2 + $0x18] sm:$0xff]
        %v269 = vld [vmem:[%s2 + $0x20] sm:$0xff]
        %v270 = vld [vmem:[%s2 + $0x28] sm:$0xff]
        %v271 = vld [vmem:[%s3] sm:$0x7]
        %v273 = vlaneseq
        %v274 = vshrl.u32 %v273, 7
        %v275 = vsub.s32 0, %v274
        %v276 = vrot.slane %v271, %v275
        %v277 = vlaneseq
        %v278 = vshrl.u32 %v277, 7
        %v279 = vsub.s32 1, %v278
        %v280 = vrot.slane %v271, %v279
        %v281 = vlaneseq
        %v282 = vshrl.u32 %v281, 7
        %v283 = vsub.s32 2, %v282
        %v284 = vrot.slane %v271, %v283
        %vm288 = vcmask 130048
        %v290 = vsel %vm288, %v264, 0
        %v292 = vand.u32 %v266, 4294901760
        %293 = vmatprep.subr.mxu0 %v292
        %v294 = vand.u32 %v265, 4294901760
        %295 = vmatpush1.msra.mxu0 %v294
        %v296 = vand.u32 %v269, 4294901760
        %297 = vmatprep.subr.mxu0 %v296
        %v298 = vand.u32 %v268, 4294901760
        %299 = vmatpush1.msra.mxu0 %v298
        %300 = vmatprep.subr.mxu0 0.0
        %301 = vmatpush1.msra.mxu0 0.0
        %302 = vmatprep.subr.mxu0 0.0
        %303 = vmatpush1.msra.mxu0 0.0
        %304 = vmatprep.subr.mxu0 0.0
        %305 = vmatpush1.msra.mxu0 0.0
        %306 = vmatprep.subr.mxu0 0.0
        %307 = vmatpush1.msra.mxu0 0.0
        %308 = vmatprep.subr.mxu0 0.0
        %309 = vmatpush1.msra.mxu0 0.0
        %310 = vmatprep.subr.mxu0 0.0
        %311 = vmatpush1.msra.mxu0 0.0
        %312 = vmatprep.subr.mxu0 0.0
        %313 = vmatpush1.msra.mxu0 0.0
        %314 = vmatprep.subr.mxu0 0.0
        %315 = vmatpush1.msra.mxu0 0.0
        %316 = vmatprep.subr.mxu0 0.0
        %317 = vmatpush1.msra.mxu0 0.0
        %318 = vmatprep.subr.mxu0 0.0
        %319 = vmatpush1.msra.mxu0 0.0
        %320 = vmatprep.subr.mxu0 0.0
        %321 = vmatpush1.msra.mxu0 0.0
        %322 = vmatprep.subr.mxu0 0.0
        %323 = vmatpush1.msra.mxu0 0.0
        %324 = vmatprep.subr.mxu0 0.0
        %325 = vmatpush1.msra.mxu0 0.0
        %326 = vmatprep.subr.mxu0 0.0
        %327 = vmatpush1.msra.mxu0 0.0
        %328 = vmatprep.subr.mxu0 0.0
        %329 = vmatpush1.msra.mxu0 0.0
        %330 = vmatprep.subr.mxu0 0.0
        %331 = vmatpush1.msra.mxu0 0.0
        %332 = vmatprep.subr.mxu0 0.0
        %333 = vmatpush1.msra.mxu0 0.0
        %334 = vmatprep.subr.mxu0 0.0
        %335 = vmatpush1.msra.mxu0 0.0
        %336 = vmatprep.subr.mxu0 0.0
        %337 = vmatpush1.msra.mxu0 0.0
        %338 = vmatprep.subr.mxu0 0.0
        %339 = vmatpush1.msra.mxu0 0.0
        %340 = vmatprep.subr.mxu0 0.0
        %341 = vmatpush1.msra.mxu0 0.0
        %342 = vmatprep.subr.mxu0 0.0
        %343 = vmatpush1.msra.mxu0 0.0
        %344 = vmatprep.subr.mxu0 0.0
        %345 = vmatpush1.msra.mxu0 0.0
        %346 = vmatprep.subr.mxu0 0.0
        %347 = vmatpush1.msra.mxu0 0.0
        %348 = vmatprep.subr.mxu0 0.0
        %349 = vmatpush1.msra.mxu0 0.0
        %350 = vmatprep.subr.mxu0 0.0
        %351 = vmatpush1.msra.mxu0 0.0
        %352 = vmatprep.subr.mxu0 0.0
        %353 = vmatpush1.msra.mxu0 0.0
        %354 = vmatprep.subr.mxu0 0.0
        %355 = vmatpush1.msra.mxu0 0.0
        %356 = vmatprep.subr.mxu0 0.0
        %357 = vmatpush1.msra.mxu0 0.0
        %358 = vmatprep.subr.mxu0 0.0
        %359 = vmatpush1.msra.mxu0 0.0
        %360 = vmatprep.mubr.f32.mxu0 0.0
        %v361 = vand.u32 %v290, 4294901760
        %v362 = vsub.f32 %v290, %v361
        %v363 = vand.u32 %v362, 4294901760
        %v364 = vsub.f32 %v362, %v363
        %v365 = vand.u32 %v364, 4294901760
        %366 = vmatmul.mubr.f32.gmra.mrb[0].mxu0 %v365
        %v367 = vpop.f32.mrb[0].mxu0
        %v368 = vadd.f32 %v276, %v367
        %v369 = vpop.f32.mrb[0].mxu0
        %v370 = vadd.f32 %v280, %v369
        %371 = vdwg.mxu0
        %v372 = vand.u32 %v266, 4294901760
        %v373 = vsub.f32 %v266, %v372
        %v374 = vand.u32 %v373, 4294901760
        %v375 = vsub.f32 %v373, %v374
        %v376 = vand.u32 %v375, 4294901760
        %377 = vmatprep.subr.mxu0 %v376
        %v378 = vand.u32 %v265, 4294901760
        %v379 = vsub.f32 %v265, %v378
        %v380 = vand.u32 %v379, 4294901760
        %v381 = vsub.f32 %v379, %v380
        %v382 = vand.u32 %v381, 4294901760
        %383 = vmatpush1.msra.mxu0 %v382
        %v384 = vand.u32 %v269, 4294901760
        %v385 = vsub.f32 %v269, %v384
        %v386 = vand.u32 %v385, 4294901760
        %v387 = vsub.f32 %v385, %v386
        %v388 = vand.u32 %v387, 4294901760
        %389 = vmatprep.subr.mxu0 %v388
        %v390 = vand.u32 %v268, 4294901760
        %v391 = vsub.f32 %v268, %v390
        %v392 = vand.u32 %v391, 4294901760
        %v393 = vsub.f32 %v391, %v392
        %v394 = vand.u32 %v393, 4294901760
        %395 = vmatpush1.msra.mxu0 %v394
        %396 = vmatprep.subr.mxu0 0.0
        %397 = vmatpush1.msra.mxu0 0.0
        %398 = vmatprep.subr.mxu0 0.0
        %399 = vmatpush1.msra.mxu0 0.0
        %400 = vmatprep.subr.mxu0 0.0
        %401 = vmatpush1.msra.mxu0 0.0
        %402 = vmatprep.subr.mxu0 0.0
        %403 = vmatpush1.msra.mxu0 0.0
        %404 = vmatprep.subr.mxu0 0.0
        %405 = vmatpush1.msra.mxu0 0.0
        %406 = vmatprep.subr.mxu0 0.0
        %407 = vmatpush1.msra.mxu0 0.0
        %408 = vmatprep.subr.mxu0 0.0
        %409 = vmatpush1.msra.mxu0 0.0
        %410 = vmatprep.subr.mxu0 0.0
        %411 = vmatpush1.msra.mxu0 0.0
        %412 = vmatprep.subr.mxu0 0.0
        %413 = vmatpush1.msra.mxu0 0.0
        %414 = vmatprep.subr.mxu0 0.0
        %415 = vmatpush1.msra.mxu0 0.0
        %416 = vmatprep.subr.mxu0 0.0
        %417 = vmatpush1.msra.mxu0 0.0
        %418 = vmatprep.subr.mxu0 0.0
        %419 = vmatpush1.msra.mxu0 0.0
        %420 = vmatprep.subr.mxu0 0.0
        %421 = vmatpush1.msra.mxu0 0.0
        %422 = vmatprep.subr.mxu0 0.0
        %423 = vmatpush1.msra.mxu0 0.0
        %424 = vmatprep.subr.mxu0 0.0
        %425 = vmatpush1.msra.mxu0 0.0
        %426 = vmatprep.subr.mxu0 0.0
        %427 = vmatpush1.msra.mxu0 0.0
        %428 = vmatprep.subr.mxu0 0.0
        %429 = vmatpush1.msra.mxu0 0.0
        %430 = vmatprep.subr.mxu0 0.0
        %431 = vmatpush1.msra.mxu0 0.0
        %432 = vmatprep.subr.mxu0 0.0
        %433 = vmatpush1.msra.mxu0 0.0
        %434 = vmatprep.subr.mxu0 0.0
        %435 = vmatpush1.msra.mxu0 0.0
        %436 = vmatprep.subr.mxu0 0.0
        %437 = vmatpush1.msra.mxu0 0.0
        %438 = vmatprep.subr.mxu0 0.0
        %439 = vmatpush1.msra.mxu0 0.0
        %440 = vmatprep.subr.mxu0 0.0
        %441 = vmatpush1.msra.mxu0 0.0
        %442 = vmatprep.subr.mxu0 0.0
        %443 = vmatpush1.msra.mxu0 0.0
        %444 = vmatprep.subr.mxu0 0.0
        %445 = vmatpush1.msra.mxu0 0.0
        %446 = vmatprep.subr.mxu0 0.0
        %447 = vmatpush1.msra.mxu0 0.0
        %448 = vmatprep.subr.mxu0 0.0
        %449 = vmatpush1.msra.mxu0 0.0
        %450 = vmatprep.subr.mxu0 0.0
        %451 = vmatpush1.msra.mxu0 0.0
        %452 = vmatprep.subr.mxu0 0.0
        %453 = vmatpush1.msra.mxu0 0.0
        %454 = vmatprep.subr.mxu0 0.0
        %455 = vmatpush1.msra.mxu0 0.0
        %456 = vmatprep.mubr.f32.mxu0 0.0
        %v457 = vand.u32 %v290, 4294901760
        %458 = vmatmul.mubr.f32.gmra.mrb[0].mxu0 %v457
        %v459 = vpop.f32.mrb[0].mxu0
        %v460 = vadd.f32 %v368, %v459
        %v461 = vpop.f32.mrb[0].mxu0
        %v462 = vadd.f32 %v370, %v461
        %463 = vdwg.mxu0
        %v464 = vand.u32 %v266, 4294901760
        %v465 = vsub.f32 %v266, %v464
        %466 = vmatprep.subr.mxu0 %v465
        %v467 = vand.u32 %v265, 4294901760
        %v468 = vsub.f32 %v265, %v467
        %469 = vmatpush1.msra.mxu0 %v468
        %v470 = vand.u32 %v269, 4294901760
        %v471 = vsub.f32 %v269, %v470
        %472 = vmatprep.subr.mxu0 %v471
        %v473 = vand.u32 %v268, 4294901760
        %v474 = vsub.f32 %v268, %v473
        %475 = vmatpush1.msra.mxu0 %v474
        %476 = vmatprep.subr.mxu0 0.0
        %477 = vmatpush1.msra.mxu0 0.0
        %478 = vmatprep.subr.mxu0 0.0
        %479 = vmatpush1.msra.mxu0 0.0
        %480 = vmatprep.subr.mxu0 0.0
        %481 = vmatpush1.msra.mxu0 0.0
        %482 = vmatprep.subr.mxu0 0.0
        %483 = vmatpush1.msra.mxu0 0.0
        %484 = vmatprep.subr.mxu0 0.0
        %485 = vmatpush1.msra.mxu0 0.0
        %486 = vmatprep.subr.mxu0 0.0
        %487 = vmatpush1.msra.mxu0 0.0
        %488 = vmatprep.subr.mxu0 0.0
        %489 = vmatpush1.msra.mxu0 0.0
        %490 = vmatprep.subr.mxu0 0.0
        %491 = vmatpush1.msra.mxu0 0.0
        %492 = vmatprep.subr.mxu0 0.0
        %493 = vmatpush1.msra.mxu0 0.0
        %494 = vmatprep.subr.mxu0 0.0
        %495 = vmatpush1.msra.mxu0 0.0
        %496 = vmatprep.subr.mxu0 0.0
        %497 = vmatpush1.msra.mxu0 0.0
        %498 = vmatprep.subr.mxu0 0.0
        %499 = vmatpush1.msra.mxu0 0.0
        %500 = vmatprep.subr.mxu0 0.0
        %501 = vmatpush1.msra.mxu0 0.0
        %502 = vmatprep.subr.mxu0 0.0
        %503 = vmatpush1.msra.mxu0 0.0
        %504 = vmatprep.subr.mxu0 0.0
        %505 = vmatpush1.msra.mxu0 0.0
        %506 = vmatprep.subr.mxu0 0.0
        %507 = vmatpush1.msra.mxu0 0.0
        %508 = vmatprep.subr.mxu0 0.0
        %509 = vmatpush1.msra.mxu0 0.0
        %510 = vmatprep.subr.mxu0 0.0
        %511 = vmatpush1.msra.mxu0 0.0
        %512 = vmatprep.subr.mxu0 0.0
        %513 = vmatpush1.msra.mxu0 0.0
        %514 = vmatprep.subr.mxu0 0.0
        %515 = vmatpush1.msra.mxu0 0.0
        %516 = vmatprep.subr.mxu0 0.0
        %517 = vmatpush1.msra.mxu0 0.0
        %518 = vmatprep.subr.mxu0 0.0
        %519 = vmatpush1.msra.mxu0 0.0
        %520 = vmatprep.subr.mxu0 0.0
        %521 = vmatpush1.msra.mxu0 0.0
        %522 = vmatprep.subr.mxu0 0.0
        %523 = vmatpush1.msra.mxu0 0.0
        %524 = vmatprep.subr.mxu0 0.0
        %525 = vmatpush1.msra.mxu0 0.0
        %526 = vmatprep.subr.mxu0 0.0
        %527 = vmatpush1.msra.mxu0 0.0
        %528 = vmatprep.subr.mxu0 0.0
        %529 = vmatpush1.msra.mxu0 0.0
        %530 = vmatprep.subr.mxu0 0.0
        %531 = vmatpush1.msra.mxu0 0.0
        %532 = vmatprep.subr.mxu0 0.0
        %533 = vmatpush1.msra.mxu0 0.0
        %534 = vmatprep.subr.mxu0 0.0
        %535 = vmatpush1.msra.mxu0 0.0
        %536 = vmatprep.mubr.f32.mxu0 0.0
        %v537 = vand.u32 %v290, 4294901760
        %v538 = vsub.f32 %v290, %v537
        %539 = vmatmul.mubr.f32.gmra.mrb[0].mxu0 %v538
        %v540 = vpop.f32.mrb[0].mxu0
        %v541 = vadd.f32 %v460, %v540
        %v542 = vpop.f32.mrb[0].mxu0
        %v543 = vadd.f32 %v462, %v542
        %544 = vdwg.mxu0
        %v545 = vand.u32 %v266, 4294901760
        %546 = vmatprep.subr.mxu0 %v545
        %v547 = vand.u32 %v265, 4294901760
        %548 = vmatpush1.msra.mxu0 %v547
        %v549 = vand.u32 %v269, 4294901760
        %550 = vmatprep.subr.mxu0 %v549
        %v551 = vand.u32 %v268, 4294901760
        %552 = vmatpush1.msra.mxu0 %v551
        %553 = vmatprep.subr.mxu0 0.0
        %554 = vmatpush1.msra.mxu0 0.0
        %555 = vmatprep.subr.mxu0 0.0
        %556 = vmatpush1.msra.mxu0 0.0
        %557 = vmatprep.subr.mxu0 0.0
        %558 = vmatpush1.msra.mxu0 0.0
        %559 = vmatprep.subr.mxu0 0.0
        %560 = vmatpush1.msra.mxu0 0.0
        %561 = vmatprep.subr.mxu0 0.0
        %562 = vmatpush1.msra.mxu0 0.0
        %563 = vmatprep.subr.mxu0 0.0
        %564 = vmatpush1.msra.mxu0 0.0
        %565 = vmatprep.subr.mxu0 0.0
        %566 = vmatpush1.msra.mxu0 0.0
        %567 = vmatprep.subr.mxu0 0.0
        %568 = vmatpush1.msra.mxu0 0.0
        %569 = vmatprep.subr.mxu0 0.0
        %570 = vmatpush1.msra.mxu0 0.0
        %571 = vmatprep.subr.mxu0 0.0
        %572 = vmatpush1.msra.mxu0 0.0
        %573 = vmatprep.subr.mxu0 0.0
        %574 = vmatpush1.msra.mxu0 0.0
        %575 = vmatprep.subr.mxu0 0.0
        %576 = vmatpush1.msra.mxu0 0.0
        %577 = vmatprep.subr.mxu0 0.0
        %578 = vmatpush1.msra.mxu0 0.0
        %579 = vmatprep.subr.mxu0 0.0
        %580 = vmatpush1.msra.mxu0 0.0
        %581 = vmatprep.subr.mxu0 0.0
        %582 = vmatpush1.msra.mxu0 0.0
        %583 = vmatprep.subr.mxu0 0.0
        %584 = vmatpush1.msra.mxu0 0.0
        %585 = vmatprep.subr.mxu0 0.0
        %586 = vmatpush1.msra.mxu0 0.0
        %587 = vmatprep.subr.mxu0 0.0
        %588 = vmatpush1.msra.mxu0 0.0
        %589 = vmatprep.subr.mxu0 0.0
        %590 = vmatpush1.msra.mxu0 0.0
        %591 = vmatprep.subr.mxu0 0.0
        %592 = vmatpush1.msra.mxu0 0.0
        %593 = vmatprep.subr.mxu0 0.0
        %594 = vmatpush1.msra.mxu0 0.0
        %595 = vmatprep.subr.mxu0 0.0
        %596 = vmatpush1.msra.mxu0 0.0
        %597 = vmatprep.subr.mxu0 0.0
        %598 = vmatpush1.msra.mxu0 0.0
        %599 = vmatprep.subr.mxu0 0.0
        %600 = vmatpush1.msra.mxu0 0.0
        %601 = vmatprep.subr.mxu0 0.0
        %602 = vmatpush1.msra.mxu0 0.0
        %603 = vmatprep.subr.mxu0 0.0
        %604 = vmatpush1.msra.mxu0 0.0
        %605 = vmatprep.subr.mxu0 0.0
        %606 = vmatpush1.msra.mxu0 0.0
        %607 = vmatprep.subr.mxu0 0.0
        %608 = vmatpush1.msra.mxu0 0.0
        %609 = vmatprep.subr.mxu0 0.0
        %610 = vmatpush1.msra.mxu0 0.0
        %611 = vmatprep.subr.mxu0 0.0
        %612 = vmatpush1.msra.mxu0 0.0
        %613 = vmatprep.mubr.f32.mxu0 0.0
        %v614 = vand.u32 %v290, 4294901760
        %v615 = vsub.f32 %v290, %v614
        %v616 = vand.u32 %v615, 4294901760
        %617 = vmatmul.mubr.f32.gmra.mrb[0].mxu0 %v616
        %v618 = vpop.f32.mrb[0].mxu0
        %v619 = vadd.f32 %v541, %v618
        %v620 = vpop.f32.mrb[0].mxu0
        %v621 = vadd.f32 %v543, %v620
        %622 = vdwg.mxu0
        %v623 = vand.u32 %v266, 4294901760
        %v624 = vsub.f32 %v266, %v623
        %v625 = vand.u32 %v624, 4294901760
        %626 = vmatprep.subr.mxu0 %v625
        %v627 = vand.u32 %v265, 4294901760
        %v628 = vsub.f32 %v265, %v627
        %v629 = vand.u32 %v628, 4294901760
        %630 = vmatpush1.msra.mxu0 %v629
        %v631 = vand.u32 %v269, 4294901760
        %v632 = vsub.f32 %v269, %v631
        %v633 = vand.u32 %v632, 4294901760
        %634 = vmatprep.subr.mxu0 %v633
        %v635 = vand.u32 %v268, 4294901760
        %v636 = vsub.f32 %v268, %v635
        %v637 = vand.u32 %v636, 4294901760
        %638 = vmatpush1.msra.mxu0 %v637
        %639 = vmatprep.subr.mxu0 0.0
        %640 = vmatpush1.msra.mxu0 0.0
        %641 = vmatprep.subr.mxu0 0.0
        %642 = vmatpush1.msra.mxu0 0.0
        %643 = vmatprep.subr.mxu0 0.0
        %644 = vmatpush1.msra.mxu0 0.0
        %645 = vmatprep.subr.mxu0 0.0
        %646 = vmatpush1.msra.mxu0 0.0
        %647 = vmatprep.subr.mxu0 0.0
        %648 = vmatpush1.msra.mxu0 0.0
        %649 = vmatprep.subr.mxu0 0.0
        %650 = vmatpush1.msra.mxu0 0.0
        %651 = vmatprep.subr.mxu0 0.0
        %652 = vmatpush1.msra.mxu0 0.0
        %653 = vmatprep.subr.mxu0 0.0
        %654 = vmatpush1.msra.mxu0 0.0
        %655 = vmatprep.subr.mxu0 0.0
        %656 = vmatpush1.msra.mxu0 0.0
        %657 = vmatprep.subr.mxu0 0.0
        %658 = vmatpush1.msra.mxu0 0.0
        %659 = vmatprep.subr.mxu0 0.0
        %660 = vmatpush1.msra.mxu0 0.0
        %661 = vmatprep.subr.mxu0 0.0
        %662 = vmatpush1.msra.mxu0 0.0
        %663 = vmatprep.subr.mxu0 0.0
        %664 = vmatpush1.msra.mxu0 0.0
        %665 = vmatprep.subr.mxu0 0.0
        %666 = vmatpush1.msra.mxu0 0.0
        %667 = vmatprep.subr.mxu0 0.0
        %668 = vmatpush1.msra.mxu0 0.0
        %669 = vmatprep.subr.mxu0 0.0
        %670 = vmatpush1.msra.mxu0 0.0
        %671 = vmatprep.subr.mxu0 0.0
        %672 = vmatpush1.msra.mxu0 0.0
        %673 = vmatprep.subr.mxu0 0.0
        %674 = vmatpush1.msra.mxu0 0.0
        %675 = vmatprep.subr.mxu0 0.0
        %676 = vmatpush1.msra.mxu0 0.0
        %677 = vmatprep.subr.mxu0 0.0
        %678 = vmatpush1.msra.mxu0 0.0
        %679 = vmatprep.subr.mxu0 0.0
        %680 = vmatpush1.msra.mxu0 0.0
        %681 = vmatprep.subr.mxu0 0.0
        %682 = vmatpush1.msra.mxu0 0.0
        %683 = vmatprep.subr.mxu0 0.0
        %684 = vmatpush1.msra.mxu0 0.0
        %685 = vmatprep.subr.mxu0 0.0
        %686 = vmatpush1.msra.mxu0 0.0
        %687 = vmatprep.subr.mxu0 0.0
        %688 = vmatpush1.msra.mxu0 0.0
        %689 = vmatprep.subr.mxu0 0.0
        %690 = vmatpush1.msra.mxu0 0.0
        %691 = vmatprep.subr.mxu0 0.0
        %692 = vmatpush1.msra.mxu0 0.0
        %693 = vmatprep.subr.mxu0 0.0
        %694 = vmatpush1.msra.mxu0 0.0
        %695 = vmatprep.subr.mxu0 0.0
        %696 = vmatpush1.msra.mxu0 0.0
        %697 = vmatprep.subr.mxu0 0.0
        %698 = vmatpush1.msra.mxu0 0.0
        %699 = vmatprep.mubr.f32.mxu0 0.0
        %v700 = vand.u32 %v290, 4294901760
        %701 = vmatmul.mubr.f32.gmra.mrb[0].mxu0 %v700
        %v702 = vpop.f32.mrb[0].mxu0
        %v703 = vadd.f32 %v619, %v702
        %v704 = vpop.f32.mrb[0].mxu0
        %v705 = vadd.f32 %v621, %v704
        %706 = vdwg.mxu0
        %v707 = vand.u32 %v266, 4294901760
        %708 = vmatprep.subr.mxu0 %v707
        %v709 = vand.u32 %v265, 4294901760
        %710 = vmatpush1.msra.mxu0 %v709
        %v711 = vand.u32 %v269, 4294901760
        %712 = vmatprep.subr.mxu0 %v711
        %v713 = vand.u32 %v268, 4294901760
        %714 = vmatpush1.msra.mxu0 %v713
        %715 = vmatprep.subr.mxu0 0.0
        %716 = vmatpush1.msra.mxu0 0.0
        %717 = vmatprep.subr.mxu0 0.0
        %718 = vmatpush1.msra.mxu0 0.0
        %719 = vmatprep.subr.mxu0 0.0
        %720 = vmatpush1.msra.mxu0 0.0
        %721 = vmatprep.subr.mxu0 0.0
        %722 = vmatpush1.msra.mxu0 0.0
        %723 = vmatprep.subr.mxu0 0.0
        %724 = vmatpush1.msra.mxu0 0.0
        %725 = vmatprep.subr.mxu0 0.0
        %726 = vmatpush1.msra.mxu0 0.0
        %727 = vmatprep.subr.mxu0 0.0
        %728 = vmatpush1.msra.mxu0 0.0
        %729 = vmatprep.subr.mxu0 0.0
        %730 = vmatpush1.msra.mxu0 0.0
        %731 = vmatprep.subr.mxu0 0.0
        %732 = vmatpush1.msra.mxu0 0.0
        %733 = vmatprep.subr.mxu0 0.0
        %734 = vmatpush1.msra.mxu0 0.0
        %735 = vmatprep.subr.mxu0 0.0
        %736 = vmatpush1.msra.mxu0 0.0
        %737 = vmatprep.subr.mxu0 0.0
        %738 = vmatpush1.msra.mxu0 0.0
        %739 = vmatprep.subr.mxu0 0.0
        %740 = vmatpush1.msra.mxu0 0.0
        %741 = vmatprep.subr.mxu0 0.0
        %742 = vmatpush1.msra.mxu0 0.0
        %743 = vmatprep.subr.mxu0 0.0
        %744 = vmatpush1.msra.mxu0 0.0
        %745 = vmatprep.subr.mxu0 0.0
        %746 = vmatpush1.msra.mxu0 0.0
        %747 = vmatprep.subr.mxu0 0.0
        %748 = vmatpush1.msra.mxu0 0.0
        %749 = vmatprep.subr.mxu0 0.0
        %750 = vmatpush1.msra.mxu0 0.0
        %751 = vmatprep.subr.mxu0 0.0
        %752 = vmatpush1.msra.mxu0 0.0
        %753 = vmatprep.subr.mxu0 0.0
        %754 = vmatpush1.msra.mxu0 0.0
        %755 = vmatprep.subr.mxu0 0.0
        %756 = vmatpush1.msra.mxu0 0.0
        %757 = vmatprep.subr.mxu0 0.0
        %758 = vmatpush1.msra.mxu0 0.0
        %759 = vmatprep.subr.mxu0 0.0
        %760 = vmatpush1.msra.mxu0 0.0
        %761 = vmatprep.subr.mxu0 0.0
        %762 = vmatpush1.msra.mxu0 0.0
        %763 = vmatprep.subr.mxu0 0.0
        %764 = vmatpush1.msra.mxu0 0.0
        %765 = vmatprep.subr.mxu0 0.0
        %766 = vmatpush1.msra.mxu0 0.0
        %767 = vmatprep.subr.mxu0 0.0
        %768 = vmatpush1.msra.mxu0 0.0
        %769 = vmatprep.subr.mxu0 0.0
        %770 = vmatpush1.msra.mxu0 0.0
        %771 = vmatprep.subr.mxu0 0.0
        %772 = vmatpush1.msra.mxu0 0.0
        %773 = vmatprep.subr.mxu0 0.0
        %774 = vmatpush1.msra.mxu0 0.0
        %775 = vmatprep.mubr.f32.mxu0 0.0
        %v776 = vand.u32 %v290, 4294901760
        %777 = vmatmul.mubr.f32.gmra.mrb[0].mxu0 %v776
        %v778 = vpop.f32.mrb[0].mxu0
        %v779 = vadd.f32 %v703, %v778
        %v780 = vpop.f32.mrb[0].mxu0
        %v781 = vadd.f32 %v705, %v780
        %782 = vdwg.mxu0
        %783 = vmatprep.subr.mxu0 0.0
        %v784 = vand.u32 %v267, 4294901760
        %785 = vmatpush1.msra.mxu0 %v784
        %786 = vmatprep.subr.mxu0 0.0
        %v787 = vand.u32 %v270, 4294901760
        %788 = vmatpush1.msra.mxu0 %v787
        %789 = vmatprep.subr.mxu0 0.0
        %790 = vmatpush1.msra.mxu0 0.0
        %791 = vmatprep.subr.mxu0 0.0
        %792 = vmatpush1.msra.mxu0 0.0
        %793 = vmatprep.subr.mxu0 0.0
        %794 = vmatpush1.msra.mxu0 0.0
        %795 = vmatprep.subr.mxu0 0.0
        %796 = vmatpush1.msra.mxu0 0.0
        %797 = vmatprep.subr.mxu0 0.0
        %798 = vmatpush1.msra.mxu0 0.0
        %799 = vmatprep.subr.mxu0 0.0
        %800 = vmatpush1.msra.mxu0 0.0
        %801 = vmatprep.subr.mxu0 0.0
        %802 = vmatpush1.msra.mxu0 0.0
        %803 = vmatprep.subr.mxu0 0.0
        %804 = vmatpush1.msra.mxu0 0.0
        %805 = vmatprep.subr.mxu0 0.0
        %806 = vmatpush1.msra.mxu0 0.0
        %807 = vmatprep.subr.mxu0 0.0
        %808 = vmatpush1.msra.mxu0 0.0
        %809 = vmatprep.subr.mxu0 0.0
        %810 = vmatpush1.msra.mxu0 0.0
        %811 = vmatprep.subr.mxu0 0.0
        %812 = vmatpush1.msra.mxu0 0.0
        %813 = vmatprep.subr.mxu0 0.0
        %814 = vmatpush1.msra.mxu0 0.0
        %815 = vmatprep.subr.mxu0 0.0
        %816 = vmatpush1.msra.mxu0 0.0
        %817 = vmatprep.subr.mxu0 0.0
        %818 = vmatpush1.msra.mxu0 0.0
        %819 = vmatprep.subr.mxu0 0.0
        %820 = vmatpush1.msra.mxu0 0.0
        %821 = vmatprep.subr.mxu0 0.0
        %822 = vmatpush1.msra.mxu0 0.0
        %823 = vmatprep.subr.mxu0 0.0
        %824 = vmatpush1.msra.mxu0 0.0
        %825 = vmatprep.subr.mxu0 0.0
        %826 = vmatpush1.msra.mxu0 0.0
        %827 = vmatprep.subr.mxu0 0.0
        %828 = vmatpush1.msra.mxu0 0.0
        %829 = vmatprep.subr.mxu0 0.0
        %830 = vmatpush1.msra.mxu0 0.0
        %831 = vmatprep.subr.mxu0 0.0
        %832 = vmatpush1.msra.mxu0 0.0
        %833 = vmatprep.subr.mxu0 0.0
        %834 = vmatpush1.msra.mxu0 0.0
        %835 = vmatprep.subr.mxu0 0.0
        %836 = vmatpush1.msra.mxu0 0.0
        %837 = vmatprep.subr.mxu0 0.0
        %838 = vmatpush1.msra.mxu0 0.0
        %839 = vmatprep.subr.mxu0 0.0
        %840 = vmatpush1.msra.mxu0 0.0
        %841 = vmatprep.subr.mxu0 0.0
        %842 = vmatpush1.msra.mxu0 0.0
        %843 = vmatprep.subr.mxu0 0.0
        %844 = vmatpush1.msra.mxu0 0.0
        %845 = vmatprep.subr.mxu0 0.0
        %846 = vmatpush1.msra.mxu0 0.0
        %847 = vmatprep.subr.mxu0 0.0
        %848 = vmatpush1.msra.mxu0 0.0
        %849 = vmatprep.mubr.f32.mxu0 0.0
        %v850 = vand.u32 %v290, 4294901760
        %v851 = vsub.f32 %v290, %v850
        %v852 = vand.u32 %v851, 4294901760
        %v853 = vsub.f32 %v851, %v852
        %v854 = vand.u32 %v853, 4294901760
        %855 = vmatmul.mubr.f32.gmra.mrb[0].mxu0 %v854
        %v856 = vpop.f32.mrb[0].mxu0
        %v857 = vadd.f32 %v284, %v856
        %v858 = vpop.f32.mrb[0].mxu0
        %859 = vdwg.mxu0
        %860 = vmatprep.subr.mxu0 0.0
        %v861 = vand.u32 %v267, 4294901760
        %v862 = vsub.f32 %v267, %v861
        %v863 = vand.u32 %v862, 4294901760
        %v864 = vsub.f32 %v862, %v863
        %v865 = vand.u32 %v864, 4294901760
        %866 = vmatpush1.msra.mxu0 %v865
        %867 = vmatprep.subr.mxu0 0.0
        %v868 = vand.u32 %v270, 4294901760
        %v869 = vsub.f32 %v270, %v868
        %v870 = vand.u32 %v869, 4294901760
        %v871 = vsub.f32 %v869, %v870
        %v872 = vand.u32 %v871, 4294901760
        %873 = vmatpush1.msra.mxu0 %v872
        %874 = vmatprep.subr.mxu0 0.0
        %875 = vmatpush1.msra.mxu0 0.0
        %876 = vmatprep.subr.mxu0 0.0
        %877 = vmatpush1.msra.mxu0 0.0
        %878 = vmatprep.subr.mxu0 0.0
        %879 = vmatpush1.msra.mxu0 0.0
        %880 = vmatprep.subr.mxu0 0.0
        %881 = vmatpush1.msra.mxu0 0.0
        %882 = vmatprep.subr.mxu0 0.0
        %883 = vmatpush1.msra.mxu0 0.0
        %884 = vmatprep.subr.mxu0 0.0
        %885 = vmatpush1.msra.mxu0 0.0
        %886 = vmatprep.subr.mxu0 0.0
        %887 = vmatpush1.msra.mxu0 0.0
        %888 = vmatprep.subr.mxu0 0.0
        %889 = vmatpush1.msra.mxu0 0.0
        %890 = vmatprep.subr.mxu0 0.0
        %891 = vmatpush1.msra.mxu0 0.0
        %892 = vmatprep.subr.mxu0 0.0
        %893 = vmatpush1.msra.mxu0 0.0
        %894 = vmatprep.subr.mxu0 0.0
        %895 = vmatpush1.msra.mxu0 0.0
        %896 = vmatprep.subr.mxu0 0.0
        %897 = vmatpush1.msra.mxu0 0.0
        %898 = vmatprep.subr.mxu0 0.0
        %899 = vmatpush1.msra.mxu0 0.0
        %900 = vmatprep.subr.mxu0 0.0
        %901 = vmatpush1.msra.mxu0 0.0
        %902 = vmatprep.subr.mxu0 0.0
        %903 = vmatpush1.msra.mxu0 0.0
        %904 = vmatprep.subr.mxu0 0.0
        %905 = vmatpush1.msra.mxu0 0.0
        %906 = vmatprep.subr.mxu0 0.0
        %907 = vmatpush1.msra.mxu0 0.0
        %908 = vmatprep.subr.mxu0 0.0
        %909 = vmatpush1.msra.mxu0 0.0
        %910 = vmatprep.subr.mxu0 0.0
        %911 = vmatpush1.msra.mxu0 0.0
        %912 = vmatprep.subr.mxu0 0.0
        %913 = vmatpush1.msra.mxu0 0.0
        %914 = vmatprep.subr.mxu0 0.0
        %915 = vmatpush1.msra.mxu0 0.0
        %916 = vmatprep.subr.mxu0 0.0
        %917 = vmatpush1.msra.mxu0 0.0
        %918 = vmatprep.subr.mxu0 0.0
        %919 = vmatpush1.msra.mxu0 0.0
        %920 = vmatprep.subr.mxu0 0.0
        %921 = vmatpush1.msra.mxu0 0.0
        %922 = vmatprep.subr.mxu0 0.0
        %923 = vmatpush1.msra.mxu0 0.0
        %924 = vmatprep.subr.mxu0 0.0
        %925 = vmatpush1.msra.mxu0 0.0
        %926 = vmatprep.subr.mxu0 0.0
        %927 = vmatpush1.msra.mxu0 0.0
        %928 = vmatprep.subr.mxu0 0.0
        %929 = vmatpush1.msra.mxu0 0.0
        %930 = vmatprep.subr.mxu0 0.0
        %931 = vmatpush1.msra.mxu0 0.0
        %932 = vmatprep.subr.mxu0 0.0
        %933 = vmatpush1.msra.mxu0 0.0
        %934 = vmatprep.mubr.f32.mxu0 0.0
        %v935 = vand.u32 %v290, 4294901760
        %936 = vmatmul.mubr.f32.gmra.mrb[0].mxu0 %v935
        %v937 = vpop.f32.mrb[0].mxu0
        %v938 = vadd.f32 %v857, %v937
        %v939 = vpop.f32.mrb[0].mxu0
        %940 = vdwg.mxu0
        %941 = vmatprep.subr.mxu0 0.0
        %v942 = vand.u32 %v267, 4294901760
        %v943 = vsub.f32 %v267, %v942
        %944 = vmatpush1.msra.mxu0 %v943
        %945 = vmatprep.subr.mxu0 0.0
        %v946 = vand.u32 %v270, 4294901760
        %v947 = vsub.f32 %v270, %v946
        %948 = vmatpush1.msra.mxu0 %v947
        %949 = vmatprep.subr.mxu0 0.0
        %950 = vmatpush1.msra.mxu0 0.0
        %951 = vmatprep.subr.mxu0 0.0
        %952 = vmatpush1.msra.mxu0 0.0
        %953 = vmatprep.subr.mxu0 0.0
        %954 = vmatpush1.msra.mxu0 0.0
        %955 = vmatprep.subr.mxu0 0.0
        %956 = vmatpush1.msra.mxu0 0.0
        %957 = vmatprep.subr.mxu0 0.0
        %958 = vmatpush1.msra.mxu0 0.0
        %959 = vmatprep.subr.mxu0 0.0
        %960 = vmatpush1.msra.mxu0 0.0
        %961 = vmatprep.subr.mxu0 0.0
        %962 = vmatpush1.msra.mxu0 0.0
        %963 = vmatprep.subr.mxu0 0.0
        %964 = vmatpush1.msra.mxu0 0.0
        %965 = vmatprep.subr.mxu0 0.0
        %966 = vmatpush1.msra.mxu0 0.0
        %967 = vmatprep.subr.mxu0 0.0
        %968 = vmatpush1.msra.mxu0 0.0
        %969 = vmatprep.subr.mxu0 0.0
        %970 = vmatpush1.msra.mxu0 0.0
        %971 = vmatprep.subr.mxu0 0.0
        %972 = vmatpush1.msra.mxu0 0.0
        %973 = vmatprep.subr.mxu0 0.0
        %974 = vmatpush1.msra.mxu0 0.0
        %975 = vmatprep.subr.mxu0 0.0
        %976 = vmatpush1.msra.mxu0 0.0
        %977 = vmatprep.subr.mxu0 0.0
        %978 = vmatpush1.msra.mxu0 0.0
        %979 = vmatprep.subr.mxu0 0.0
        %980 = vmatpush1.msra.mxu0 0.0
        %981 = vmatprep.subr.mxu0 0.0
        %982 = vmatpush1.msra.mxu0 0.0
        %983 = vmatprep.subr.mxu0 0.0
        %984 = vmatpush1.msra.mxu0 0.0
        %985 = vmatprep.subr.mxu0 0.0
        %986 = vmatpush1.msra.mxu0 0.0
        %987 = vmatprep.subr.mxu0 0.0
        %988 = vmatpush1.msra.mxu0 0.0
        %989 = vmatprep.subr.mxu0 0.0
        %990 = vmatpush1.msra.mxu0 0.0
        %991 = vmatprep.subr.mxu0 0.0
        %992 = vmatpush1.msra.mxu0 0.0
        %993 = vmatprep.subr.mxu0 0.0
        %994 = vmatpush1.msra.mxu0 0.0
        %995 = vmatprep.subr.mxu0 0.0
        %996 = vmatpush1.msra.mxu0 0.0
        %997 = vmatprep.subr.mxu0 0.0
        %998 = vmatpush1.msra.mxu0 0.0
        %999 = vmatprep.subr.mxu0 0.0
        %1000 = vmatpush1.msra.mxu0 0.0
        %1001 = vmatprep.subr.mxu0 0.0
        %1002 = vmatpush1.msra.mxu0 0.0
        %1003 = vmatprep.subr.mxu0 0.0
        %1004 = vmatpush1.msra.mxu0 0.0
        %1005 = vmatprep.subr.mxu0 0.0
        %1006 = vmatpush1.msra.mxu0 0.0
        %1007 = vmatprep.subr.mxu0 0.0
        %1008 = vmatpush1.msra.mxu0 0.0
        %1009 = vmatprep.mubr.f32.mxu0 0.0
        %v1010 = vand.u32 %v290, 4294901760
        %v1011 = vsub.f32 %v290, %v1010
        %1012 = vmatmul.mubr.f32.gmra.mrb[0].mxu0 %v1011
        %v1013 = vpop.f32.mrb[0].mxu0
        %v1014 = vadd.f32 %v938, %v1013
        %v1015 = vpop.f32.mrb[0].mxu0
        %1016 = vdwg.mxu0
        %1017 = vmatprep.subr.mxu0 0.0
        %v1018 = vand.u32 %v267, 4294901760
        %1019 = vmatpush1.msra.mxu0 %v1018
        %1020 = vmatprep.subr.mxu0 0.0
        %v1021 = vand.u32 %v270, 4294901760
        %1022 = vmatpush1.msra.mxu0 %v1021
        %1023 = vmatprep.subr.mxu0 0.0
        %1024 = vmatpush1.msra.mxu0 0.0
        %1025 = vmatprep.subr.mxu0 0.0
        %1026 = vmatpush1.msra.mxu0 0.0
        %1027 = vmatprep.subr.mxu0 0.0
        %1028 = vmatpush1.msra.mxu0 0.0
        %1029 = vmatprep.subr.mxu0 0.0
        %1030 = vmatpush1.msra.mxu0 0.0
        %1031 = vmatprep.subr.mxu0 0.0
        %1032 = vmatpush1.msra.mxu0 0.0
        %1033 = vmatprep.subr.mxu0 0.0
        %1034 = vmatpush1.msra.mxu0 0.0
        %1035 = vmatprep.subr.mxu0 0.0
        %1036 = vmatpush1.msra.mxu0 0.0
        %1037 = vmatprep.subr.mxu0 0.0
        %1038 = vmatpush1.msra.mxu0 0.0
        %1039 = vmatprep.subr.mxu0 0.0
        %1040 = vmatpush1.msra.mxu0 0.0
        %1041 = vmatprep.subr.mxu0 0.0
        %1042 = vmatpush1.msra.mxu0 0.0
        %1043 = vmatprep.subr.mxu0 0.0
        %1044 = vmatpush1.msra.mxu0 0.0
        %1045 = vmatprep.subr.mxu0 0.0
        %1046 = vmatpush1.msra.mxu0 0.0
        %1047 = vmatprep.subr.mxu0 0.0
        %1048 = vmatpush1.msra.mxu0 0.0
        %1049 = vmatprep.subr.mxu0 0.0
        %1050 = vmatpush1.msra.mxu0 0.0
        %1051 = vmatprep.subr.mxu0 0.0
        %1052 = vmatpush1.msra.mxu0 0.0
        %1053 = vmatprep.subr.mxu0 0.0
        %1054 = vmatpush1.msra.mxu0 0.0
        %1055 = vmatprep.subr.mxu0 0.0
        %1056 = vmatpush1.msra.mxu0 0.0
        %1057 = vmatprep.subr.mxu0 0.0
        %1058 = vmatpush1.msra.mxu0 0.0
        %1059 = vmatprep.subr.mxu0 0.0
        %1060 = vmatpush1.msra.mxu0 0.0
        %1061 = vmatprep.subr.mxu0 0.0
        %1062 = vmatpush1.msra.mxu0 0.0
        %1063 = vmatprep.subr.mxu0 0.0
        %1064 = vmatpush1.msra.mxu0 0.0
        %1065 = vmatprep.subr.mxu0 0.0
        %1066 = vmatpush1.msra.mxu0 0.0
        %1067 = vmatprep.subr.mxu0 0.0
        %1068 = vmatpush1.msra.mxu0 0.0
        %1069 = vmatprep.subr.mxu0 0.0
        %1070 = vmatpush1.msra.mxu0 0.0
        %1071 = vmatprep.subr.mxu0 0.0
        %1072 = vmatpush1.msra.mxu0 0.0
        %1073 = vmatprep.subr.mxu0 0.0
        %1074 = vmatpush1.msra.mxu0 0.0
        %1075 = vmatprep.subr.mxu0 0.0
        %1076 = vmatpush1.msra.mxu0 0.0
        %1077 = vmatprep.subr.mxu0 0.0
        %1078 = vmatpush1.msra.mxu0 0.0
        %1079 = vmatprep.subr.mxu0 0.0
        %1080 = vmatpush1.msra.mxu0 0.0
        %1081 = vmatprep.subr.mxu0 0.0
        %1082 = vmatpush1.msra.mxu0 0.0
        %1083 = vmatprep.mubr.f32.mxu0 0.0
        %v1084 = vand.u32 %v290, 4294901760
        %v1085 = vsub.f32 %v290, %v1084
        %v1086 = vand.u32 %v1085, 4294901760
        %1087 = vmatmul.mubr.f32.gmra.mrb[0].mxu0 %v1086
        %v1088 = vpop.f32.mrb[0].mxu0
        %v1089 = vadd.f32 %v1014, %v1088
        %v1090 = vpop.f32.mrb[0].mxu0
        %1091 = vdwg.mxu0
        %1092 = vmatprep.subr.mxu0 0.0
        %v1093 = vand.u32 %v267, 4294901760
        %v1094 = vsub.f32 %v267, %v1093
        %v1095 = vand.u32 %v1094, 4294901760
        %1096 = vmatpush1.msra.mxu0 %v1095
        %1097 = vmatprep.subr.mxu0 0.0
        %v1098 = vand.u32 %v270, 4294901760
        %v1099 = vsub.f32 %v270, %v1098
        %v1100 = vand.u32 %v1099, 4294901760
        %1101 = vmatpush1.msra.mxu0 %v1100
        %1102 = vmatprep.subr.mxu0 0.0
        %1103 = vmatpush1.msra.mxu0 0.0
        %1104 = vmatprep.subr.mxu0 0.0
        %1105 = vmatpush1.msra.mxu0 0.0
        %1106 = vmatprep.subr.mxu0 0.0
        %1107 = vmatpush1.msra.mxu0 0.0
        %1108 = vmatprep.subr.mxu0 0.0
        %1109 = vmatpush1.msra.mxu0 0.0
        %1110 = vmatprep.subr.mxu0 0.0
        %1111 = vmatpush1.msra.mxu0 0.0
        %1112 = vmatprep.subr.mxu0 0.0
        %1113 = vmatpush1.msra.mxu0 0.0
        %1114 = vmatprep.subr.mxu0 0.0
        %1115 = vmatpush1.msra.mxu0 0.0
        %1116 = vmatprep.subr.mxu0 0.0
        %1117 = vmatpush1.msra.mxu0 0.0
        %1118 = vmatprep.subr.mxu0 0.0
        %1119 = vmatpush1.msra.mxu0 0.0
        %1120 = vmatprep.subr.mxu0 0.0
        %1121 = vmatpush1.msra.mxu0 0.0
        %1122 = vmatprep.subr.mxu0 0.0
        %1123 = vmatpush1.msra.mxu0 0.0
        %1124 = vmatprep.subr.mxu0 0.0
        %1125 = vmatpush1.msra.mxu0 0.0
        %1126 = vmatprep.subr.mxu0 0.0
        %1127 = vmatpush1.msra.mxu0 0.0
        %1128 = vmatprep.subr.mxu0 0.0
        %1129 = vmatpush1.msra.mxu0 0.0
        %1130 = vmatprep.subr.mxu0 0.0
        %1131 = vmatpush1.msra.mxu0 0.0
        %1132 = vmatprep.subr.mxu0 0.0
        %1133 = vmatpush1.msra.mxu0 0.0
        %1134 = vmatprep.subr.mxu0 0.0
        %1135 = vmatpush1.msra.mxu0 0.0
        %1136 = vmatprep.subr.mxu0 0.0
        %1137 = vmatpush1.msra.mxu0 0.0
        %1138 = vmatprep.subr.mxu0 0.0
        %1139 = vmatpush1.msra.mxu0 0.0
        %1140 = vmatprep.subr.mxu0 0.0
        %1141 = vmatpush1.msra.mxu0 0.0
        %1142 = vmatprep.subr.mxu0 0.0
        %1143 = vmatpush1.msra.mxu0 0.0
        %1144 = vmatprep.subr.mxu0 0.0
        %1145 = vmatpush1.msra.mxu0 0.0
        %1146 = vmatprep.subr.mxu0 0.0
        %1147 = vmatpush1.msra.mxu0 0.0
        %1148 = vmatprep.subr.mxu0 0.0
        %1149 = vmatpush1.msra.mxu0 0.0
        %1150 = vmatprep.subr.mxu0 0.0
        %1151 = vmatpush1.msra.mxu0 0.0
        %1152 = vmatprep.subr.mxu0 0.0
        %1153 = vmatpush1.msra.mxu0 0.0
        %1154 = vmatprep.subr.mxu0 0.0
        %1155 = vmatpush1.msra.mxu0 0.0
        %1156 = vmatprep.subr.mxu0 0.0
        %1157 = vmatpush1.msra.mxu0 0.0
        %1158 = vmatprep.subr.mxu0 0.0
        %1159 = vmatpush1.msra.mxu0 0.0
        %1160 = vmatprep.subr.mxu0 0.0
        %1161 = vmatpush1.msra.mxu0 0.0
        %1162 = vmatprep.mubr.f32.mxu0 0.0
        %v1163 = vand.u32 %v290, 4294901760
        %1164 = vmatmul.mubr.f32.gmra.mrb[0].mxu0 %v1163
        %v1165 = vpop.f32.mrb[0].mxu0
        %v1166 = vadd.f32 %v1089, %v1165
        %v1167 = vpop.f32.mrb[0].mxu0
        %1168 = vdwg.mxu0
        %1169 = vmatprep.subr.mxu0 0.0
        %v1170 = vand.u32 %v267, 4294901760
        %1171 = vmatpush1.msra.mxu0 %v1170
        %1172 = vmatprep.subr.mxu0 0.0
        %v1173 = vand.u32 %v270, 4294901760
        %1174 = vmatpush1.msra.mxu0 %v1173
        %1175 = vmatprep.subr.mxu0 0.0
        %1176 = vmatpush1.msra.mxu0 0.0
        %1177 = vmatprep.subr.mxu0 0.0
        %1178 = vmatpush1.msra.mxu0 0.0
        %1179 = vmatprep.subr.mxu0 0.0
        %1180 = vmatpush1.msra.mxu0 0.0
        %1181 = vmatprep.subr.mxu0 0.0
        %1182 = vmatpush1.msra.mxu0 0.0
        %1183 = vmatprep.subr.mxu0 0.0
        %1184 = vmatpush1.msra.mxu0 0.0
        %1185 = vmatprep.subr.mxu0 0.0
        %1186 = vmatpush1.msra.mxu0 0.0
        %1187 = vmatprep.subr.mxu0 0.0
        %1188 = vmatpush1.msra.mxu0 0.0
        %1189 = vmatprep.subr.mxu0 0.0
        %1190 = vmatpush1.msra.mxu0 0.0
        %1191 = vmatprep.subr.mxu0 0.0
        %1192 = vmatpush1.msra.mxu0 0.0
        %1193 = vmatprep.subr.mxu0 0.0
        %1194 = vmatpush1.msra.mxu0 0.0
        %1195 = vmatprep.subr.mxu0 0.0
        %1196 = vmatpush1.msra.mxu0 0.0
        %1197 = vmatprep.subr.mxu0 0.0
        %1198 = vmatpush1.msra.mxu0 0.0
        %1199 = vmatprep.subr.mxu0 0.0
        %1200 = vmatpush1.msra.mxu0 0.0
        %1201 = vmatprep.subr.mxu0 0.0
        %1202 = vmatpush1.msra.mxu0 0.0
        %1203 = vmatprep.subr.mxu0 0.0
        %1204 = vmatpush1.msra.mxu0 0.0
        %1205 = vmatprep.subr.mxu0 0.0
        %1206 = vmatpush1.msra.mxu0 0.0
        %1207 = vmatprep.subr.mxu0 0.0
        %1208 = vmatpush1.msra.mxu0 0.0
        %1209 = vmatprep.subr.mxu0 0.0
        %1210 = vmatpush1.msra.mxu0 0.0
        %1211 = vmatprep.subr.mxu0 0.0
        %1212 = vmatpush1.msra.mxu0 0.0
        %1213 = vmatprep.subr.mxu0 0.0
        %1214 = vmatpush1.msra.mxu0 0.0
        %1215 = vmatprep.subr.mxu0 0.0
        %1216 = vmatpush1.msra.mxu0 0.0
        %1217 = vmatprep.subr.mxu0 0.0
        %1218 = vmatpush1.msra.mxu0 0.0
        %1219 = vmatprep.subr.mxu0 0.0
        %1220 = vmatpush1.msra.mxu0 0.0
        %1221 = vmatprep.subr.mxu0 0.0
        %1222 = vmatpush1.msra.mxu0 0.0
        %1223 = vmatprep.subr.mxu0 0.0
        %1224 = vmatpush1.msra.mxu0 0.0
        %1225 = vmatprep.subr.mxu0 0.0
        %1226 = vmatpush1.msra.mxu0 0.0
        %1227 = vmatprep.subr.mxu0 0.0
        %1228 = vmatpush1.msra.mxu0 0.0
        %1229 = vmatprep.subr.mxu0 0.0
        %1230 = vmatpush1.msra.mxu0 0.0
        %1231 = vmatprep.subr.mxu0 0.0
        %1232 = vmatpush1.msra.mxu0 0.0
        %1233 = vmatprep.subr.mxu0 0.0
        %1234 = vmatpush1.msra.mxu0 0.0
        %1235 = vmatprep.mubr.f32.mxu0 0.0
        %v1236 = vand.u32 %v290, 4294901760
        %1237 = vmatmul.mubr.f32.gmra.mrb[0].mxu0 %v1236
        %v1238 = vpop.f32.mrb[0].mxu0
        %v1239 = vadd.f32 %v1166, %v1238
        %v1240 = vpop.f32.mrb[0].mxu0
        %1241 = vdwg.mxu0
        %v1242 = vld [vmem:[%s263] sm:$0xff]
        %1243 = vmatprep.subr.mxu0 0.0
        %v1244 = vand.u32 %v781, 4294901760
        %1245 = vmatpush1.xpose.msra.mxu0 %v1244
        %1246 = vmatprep.subr.mxu0 0.0
        %1247 = vmatpush1.xpose.msra.mxu0 0.0
        %1248 = vmatprep.subr.mxu0 0.0
        %1249 = vmatpush1.xpose.msra.mxu0 0.0
        %1250 = vmatprep.subr.mxu0 0.0
        %1251 = vmatpush1.xpose.msra.mxu0 0.0
        %1252 = vmatprep.subr.mxu0 0.0
        %1253 = vmatpush1.xpose.msra.mxu0 0.0
        %1254 = vmatprep.subr.mxu0 0.0
        %1255 = vmatpush1.xpose.msra.mxu0 0.0
        %1256 = vmatprep.subr.mxu0 0.0
        %1257 = vmatpush1.xpose.msra.mxu0 0.0
        %1258 = vmatprep.subr.mxu0 0.0
        %1259 = vmatpush1.xpose.msra.mxu0 0.0
        %1260 = vmatprep.subr.mxu0 0.0
        %1261 = vmatpush1.xpose.msra.mxu0 0.0
        %1262 = vmatprep.subr.mxu0 0.0
        %1263 = vmatpush1.xpose.msra.mxu0 0.0
        %1264 = vmatprep.subr.mxu0 0.0
        %1265 = vmatpush1.xpose.msra.mxu0 0.0
        %1266 = vmatprep.subr.mxu0 0.0
        %1267 = vmatpush1.xpose.msra.mxu0 0.0
        %1268 = vmatprep.subr.mxu0 0.0
        %1269 = vmatpush1.xpose.msra.mxu0 0.0
        %1270 = vmatprep.subr.mxu0 0.0
        %1271 = vmatpush1.xpose.msra.mxu0 0.0
        %1272 = vmatprep.subr.mxu0 0.0
        %1273 = vmatpush1.xpose.msra.mxu0 0.0
        %1274 = vmatprep.subr.mxu0 0.0
        %1275 = vmatpush1.xpose.msra.mxu0 0.0
        %1276 = vmatprep.subr.mxu0 0.0
        %1277 = vmatpush1.xpose.msra.mxu0 0.0
        %1278 = vmatprep.subr.mxu0 0.0
        %1279 = vmatpush1.xpose.msra.mxu0 0.0
        %1280 = vmatprep.subr.mxu0 0.0
        %1281 = vmatpush1.xpose.msra.mxu0 0.0
        %1282 = vmatprep.subr.mxu0 0.0
        %1283 = vmatpush1.xpose.msra.mxu0 0.0
        %1284 = vmatprep.subr.mxu0 0.0
        %1285 = vmatpush1.xpose.msra.mxu0 0.0
        %1286 = vmatprep.subr.mxu0 0.0
        %1287 = vmatpush1.xpose.msra.mxu0 0.0
        %1288 = vmatprep.subr.mxu0 0.0
        %1289 = vmatpush1.xpose.msra.mxu0 0.0
        %1290 = vmatprep.subr.mxu0 0.0
        %1291 = vmatpush1.xpose.msra.mxu0 0.0
        %1292 = vmatprep.subr.mxu0 0.0
        %1293 = vmatpush1.xpose.msra.mxu0 0.0
        %1294 = vmatprep.subr.mxu0 0.0
        %1295 = vmatpush1.xpose.msra.mxu0 0.0
        %1296 = vmatprep.subr.mxu0 0.0
        %1297 = vmatpush1.xpose.msra.mxu0 0.0
        %1298 = vmatprep.subr.mxu0 0.0
        %1299 = vmatpush1.xpose.msra.mxu0 0.0
        %1300 = vmatprep.subr.mxu0 0.0
        %1301 = vmatpush1.xpose.msra.mxu0 0.0
        %1302 = vmatprep.subr.mxu0 0.0
        %1303 = vmatpush1.xpose.msra.mxu0 0.0
        %1304 = vmatprep.subr.mxu0 0.0
        %1305 = vmatpush1.xpose.msra.mxu0 0.0
        %1306 = vmatprep.subr.mxu0 0.0
        %1307 = vmatpush1.xpose.msra.mxu0 0.0
        %1308 = vmatprep.mubr.f32.mxu0 0.0
        %v1309 = vand.u32 %v779, 4294901760
        %v1310 = vsub.f32 %v779, %v1309
        %v1311 = vand.u32 %v1310, 4294901760
        %v1312 = vsub.f32 %v1310, %v1311
        %v1313 = vand.u32 %v1312, 4294901760
        %1314 = vmatmul.mubr.f32.gmra.mrb[0].mxu0 %v1313
        %v1315 = vpop.f32.mrb[0].mxu0
        %v1316 = vadd.f32 %v1242, %v1315
        %v1317 = vpop.f32.mrb[0].mxu0
        %1318 = vdwg.mxu0
        %1319 = vmatprep.subr.mxu0 0.0
        %v1320 = vand.u32 %v781, 4294901760
        %v1321 = vsub.f32 %v781, %v1320
        %v1322 = vand.u32 %v1321, 4294901760
        %v1323 = vsub.f32 %v1321, %v1322
        %v1324 = vand.u32 %v1323, 4294901760
        %1325 = vmatpush1.xpose.msra.mxu0 %v1324
        %1326 = vmatprep.subr.mxu0 0.0
        %1327 = vmatpush1.xpose.msra.mxu0 0.0
        %1328 = vmatprep.subr.mxu0 0.0
        %1329 = vmatpush1.xpose.msra.mxu0 0.0
        %1330 = vmatprep.subr.mxu0 0.0
        %1331 = vmatpush1.xpose.msra.mxu0 0.0
        %1332 = vmatprep.subr.mxu0 0.0
        %1333 = vmatpush1.xpose.msra.mxu0 0.0
        %1334 = vmatprep.subr.mxu0 0.0
        %1335 = vmatpush1.xpose.msra.mxu0 0.0
        %1336 = vmatprep.subr.mxu0 0.0
        %1337 = vmatpush1.xpose.msra.mxu0 0.0
        %1338 = vmatprep.subr.mxu0 0.0
        %1339 = vmatpush1.xpose.msra.mxu0 0.0
        %1340 = vmatprep.subr.mxu0 0.0
        %1341 = vmatpush1.xpose.msra.mxu0 0.0
        %1342 = vmatprep.subr.mxu0 0.0
        %1343 = vmatpush1.xpose.msra.mxu0 0.0
        %1344 = vmatprep.subr.mxu0 0.0
        %1345 = vmatpush1.xpose.msra.mxu0 0.0
        %1346 = vmatprep.subr.mxu0 0.0
        %1347 = vmatpush1.xpose.msra.mxu0 0.0
        %1348 = vmatprep.subr.mxu0 0.0
        %1349 = vmatpush1.xpose.msra.mxu0 0.0
        %1350 = vmatprep.subr.mxu0 0.0
        %1351 = vmatpush1.xpose.msra.mxu0 0.0
        %1352 = vmatprep.subr.mxu0 0.0
        %1353 = vmatpush1.xpose.msra.mxu0 0.0
        %1354 = vmatprep.subr.mxu0 0.0
        %1355 = vmatpush1.xpose.msra.mxu0 0.0
        %1356 = vmatprep.subr.mxu0 0.0
        %1357 = vmatpush1.xpose.msra.mxu0 0.0
        %1358 = vmatprep.subr.mxu0 0.0
        %1359 = vmatpush1.xpose.msra.mxu0 0.0
        %1360 = vmatprep.subr.mxu0 0.0
        %1361 = vmatpush1.xpose.msra.mxu0 0.0
        %1362 = vmatprep.subr.mxu0 0.0
        %1363 = vmatpush1.xpose.msra.mxu0 0.0
        %1364 = vmatprep.subr.mxu0 0.0
        %1365 = vmatpush1.xpose.msra.mxu0 0.0
        %1366 = vmatprep.subr.mxu0 0.0
        %1367 = vmatpush1.xpose.msra.mxu0 0.0
        %1368 = vmatprep.subr.mxu0 0.0
        %1369 = vmatpush1.xpose.msra.mxu0 0.0
        %1370 = vmatprep.subr.mxu0 0.0
        %1371 = vmatpush1.xpose.msra.mxu0 0.0
        %1372 = vmatprep.subr.mxu0 0.0
        %1373 = vmatpush1.xpose.msra.mxu0 0.0
        %1374 = vmatprep.subr.mxu0 0.0
        %1375 = vmatpush1.xpose.msra.mxu0 0.0
        %1376 = vmatprep.subr.mxu0 0.0
        %1377 = vmatpush1.xpose.msra.mxu0 0.0
        %1378 = vmatprep.subr.mxu0 0.0
        %1379 = vmatpush1.xpose.msra.mxu0 0.0
        %1380 = vmatprep.subr.mxu0 0.0
        %1381 = vmatpush1.xpose.msra.mxu0 0.0
        %1382 = vmatprep.subr.mxu0 0.0
        %1383 = vmatpush1.xpose.msra.mxu0 0.0
        %1384 = vmatprep.subr.mxu0 0.0
        %1385 = vmatpush1.xpose.msra.mxu0 0.0
        %1386 = vmatprep.subr.mxu0 0.0
        %1387 = vmatpush1.xpose.msra.mxu0 0.0
        %1388 = vmatprep.mubr.f32.mxu0 0.0
        %v1389 = vand.u32 %v779, 4294901760
        %1390 = vmatmul.mubr.f32.gmra.mrb[0].mxu0 %v1389
        %v1391 = vpop.f32.mrb[0].mxu0
        %v1392 = vadd.f32 %v1316, %v1391
        %v1393 = vpop.f32.mrb[0].mxu0
        %1394 = vdwg.mxu0
        %1395 = vmatprep.subr.mxu0 0.0
        %v1396 = vand.u32 %v781, 4294901760
        %v1397 = vsub.f32 %v781, %v1396
        %1398 = vmatpush1.xpose.msra.mxu0 %v1397
        %1399 = vmatprep.subr.mxu0 0.0
        %1400 = vmatpush1.xpose.msra.mxu0 0.0
        %1401 = vmatprep.subr.mxu0 0.0
        %1402 = vmatpush1.xpose.msra.mxu0 0.0
        %1403 = vmatprep.subr.mxu0 0.0
        %1404 = vmatpush1.xpose.msra.mxu0 0.0
        %1405 = vmatprep.subr.mxu0 0.0
        %1406 = vmatpush1.xpose.msra.mxu0 0.0
        %1407 = vmatprep.subr.mxu0 0.0
        %1408 = vmatpush1.xpose.msra.mxu0 0.0
        %1409 = vmatprep.subr.mxu0 0.0
        %1410 = vmatpush1.xpose.msra.mxu0 0.0
        %1411 = vmatprep.subr.mxu0 0.0
        %1412 = vmatpush1.xpose.msra.mxu0 0.0
        %1413 = vmatprep.subr.mxu0 0.0
        %1414 = vmatpush1.xpose.msra.mxu0 0.0
        %1415 = vmatprep.subr.mxu0 0.0
        %1416 = vmatpush1.xpose.msra.mxu0 0.0
        %1417 = vmatprep.subr.mxu0 0.0
        %1418 = vmatpush1.xpose.msra.mxu0 0.0
        %1419 = vmatprep.subr.mxu0 0.0
        %1420 = vmatpush1.xpose.msra.mxu0 0.0
        %1421 = vmatprep.subr.mxu0 0.0
        %1422 = vmatpush1.xpose.msra.mxu0 0.0
        %1423 = vmatprep.subr.mxu0 0.0
        %1424 = vmatpush1.xpose.msra.mxu0 0.0
        %1425 = vmatprep.subr.mxu0 0.0
        %1426 = vmatpush1.xpose.msra.mxu0 0.0
        %1427 = vmatprep.subr.mxu0 0.0
        %1428 = vmatpush1.xpose.msra.mxu0 0.0
        %1429 = vmatprep.subr.mxu0 0.0
        %1430 = vmatpush1.xpose.msra.mxu0 0.0
        %1431 = vmatprep.subr.mxu0 0.0
        %1432 = vmatpush1.xpose.msra.mxu0 0.0
        %1433 = vmatprep.subr.mxu0 0.0
        %1434 = vmatpush1.xpose.msra.mxu0 0.0
        %1435 = vmatprep.subr.mxu0 0.0
        %1436 = vmatpush1.xpose.msra.mxu0 0.0
        %1437 = vmatprep.subr.mxu0 0.0
        %1438 = vmatpush1.xpose.msra.mxu0 0.0
        %1439 = vmatprep.subr.mxu0 0.0
        %1440 = vmatpush1.xpose.msra.mxu0 0.0
        %1441 = vmatprep.subr.mxu0 0.0
        %1442 = vmatpush1.xpose.msra.mxu0 0.0
        %1443 = vmatprep.subr.mxu0 0.0
        %1444 = vmatpush1.xpose.msra.mxu0 0.0
        %1445 = vmatprep.subr.mxu0 0.0
        %1446 = vmatpush1.xpose.msra.mxu0 0.0
        %1447 = vmatprep.subr.mxu0 0.0
        %1448 = vmatpush1.xpose.msra.mxu0 0.0
        %1449 = vmatprep.subr.mxu0 0.0
        %1450 = vmatpush1.xpose.msra.mxu0 0.0
        %1451 = vmatprep.subr.mxu0 0.0
        %1452 = vmatpush1.xpose.msra.mxu0 0.0
        %1453 = vmatprep.subr.mxu0 0.0
        %1454 = vmatpush1.xpose.msra.mxu0 0.0
        %1455 = vmatprep.subr.mxu0 0.0
        %1456 = vmatpush1.xpose.msra.mxu0 0.0
        %1457 = vmatprep.subr.mxu0 0.0
        %1458 = vmatpush1.xpose.msra.mxu0 0.0
        %1459 = vmatprep.subr.mxu0 0.0
        %1460 = vmatpush1.xpose.msra.mxu0 0.0
        %1461 = vmatprep.mubr.f32.mxu0 0.0
        %v1462 = vand.u32 %v779, 4294901760
        %v1463 = vsub.f32 %v779, %v1462
        %1464 = vmatmul.mubr.f32.gmra.mrb[0].mxu0 %v1463
        %v1465 = vpop.f32.mrb[0].mxu0
        %v1466 = vadd.f32 %v1392, %v1465
        %v1467 = vpop.f32.mrb[0].mxu0
        %1468 = vdwg.mxu0
        %1469 = vmatprep.subr.mxu0 0.0
        %v1470 = vand.u32 %v781, 4294901760
        %1471 = vmatpush1.xpose.msra.mxu0 %v1470
        %1472 = vmatprep.subr.mxu0 0.0
        %1473 = vmatpush1.xpose.msra.mxu0 0.0
        %1474 = vmatprep.subr.mxu0 0.0
        %1475 = vmatpush1.xpose.msra.mxu0 0.0
        %1476 = vmatprep.subr.mxu0 0.0
        %1477 = vmatpush1.xpose.msra.mxu0 0.0
        %1478 = vmatprep.subr.mxu0 0.0
        %1479 = vmatpush1.xpose.msra.mxu0 0.0
        %1480 = vmatprep.subr.mxu0 0.0
        %1481 = vmatpush1.xpose.msra.mxu0 0.0
        %1482 = vmatprep.subr.mxu0 0.0
        %1483 = vmatpush1.xpose.msra.mxu0 0.0
        %1484 = vmatprep.subr.mxu0 0.0
        %1485 = vmatpush1.xpose.msra.mxu0 0.0
        %1486 = vmatprep.subr.mxu0 0.0
        %1487 = vmatpush1.xpose.msra.mxu0 0.0
        %1488 = vmatprep.subr.mxu0 0.0
        %1489 = vmatpush1.xpose.msra.mxu0 0.0
        %1490 = vmatprep.subr.mxu0 0.0
        %1491 = vmatpush1.xpose.msra.mxu0 0.0
        %1492 = vmatprep.subr.mxu0 0.0
        %1493 = vmatpush1.xpose.msra.mxu0 0.0
        %1494 = vmatprep.subr.mxu0 0.0
        %1495 = vmatpush1.xpose.msra.mxu0 0.0
        %1496 = vmatprep.subr.mxu0 0.0
        %1497 = vmatpush1.xpose.msra.mxu0 0.0
        %1498 = vmatprep.subr.mxu0 0.0
        %1499 = vmatpush1.xpose.msra.mxu0 0.0
        %1500 = vmatprep.subr.mxu0 0.0
        %1501 = vmatpush1.xpose.msra.mxu0 0.0
        %1502 = vmatprep.subr.mxu0 0.0
        %1503 = vmatpush1.xpose.msra.mxu0 0.0
        %1504 = vmatprep.subr.mxu0 0.0
        %1505 = vmatpush1.xpose.msra.mxu0 0.0
        %1506 = vmatprep.subr.mxu0 0.0
        %1507 = vmatpush1.xpose.msra.mxu0 0.0
        %1508 = vmatprep.subr.mxu0 0.0
        %1509 = vmatpush1.xpose.msra.mxu0 0.0
        %1510 = vmatprep.subr.mxu0 0.0
        %1511 = vmatpush1.xpose.msra.mxu0 0.0
        %1512 = vmatprep.subr.mxu0 0.0
        %1513 = vmatpush1.xpose.msra.mxu0 0.0
        %1514 = vmatprep.subr.mxu0 0.0
        %1515 = vmatpush1.xpose.msra.mxu0 0.0
        %1516 = vmatprep.subr.mxu0 0.0
        %1517 = vmatpush1.xpose.msra.mxu0 0.0
        %1518 = vmatprep.subr.mxu0 0.0
        %1519 = vmatpush1.xpose.msra.mxu0 0.0
        %1520 = vmatprep.subr.mxu0 0.0
        %1521 = vmatpush1.xpose.msra.mxu0 0.0
        %1522 = vmatprep.subr.mxu0 0.0
        %1523 = vmatpush1.xpose.msra.mxu0 0.0
        %1524 = vmatprep.subr.mxu0 0.0
        %1525 = vmatpush1.xpose.msra.mxu0 0.0
        %1526 = vmatprep.subr.mxu0 0.0
        %1527 = vmatpush1.xpose.msra.mxu0 0.0
        %1528 = vmatprep.subr.mxu0 0.0
        %1529 = vmatpush1.xpose.msra.mxu0 0.0
        %1530 = vmatprep.subr.mxu0 0.0
        %1531 = vmatpush1.xpose.msra.mxu0 0.0
        %1532 = vmatprep.subr.mxu0 0.0
        %1533 = vmatpush1.xpose.msra.mxu0 0.0
        %1534 = vmatprep.mubr.f32.mxu0 0.0
        %v1535 = vand.u32 %v779, 4294901760
        %v1536 = vsub.f32 %v779, %v1535
        %v1537 = vand.u32 %v1536, 4294901760
        %1538 = vmatmul.mubr.f32.gmra.mrb[0].mxu0 %v1537
        %v1539 = vpop.f32.mrb[0].mxu0
        %v1540 = vadd.f32 %v1466, %v1539
        %v1541 = vpop.f32.mrb[0].mxu0
        %1542 = vdwg.mxu0
        %1543 = vmatprep.subr.mxu0 0.0
        %v1544 = vand.u32 %v781, 4294901760
        %v1545 = vsub.f32 %v781, %v1544
        %v1546 = vand.u32 %v1545, 4294901760
        %1547 = vmatpush1.xpose.msra.mxu0 %v1546
        %1548 = vmatprep.subr.mxu0 0.0
        %1549 = vmatpush1.xpose.msra.mxu0 0.0
        %1550 = vmatprep.subr.mxu0 0.0
        %1551 = vmatpush1.xpose.msra.mxu0 0.0
        %1552 = vmatprep.subr.mxu0 0.0
        %1553 = vmatpush1.xpose.msra.mxu0 0.0
        %1554 = vmatprep.subr.mxu0 0.0
        %1555 = vmatpush1.xpose.msra.mxu0 0.0
        %1556 = vmatprep.subr.mxu0 0.0
        %1557 = vmatpush1.xpose.msra.mxu0 0.0
        %1558 = vmatprep.subr.mxu0 0.0
        %1559 = vmatpush1.xpose.msra.mxu0 0.0
        %1560 = vmatprep.subr.mxu0 0.0
        %1561 = vmatpush1.xpose.msra.mxu0 0.0
        %1562 = vmatprep.subr.mxu0 0.0
        %1563 = vmatpush1.xpose.msra.mxu0 0.0
        %1564 = vmatprep.subr.mxu0 0.0
        %1565 = vmatpush1.xpose.msra.mxu0 0.0
        %1566 = vmatprep.subr.mxu0 0.0
        %1567 = vmatpush1.xpose.msra.mxu0 0.0
        %1568 = vmatprep.subr.mxu0 0.0
        %1569 = vmatpush1.xpose.msra.mxu0 0.0
        %1570 = vmatprep.subr.mxu0 0.0
        %1571 = vmatpush1.xpose.msra.mxu0 0.0
        %1572 = vmatprep.subr.mxu0 0.0
        %1573 = vmatpush1.xpose.msra.mxu0 0.0
        %1574 = vmatprep.subr.mxu0 0.0
        %1575 = vmatpush1.xpose.msra.mxu0 0.0
        %1576 = vmatprep.subr.mxu0 0.0
        %1577 = vmatpush1.xpose.msra.mxu0 0.0
        %1578 = vmatprep.subr.mxu0 0.0
        %1579 = vmatpush1.xpose.msra.mxu0 0.0
        %1580 = vmatprep.subr.mxu0 0.0
        %1581 = vmatpush1.xpose.msra.mxu0 0.0
        %1582 = vmatprep.subr.mxu0 0.0
        %1583 = vmatpush1.xpose.msra.mxu0 0.0
        %1584 = vmatprep.subr.mxu0 0.0
        %1585 = vmatpush1.xpose.msra.mxu0 0.0
        %1586 = vmatprep.subr.mxu0 0.0
        %1587 = vmatpush1.xpose.msra.mxu0 0.0
        %1588 = vmatprep.subr.mxu0 0.0
        %1589 = vmatpush1.xpose.msra.mxu0 0.0
        %1590 = vmatprep.subr.mxu0 0.0
        %1591 = vmatpush1.xpose.msra.mxu0 0.0
        %1592 = vmatprep.subr.mxu0 0.0
        %1593 = vmatpush1.xpose.msra.mxu0 0.0
        %1594 = vmatprep.subr.mxu0 0.0
        %1595 = vmatpush1.xpose.msra.mxu0 0.0
        %1596 = vmatprep.subr.mxu0 0.0
        %1597 = vmatpush1.xpose.msra.mxu0 0.0
        %1598 = vmatprep.subr.mxu0 0.0
        %1599 = vmatpush1.xpose.msra.mxu0 0.0
        %1600 = vmatprep.subr.mxu0 0.0
        %1601 = vmatpush1.xpose.msra.mxu0 0.0
        %1602 = vmatprep.subr.mxu0 0.0
        %1603 = vmatpush1.xpose.msra.mxu0 0.0
        %1604 = vmatprep.subr.mxu0 0.0
        %1605 = vmatpush1.xpose.msra.mxu0 0.0
        %1606 = vmatprep.subr.mxu0 0.0
        %1607 = vmatpush1.xpose.msra.mxu0 0.0
        %1608 = vmatprep.subr.mxu0 0.0
        %1609 = vmatpush1.xpose.msra.mxu0 0.0
        %1610 = vmatprep.mubr.f32.mxu0 0.0
        %v1611 = vand.u32 %v779, 4294901760
        %1612 = vmatmul.mubr.f32.gmra.mrb[0].mxu0 %v1611
        %v1613 = vpop.f32.mrb[0].mxu0
        %v1614 = vadd.f32 %v1540, %v1613
        %v1615 = vpop.f32.mrb[0].mxu0
        %1616 = vdwg.mxu0
        %1617 = vmatprep.subr.mxu0 0.0
        %v1618 = vand.u32 %v781, 4294901760
        %1619 = vmatpush1.xpose.msra.mxu0 %v1618
        %1620 = vmatprep.subr.mxu0 0.0
        %1621 = vmatpush1.xpose.msra.mxu0 0.0
        %1622 = vmatprep.subr.mxu0 0.0
        %1623 = vmatpush1.xpose.msra.mxu0 0.0
        %1624 = vmatprep.subr.mxu0 0.0
        %1625 = vmatpush1.xpose.msra.mxu0 0.0
        %1626 = vmatprep.subr.mxu0 0.0
        %1627 = vmatpush1.xpose.msra.mxu0 0.0
        %1628 = vmatprep.subr.mxu0 0.0
        %1629 = vmatpush1.xpose.msra.mxu0 0.0
        %1630 = vmatprep.subr.mxu0 0.0
        %1631 = vmatpush1.xpose.msra.mxu0 0.0
        %1632 = vmatprep.subr.mxu0 0.0
        %1633 = vmatpush1.xpose.msra.mxu0 0.0
        %1634 = vmatprep.subr.mxu0 0.0
        %1635 = vmatpush1.xpose.msra.mxu0 0.0
        %1636 = vmatprep.subr.mxu0 0.0
        %1637 = vmatpush1.xpose.msra.mxu0 0.0
        %1638 = vmatprep.subr.mxu0 0.0
        %1639 = vmatpush1.xpose.msra.mxu0 0.0
        %1640 = vmatprep.subr.mxu0 0.0
        %1641 = vmatpush1.xpose.msra.mxu0 0.0
        %1642 = vmatprep.subr.mxu0 0.0
        %1643 = vmatpush1.xpose.msra.mxu0 0.0
        %1644 = vmatprep.subr.mxu0 0.0
        %1645 = vmatpush1.xpose.msra.mxu0 0.0
        %1646 = vmatprep.subr.mxu0 0.0
        %1647 = vmatpush1.xpose.msra.mxu0 0.0
        %1648 = vmatprep.subr.mxu0 0.0
        %1649 = vmatpush1.xpose.msra.mxu0 0.0
        %1650 = vmatprep.subr.mxu0 0.0
        %1651 = vmatpush1.xpose.msra.mxu0 0.0
        %1652 = vmatprep.subr.mxu0 0.0
        %1653 = vmatpush1.xpose.msra.mxu0 0.0
        %1654 = vmatprep.subr.mxu0 0.0
        %1655 = vmatpush1.xpose.msra.mxu0 0.0
        %1656 = vmatprep.subr.mxu0 0.0
        %1657 = vmatpush1.xpose.msra.mxu0 0.0
        %1658 = vmatprep.subr.mxu0 0.0
        %1659 = vmatpush1.xpose.msra.mxu0 0.0
        %1660 = vmatprep.subr.mxu0 0.0
        %1661 = vmatpush1.xpose.msra.mxu0 0.0
        %1662 = vmatprep.subr.mxu0 0.0
        %1663 = vmatpush1.xpose.msra.mxu0 0.0
        %1664 = vmatprep.subr.mxu0 0.0
        %1665 = vmatpush1.xpose.msra.mxu0 0.0
        %1666 = vmatprep.subr.mxu0 0.0
        %1667 = vmatpush1.xpose.msra.mxu0 0.0
        %1668 = vmatprep.subr.mxu0 0.0
        %1669 = vmatpush1.xpose.msra.mxu0 0.0
        %1670 = vmatprep.subr.mxu0 0.0
        %1671 = vmatpush1.xpose.msra.mxu0 0.0
        %1672 = vmatprep.subr.mxu0 0.0
        %1673 = vmatpush1.xpose.msra.mxu0 0.0
        %1674 = vmatprep.subr.mxu0 0.0
        %1675 = vmatpush1.xpose.msra.mxu0 0.0
        %1676 = vmatprep.subr.mxu0 0.0
        %1677 = vmatpush1.xpose.msra.mxu0 0.0
        %1678 = vmatprep.subr.mxu0 0.0
        %1679 = vmatpush1.xpose.msra.mxu0 0.0
        %1680 = vmatprep.subr.mxu0 0.0
        %1681 = vmatpush1.xpose.msra.mxu0 0.0
        %1682 = vmatprep.mubr.f32.mxu0 0.0
        %v1683 = vand.u32 %v779, 4294901760
        %1684 = vmatmul.mubr.f32.gmra.mrb[0].mxu0 %v1683
        %v1685 = vpop.f32.mrb[0].mxu0
        %v1686 = vadd.f32 %v1614, %v1685
        %v1687 = vpop.f32.mrb[0].mxu0
        %1688 = vdwg.mxu0
        %vm1689 = vcmask 64512
        %v1690 = vsel %vm1689, %v1686, -inf
        %1691 = vmax.xlane.f32.xlu0 %v1690
        %v1692 = vpop.xlane.xlu0 %1691
        %v1693 = vsub.f32 %v1686, %v1692
        %v1694 = vmul.f32 %v1693, 1.442695
        %v1695 = vpow.pop %v1694
        %v1696 = vsel %vm1689, %v1695, 0.0
        %1697 = vadd.xlane.f32.xlu0 %v1696
        %v1698 = vpop.xlane.xlu0 %1697
        %v1699 = vrcp.pop %v1698
        %v1700 = vmul.f32 %v1695, %v1699
        %v1702 = vsel %vm1689, %v1700, 0
        %1704 = vmatprep.subr.mxu0 0.0
        %v1705 = vand.u32 %v1239, 4294901760
        %1706 = vmatpush1.msra.mxu0 %v1705
        %1707 = vmatprep.subr.mxu0 0.0
        %1708 = vmatpush1.msra.mxu0 0.0
        %1709 = vmatprep.subr.mxu0 0.0
        %1710 = vmatpush1.msra.mxu0 0.0
        %1711 = vmatprep.subr.mxu0 0.0
        %1712 = vmatpush1.msra.mxu0 0.0
        %1713 = vmatprep.subr.mxu0 0.0
        %1714 = vmatpush1.msra.mxu0 0.0
        %1715 = vmatprep.subr.mxu0 0.0
        %1716 = vmatpush1.msra.mxu0 0.0
        %1717 = vmatprep.subr.mxu0 0.0
        %1718 = vmatpush1.msra.mxu0 0.0
        %1719 = vmatprep.subr.mxu0 0.0
        %1720 = vmatpush1.msra.mxu0 0.0
        %1721 = vmatprep.subr.mxu0 0.0
        %1722 = vmatpush1.msra.mxu0 0.0
        %1723 = vmatprep.subr.mxu0 0.0
        %1724 = vmatpush1.msra.mxu0 0.0
        %1725 = vmatprep.subr.mxu0 0.0
        %1726 = vmatpush1.msra.mxu0 0.0
        %1727 = vmatprep.subr.mxu0 0.0
        %1728 = vmatpush1.msra.mxu0 0.0
        %1729 = vmatprep.subr.mxu0 0.0
        %1730 = vmatpush1.msra.mxu0 0.0
        %1731 = vmatprep.subr.mxu0 0.0
        %1732 = vmatpush1.msra.mxu0 0.0
        %1733 = vmatprep.subr.mxu0 0.0
        %1734 = vmatpush1.msra.mxu0 0.0
        %1735 = vmatprep.subr.mxu0 0.0
        %1736 = vmatpush1.msra.mxu0 0.0
        %1737 = vmatprep.subr.mxu0 0.0
        %1738 = vmatpush1.msra.mxu0 0.0
        %1739 = vmatprep.subr.mxu0 0.0
        %1740 = vmatpush1.msra.mxu0 0.0
        %1741 = vmatprep.subr.mxu0 0.0
        %1742 = vmatpush1.msra.mxu0 0.0
        %1743 = vmatprep.subr.mxu0 0.0
        %1744 = vmatpush1.msra.mxu0 0.0
        %1745 = vmatprep.subr.mxu0 0.0
        %1746 = vmatpush1.msra.mxu0 0.0
        %1747 = vmatprep.subr.mxu0 0.0
        %1748 = vmatpush1.msra.mxu0 0.0
        %1749 = vmatprep.subr.mxu0 0.0
        %1750 = vmatpush1.msra.mxu0 0.0
        %1751 = vmatprep.subr.mxu0 0.0
        %1752 = vmatpush1.msra.mxu0 0.0
        %1753 = vmatprep.subr.mxu0 0.0
        %1754 = vmatpush1.msra.mxu0 0.0
        %1755 = vmatprep.subr.mxu0 0.0
        %1756 = vmatpush1.msra.mxu0 0.0
        %1757 = vmatprep.subr.mxu0 0.0
        %1758 = vmatpush1.msra.mxu0 0.0
        %1759 = vmatprep.subr.mxu0 0.0
        %1760 = vmatpush1.msra.mxu0 0.0
        %1761 = vmatprep.subr.mxu0 0.0
        %1762 = vmatpush1.msra.mxu0 0.0
        %1763 = vmatprep.subr.mxu0 0.0
        %1764 = vmatpush1.msra.mxu0 0.0
        %1765 = vmatprep.subr.mxu0 0.0
        %1766 = vmatpush1.msra.mxu0 0.0
        %1767 = vmatprep.subr.mxu0 0.0
        %1768 = vmatpush1.msra.mxu0 0.0
        %1769 = vmatprep.mubr.f32.mxu0 0.0
        %v1770 = vand.u32 %v1702, 4294901760
        %v1771 = vsub.f32 %v1702, %v1770
        %v1772 = vand.u32 %v1771, 4294901760
        %v1773 = vsub.f32 %v1771, %v1772
        %v1774 = vand.u32 %v1773, 4294901760
        %1775 = vmatmul.mubr.f32.gmra.mrb[0].mxu0 %v1774
        %v1776 = vpop.f32.mrb[0].mxu0
        %v1777 = vadd.f32 0.0, %v1776
        %v1778 = vpop.f32.mrb[0].mxu0
        %1779 = vdwg.mxu0
        %1780 = vmatprep.subr.mxu0 0.0
        %v1781 = vand.u32 %v1239, 4294901760
        %v1782 = vsub.f32 %v1239, %v1781
        %v1783 = vand.u32 %v1782, 4294901760
        %v1784 = vsub.f32 %v1782, %v1783
        %v1785 = vand.u32 %v1784, 4294901760
        %1786 = vmatpush1.msra.mxu0 %v1785
        %1787 = vmatprep.subr.mxu0 0.0
        %1788 = vmatpush1.msra.mxu0 0.0
        %1789 = vmatprep.subr.mxu0 0.0
        %1790 = vmatpush1.msra.mxu0 0.0
        %1791 = vmatprep.subr.mxu0 0.0
        %1792 = vmatpush1.msra.mxu0 0.0
        %1793 = vmatprep.subr.mxu0 0.0
        %1794 = vmatpush1.msra.mxu0 0.0
        %1795 = vmatprep.subr.mxu0 0.0
        %1796 = vmatpush1.msra.mxu0 0.0
        %1797 = vmatprep.subr.mxu0 0.0
        %1798 = vmatpush1.msra.mxu0 0.0
        %1799 = vmatprep.subr.mxu0 0.0
        %1800 = vmatpush1.msra.mxu0 0.0
        %1801 = vmatprep.subr.mxu0 0.0
        %1802 = vmatpush1.msra.mxu0 0.0
        %1803 = vmatprep.subr.mxu0 0.0
        %1804 = vmatpush1.msra.mxu0 0.0
        %1805 = vmatprep.subr.mxu0 0.0
        %1806 = vmatpush1.msra.mxu0 0.0
        %1807 = vmatprep.subr.mxu0 0.0
        %1808 = vmatpush1.msra.mxu0 0.0
        %1809 = vmatprep.subr.mxu0 0.0
        %1810 = vmatpush1.msra.mxu0 0.0
        %1811 = vmatprep.subr.mxu0 0.0
        %1812 = vmatpush1.msra.mxu0 0.0
        %1813 = vmatprep.subr.mxu0 0.0
        %1814 = vmatpush1.msra.mxu0 0.0
        %1815 = vmatprep.subr.mxu0 0.0
        %1816 = vmatpush1.msra.mxu0 0.0
        %1817 = vmatprep.subr.mxu0 0.0
        %1818 = vmatpush1.msra.mxu0 0.0
        %1819 = vmatprep.subr.mxu0 0.0
        %1820 = vmatpush1.msra.mxu0 0.0
        %1821 = vmatprep.subr.mxu0 0.0
        %1822 = vmatpush1.msra.mxu0 0.0
        %1823 = vmatprep.subr.mxu0 0.0
        %1824 = vmatpush1.msra.mxu0 0.0
        %1825 = vmatprep.subr.mxu0 0.0
        %1826 = vmatpush1.msra.mxu0 0.0
        %1827 = vmatprep.subr.mxu0 0.0
        %1828 = vmatpush1.msra.mxu0 0.0
        %1829 = vmatprep.subr.mxu0 0.0
        %1830 = vmatpush1.msra.mxu0 0.0
        %1831 = vmatprep.subr.mxu0 0.0
        %1832 = vmatpush1.msra.mxu0 0.0
        %1833 = vmatprep.subr.mxu0 0.0
        %1834 = vmatpush1.msra.mxu0 0.0
        %1835 = vmatprep.subr.mxu0 0.0
        %1836 = vmatpush1.msra.mxu0 0.0
        %1837 = vmatprep.subr.mxu0 0.0
        %1838 = vmatpush1.msra.mxu0 0.0
        %1839 = vmatprep.subr.mxu0 0.0
        %1840 = vmatpush1.msra.mxu0 0.0
        %1841 = vmatprep.subr.mxu0 0.0
        %1842 = vmatpush1.msra.mxu0 0.0
        %1843 = vmatprep.subr.mxu0 0.0
        %1844 = vmatpush1.msra.mxu0 0.0
        %1845 = vmatprep.subr.mxu0 0.0
        %1846 = vmatpush1.msra.mxu0 0.0
        %1847 = vmatprep.subr.mxu0 0.0
        %1848 = vmatpush1.msra.mxu0 0.0
        %1849 = vmatprep.mubr.f32.mxu0 0.0
        %v1850 = vand.u32 %v1702, 4294901760
        %1851 = vmatmul.mubr.f32.gmra.mrb[0].mxu0 %v1850
        %v1852 = vpop.f32.mrb[0].mxu0
        %v1853 = vadd.f32 %v1777, %v1852
        %v1854 = vpop.f32.mrb[0].mxu0
        %1855 = vdwg.mxu0
        %1856 = vmatprep.subr.mxu0 0.0
        %v1857 = vand.u32 %v1239, 4294901760
        %v1858 = vsub.f32 %v1239, %v1857
        %1859 = vmatpush1.msra.mxu0 %v1858
        %1860 = vmatprep.subr.mxu0 0.0
        %1861 = vmatpush1.msra.mxu0 0.0
        %1862 = vmatprep.subr.mxu0 0.0
        %1863 = vmatpush1.msra.mxu0 0.0
        %1864 = vmatprep.subr.mxu0 0.0
        %1865 = vmatpush1.msra.mxu0 0.0
        %1866 = vmatprep.subr.mxu0 0.0
        %1867 = vmatpush1.msra.mxu0 0.0
        %1868 = vmatprep.subr.mxu0 0.0
        %1869 = vmatpush1.msra.mxu0 0.0
        %1870 = vmatprep.subr.mxu0 0.0
        %1871 = vmatpush1.msra.mxu0 0.0
        %1872 = vmatprep.subr.mxu0 0.0
        %1873 = vmatpush1.msra.mxu0 0.0
        %1874 = vmatprep.subr.mxu0 0.0
        %1875 = vmatpush1.msra.mxu0 0.0
        %1876 = vmatprep.subr.mxu0 0.0
        %1877 = vmatpush1.msra.mxu0 0.0
        %1878 = vmatprep.subr.mxu0 0.0
        %1879 = vmatpush1.msra.mxu0 0.0
        %1880 = vmatprep.subr.mxu0 0.0
        %1881 = vmatpush1.msra.mxu0 0.0
        %1882 = vmatprep.subr.mxu0 0.0
        %1883 = vmatpush1.msra.mxu0 0.0
        %1884 = vmatprep.subr.mxu0 0.0
        %1885 = vmatpush1.msra.mxu0 0.0
        %1886 = vmatprep.subr.mxu0 0.0
        %1887 = vmatpush1.msra.mxu0 0.0
        %1888 = vmatprep.subr.mxu0 0.0
        %1889 = vmatpush1.msra.mxu0 0.0
        %1890 = vmatprep.subr.mxu0 0.0
        %1891 = vmatpush1.msra.mxu0 0.0
        %1892 = vmatprep.subr.mxu0 0.0
        %1893 = vmatpush1.msra.mxu0 0.0
        %1894 = vmatprep.subr.mxu0 0.0
        %1895 = vmatpush1.msra.mxu0 0.0
        %1896 = vmatprep.subr.mxu0 0.0
        %1897 = vmatpush1.msra.mxu0 0.0
        %1898 = vmatprep.subr.mxu0 0.0
        %1899 = vmatpush1.msra.mxu0 0.0
        %1900 = vmatprep.subr.mxu0 0.0
        %1901 = vmatpush1.msra.mxu0 0.0
        %1902 = vmatprep.subr.mxu0 0.0
        %1903 = vmatpush1.msra.mxu0 0.0
        %1904 = vmatprep.subr.mxu0 0.0
        %1905 = vmatpush1.msra.mxu0 0.0
        %1906 = vmatprep.subr.mxu0 0.0
        %1907 = vmatpush1.msra.mxu0 0.0
        %1908 = vmatprep.subr.mxu0 0.0
        %1909 = vmatpush1.msra.mxu0 0.0
        %1910 = vmatprep.subr.mxu0 0.0
        %1911 = vmatpush1.msra.mxu0 0.0
        %1912 = vmatprep.subr.mxu0 0.0
        %1913 = vmatpush1.msra.mxu0 0.0
        %1914 = vmatprep.subr.mxu0 0.0
        %1915 = vmatpush1.msra.mxu0 0.0
        %1916 = vmatprep.subr.mxu0 0.0
        %1917 = vmatpush1.msra.mxu0 0.0
        %1918 = vmatprep.subr.mxu0 0.0
        %1919 = vmatpush1.msra.mxu0 0.0
        %1920 = vmatprep.subr.mxu0 0.0
        %1921 = vmatpush1.msra.mxu0 0.0
        %1922 = vmatprep.mubr.f32.mxu0 0.0
        %v1923 = vand.u32 %v1702, 4294901760
        %v1924 = vsub.f32 %v1702, %v1923
        %1925 = vmatmul.mubr.f32.gmra.mrb[0].mxu0 %v1924
        %v1926 = vpop.f32.mrb[0].mxu0
        %v1927 = vadd.f32 %v1853, %v1926
        %v1928 = vpop.f32.mrb[0].mxu0
        %1929 = vdwg.mxu0
        %1930 = vmatprep.subr.mxu0 0.0
        %v1931 = vand.u32 %v1239, 4294901760
        %1932 = vmatpush1.msra.mxu0 %v1931
        %1933 = vmatprep.subr.mxu0 0.0
        %1934 = vmatpush1.msra.mxu0 0.0
        %1935 = vmatprep.subr.mxu0 0.0
        %1936 = vmatpush1.msra.mxu0 0.0
        %1937 = vmatprep.subr.mxu0 0.0
        %1938 = vmatpush1.msra.mxu0 0.0
        %1939 = vmatprep.subr.mxu0 0.0
        %1940 = vmatpush1.msra.mxu0 0.0
        %1941 = vmatprep.subr.mxu0 0.0
        %1942 = vmatpush1.msra.mxu0 0.0
        %1943 = vmatprep.subr.mxu0 0.0
        %1944 = vmatpush1.msra.mxu0 0.0
        %1945 = vmatprep.subr.mxu0 0.0
        %1946 = vmatpush1.msra.mxu0 0.0
        %1947 = vmatprep.subr.mxu0 0.0
        %1948 = vmatpush1.msra.mxu0 0.0
        %1949 = vmatprep.subr.mxu0 0.0
        %1950 = vmatpush1.msra.mxu0 0.0
        %1951 = vmatprep.subr.mxu0 0.0
        %1952 = vmatpush1.msra.mxu0 0.0
        %1953 = vmatprep.subr.mxu0 0.0
        %1954 = vmatpush1.msra.mxu0 0.0
        %1955 = vmatprep.subr.mxu0 0.0
        %1956 = vmatpush1.msra.mxu0 0.0
        %1957 = vmatprep.subr.mxu0 0.0
        %1958 = vmatpush1.msra.mxu0 0.0
        %1959 = vmatprep.subr.mxu0 0.0
        %1960 = vmatpush1.msra.mxu0 0.0
        %1961 = vmatprep.subr.mxu0 0.0
        %1962 = vmatpush1.msra.mxu0 0.0
        %1963 = vmatprep.subr.mxu0 0.0
        %1964 = vmatpush1.msra.mxu0 0.0
        %1965 = vmatprep.subr.mxu0 0.0
        %1966 = vmatpush1.msra.mxu0 0.0
        %1967 = vmatprep.subr.mxu0 0.0
        %1968 = vmatpush1.msra.mxu0 0.0
        %1969 = vmatprep.subr.mxu0 0.0
        %1970 = vmatpush1.msra.mxu0 0.0
        %1971 = vmatprep.subr.mxu0 0.0
        %1972 = vmatpush1.msra.mxu0 0.0
        %1973 = vmatprep.subr.mxu0 0.0
        %1974 = vmatpush1.msra.mxu0 0.0
        %1975 = vmatprep.subr.mxu0 0.0
        %1976 = vmatpush1.msra.mxu0 0.0
        %1977 = vmatprep.subr.mxu0 0.0
        %1978 = vmatpush1.msra.mxu0 0.0
        %1979 = vmatprep.subr.mxu0 0.0
        %1980 = vmatpush1.msra.mxu0 0.0
        %1981 = vmatprep.subr.mxu0 0.0
        %1982 = vmatpush1.msra.mxu0 0.0
        %1983 = vmatprep.subr.mxu0 0.0
        %1984 = vmatpush1.msra.mxu0 0.0
        %1985 = vmatprep.subr.mxu0 0.0
        %1986 = vmatpush1.msra.mxu0 0.0
        %1987 = vmatprep.subr.mxu0 0.0
        %1988 = vmatpush1.msra.mxu0 0.0
        %1989 = vmatprep.subr.mxu0 0.0
        %1990 = vmatpush1.msra.mxu0 0.0
        %1991 = vmatprep.subr.mxu0 0.0
        %1992 = vmatpush1.msra.mxu0 0.0
        %1993 = vmatprep.subr.mxu0 0.0
        %1994 = vmatpush1.msra.mxu0 0.0
        %1995 = vmatprep.mubr.f32.mxu0 0.0
        %v1996 = vand.u32 %v1702, 4294901760
        %v1997 = vsub.f32 %v1702, %v1996
        %v1998 = vand.u32 %v1997, 4294901760
        %1999 = vmatmul.mubr.f32.gmra.mrb[0].mxu0 %v1998
        %v2000 = vpop.f32.mrb[0].mxu0
        %v2001 = vadd.f32 %v1927, %v2000
        %v2002 = vpop.f32.mrb[0].mxu0
        %2003 = vdwg.mxu0
        %2004 = vmatprep.subr.mxu0 0.0
        %v2005 = vand.u32 %v1239, 4294901760
        %v2006 = vsub.f32 %v1239, %v2005
        %v2007 = vand.u32 %v2006, 4294901760
        %2008 = vmatpush1.msra.mxu0 %v2007
        %2009 = vmatprep.subr.mxu0 0.0
        %2010 = vmatpush1.msra.mxu0 0.0
        %2011 = vmatprep.subr.mxu0 0.0
        %2012 = vmatpush1.msra.mxu0 0.0
        %2013 = vmatprep.subr.mxu0 0.0
        %2014 = vmatpush1.msra.mxu0 0.0
        %2015 = vmatprep.subr.mxu0 0.0
        %2016 = vmatpush1.msra.mxu0 0.0
        %2017 = vmatprep.subr.mxu0 0.0
        %2018 = vmatpush1.msra.mxu0 0.0
        %2019 = vmatprep.subr.mxu0 0.0
        %2020 = vmatpush1.msra.mxu0 0.0
        %2021 = vmatprep.subr.mxu0 0.0
        %2022 = vmatpush1.msra.mxu0 0.0
        %2023 = vmatprep.subr.mxu0 0.0
        %2024 = vmatpush1.msra.mxu0 0.0
        %2025 = vmatprep.subr.mxu0 0.0
        %2026 = vmatpush1.msra.mxu0 0.0
        %2027 = vmatprep.subr.mxu0 0.0
        %2028 = vmatpush1.msra.mxu0 0.0
        %2029 = vmatprep.subr.mxu0 0.0
        %2030 = vmatpush1.msra.mxu0 0.0
        %2031 = vmatprep.subr.mxu0 0.0
        %2032 = vmatpush1.msra.mxu0 0.0
        %2033 = vmatprep.subr.mxu0 0.0
        %2034 = vmatpush1.msra.mxu0 0.0
        %2035 = vmatprep.subr.mxu0 0.0
        %2036 = vmatpush1.msra.mxu0 0.0
        %2037 = vmatprep.subr.mxu0 0.0
        %2038 = vmatpush1.msra.mxu0 0.0
        %2039 = vmatprep.subr.mxu0 0.0
        %2040 = vmatpush1.msra.mxu0 0.0
        %2041 = vmatprep.subr.mxu0 0.0
        %2042 = vmatpush1.msra.mxu0 0.0
        %2043 = vmatprep.subr.mxu0 0.0
        %2044 = vmatpush1.msra.mxu0 0.0
        %2045 = vmatprep.subr.mxu0 0.0
        %2046 = vmatpush1.msra.mxu0 0.0
        %2047 = vmatprep.subr.mxu0 0.0
        %2048 = vmatpush1.msra.mxu0 0.0
        %2049 = vmatprep.subr.mxu0 0.0
        %2050 = vmatpush1.msra.mxu0 0.0
        %2051 = vmatprep.subr.mxu0 0.0
        %2052 = vmatpush1.msra.mxu0 0.0
        %2053 = vmatprep.subr.mxu0 0.0
        %2054 = vmatpush1.msra.mxu0 0.0
        %2055 = vmatprep.subr.mxu0 0.0
        %2056 = vmatpush1.msra.mxu0 0.0
        %2057 = vmatprep.subr.mxu0 0.0
        %2058 = vmatpush1.msra.mxu0 0.0
        %2059 = vmatprep.subr.mxu0 0.0
        %2060 = vmatpush1.msra.mxu0 0.0
        %2061 = vmatprep.subr.mxu0 0.0
        %2062 = vmatpush1.msra.mxu0 0.0
        %2063 = vmatprep.subr.mxu0 0.0
        %2064 = vmatpush1.msra.mxu0 0.0
        %2065 = vmatprep.subr.mxu0 0.0
        %2066 = vmatpush1.msra.mxu0 0.0
        %2067 = vmatprep.subr.mxu0 0.0
        %2068 = vmatpush1.msra.mxu0 0.0
        %2069 = vmatprep.subr.mxu0 0.0
        %2070 = vmatpush1.msra.mxu0 0.0
        %2071 = vmatprep.mubr.f32.mxu0 0.0
        %v2072 = vand.u32 %v1702, 4294901760
        %2073 = vmatmul.mubr.f32.gmra.mrb[0].mxu0 %v2072
        %v2074 = vpop.f32.mrb[0].mxu0
        %v2075 = vadd.f32 %v2001, %v2074
        %v2076 = vpop.f32.mrb[0].mxu0
        %2077 = vdwg.mxu0
        %2078 = vmatprep.subr.mxu0 0.0
        %v2079 = vand.u32 %v1239, 4294901760
        %2080 = vmatpush1.msra.mxu0 %v2079
        %2081 = vmatprep.subr.mxu0 0.0
        %2082 = vmatpush1.msra.mxu0 0.0
        %2083 = vmatprep.subr.mxu0 0.0
        %2084 = vmatpush1.msra.mxu0 0.0
        %2085 = vmatprep.subr.mxu0 0.0
        %2086 = vmatpush1.msra.mxu0 0.0
        %2087 = vmatprep.subr.mxu0 0.0
        %2088 = vmatpush1.msra.mxu0 0.0
        %2089 = vmatprep.subr.mxu0 0.0
        %2090 = vmatpush1.msra.mxu0 0.0
        %2091 = vmatprep.subr.mxu0 0.0
        %2092 = vmatpush1.msra.mxu0 0.0
        %2093 = vmatprep.subr.mxu0 0.0
        %2094 = vmatpush1.msra.mxu0 0.0
        %2095 = vmatprep.subr.mxu0 0.0
        %2096 = vmatpush1.msra.mxu0 0.0
        %2097 = vmatprep.subr.mxu0 0.0
        %2098 = vmatpush1.msra.mxu0 0.0
        %2099 = vmatprep.subr.mxu0 0.0
        %2100 = vmatpush1.msra.mxu0 0.0
        %2101 = vmatprep.subr.mxu0 0.0
        %2102 = vmatpush1.msra.mxu0 0.0
        %2103 = vmatprep.subr.mxu0 0.0
        %2104 = vmatpush1.msra.mxu0 0.0
        %2105 = vmatprep.subr.mxu0 0.0
        %2106 = vmatpush1.msra.mxu0 0.0
        %2107 = vmatprep.subr.mxu0 0.0
        %2108 = vmatpush1.msra.mxu0 0.0
        %2109 = vmatprep.subr.mxu0 0.0
        %2110 = vmatpush1.msra.mxu0 0.0
        %2111 = vmatprep.subr.mxu0 0.0
        %2112 = vmatpush1.msra.mxu0 0.0
        %2113 = vmatprep.subr.mxu0 0.0
        %2114 = vmatpush1.msra.mxu0 0.0
        %2115 = vmatprep.subr.mxu0 0.0
        %2116 = vmatpush1.msra.mxu0 0.0
        %2117 = vmatprep.subr.mxu0 0.0
        %2118 = vmatpush1.msra.mxu0 0.0
        %2119 = vmatprep.subr.mxu0 0.0
        %2120 = vmatpush1.msra.mxu0 0.0
        %2121 = vmatprep.subr.mxu0 0.0
        %2122 = vmatpush1.msra.mxu0 0.0
        %2123 = vmatprep.subr.mxu0 0.0
        %2124 = vmatpush1.msra.mxu0 0.0
        %2125 = vmatprep.subr.mxu0 0.0
        %2126 = vmatpush1.msra.mxu0 0.0
        %2127 = vmatprep.subr.mxu0 0.0
        %2128 = vmatpush1.msra.mxu0 0.0
        %2129 = vmatprep.subr.mxu0 0.0
        %2130 = vmatpush1.msra.mxu0 0.0
        %2131 = vmatprep.subr.mxu0 0.0
        %2132 = vmatpush1.msra.mxu0 0.0
        %2133 = vmatprep.subr.mxu0 0.0
        %2134 = vmatpush1.msra.mxu0 0.0
        %2135 = vmatprep.subr.mxu0 0.0
        %2136 = vmatpush1.msra.mxu0 0.0
        %2137 = vmatprep.subr.mxu0 0.0
        %2138 = vmatpush1.msra.mxu0 0.0
        %2139 = vmatprep.subr.mxu0 0.0
        %2140 = vmatpush1.msra.mxu0 0.0
        %2141 = vmatprep.subr.mxu0 0.0
        %2142 = vmatpush1.msra.mxu0 0.0
        %2143 = vmatprep.mubr.f32.mxu0 0.0
        %v2144 = vand.u32 %v1702, 4294901760
        %2145 = vmatmul.mubr.f32.gmra.mrb[0].mxu0 %v2144
        %v2146 = vpop.f32.mrb[0].mxu0
        %v2147 = vadd.f32 %v2075, %v2146
        %v2148 = vpop.f32.mrb[0].mxu0
        %2149 = vdwg.mxu0
        %v2150 = vld [vmem:[%s4] sm:$0xff]
        %v2151 = vld [vmem:[%s4 + $0x8] sm:$0xff]
        %v2152 = vld [vmem:[%s4 + $0x10] sm:$0xff]
        %v2153 = vld [vmem:[%s4 + $0x18] sm:$0xff]
        %v2154 = vld [vmem:[%s4 + $0x20] sm:$0xff]
        %v2155 = vld [vmem:[%s4 + $0x28] sm:$0xff]
        %v2156 = vld [vmem:[%s4 + $0x30] sm:$0xff]
        %v2157 = vld [vmem:[%s4 + $0x38] sm:$0xff]
        %v2158 = vld [vmem:[%s4 + $0x40] sm:$0xff]
        %v2159 = vld [vmem:[%s4 + $0x48] sm:$0xff]
        %v2160 = vld [vmem:[%s4 + $0x50] sm:$0xff]
        %v2161 = vld [vmem:[%s4 + $0x58] sm:$0xff]
        %v2162 = vld [vmem:[%s4 + $0x60] sm:$0xff]
        %v2163 = vld [vmem:[%s4 + $0x68] sm:$0xff]
        %v2164 = vld [vmem:[%s4 + $0x70] sm:$0xff]
        %v2165 = vld [vmem:[%s4 + $0x78] sm:$0xff]
        %v2166 = vld [vmem:[%s5] sm:$0x1]
        %v2168 = vlaneseq
        %v2169 = vshrl.u32 %v2168, 7
        %v2170 = vsub.s32 0, %v2169
        %v2171 = vrot.slane %v2166, %v2170
        %2173 = vmatprep.subr.mxu0 0.0
        %v2174 = vand.u32 %v2150, 4294901760
        %2175 = vmatpush1.msra.mxu0 %v2174
        %2176 = vmatprep.subr.mxu0 0.0
        %v2177 = vand.u32 %v2151, 4294901760
        %2178 = vmatpush1.msra.mxu0 %v2177
        %2179 = vmatprep.subr.mxu0 0.0
        %v2180 = vand.u32 %v2152, 4294901760
        %2181 = vmatpush1.msra.mxu0 %v2180
        %2182 = vmatprep.subr.mxu0 0.0
        %v2183 = vand.u32 %v2153, 4294901760
        %2184 = vmatpush1.msra.mxu0 %v2183
        %2185 = vmatprep.subr.mxu0 0.0
        %v2186 = vand.u32 %v2154, 4294901760
        %2187 = vmatpush1.msra.mxu0 %v2186
        %2188 = vmatprep.subr.mxu0 0.0
        %v2189 = vand.u32 %v2155, 4294901760
        %2190 = vmatpush1.msra.mxu0 %v2189
        %2191 = vmatprep.subr.mxu0 0.0
        %v2192 = vand.u32 %v2156, 4294901760
        %2193 = vmatpush1.msra.mxu0 %v2192
        %2194 = vmatprep.subr.mxu0 0.0
        %v2195 = vand.u32 %v2157, 4294901760
        %2196 = vmatpush1.msra.mxu0 %v2195
        %2197 = vmatprep.subr.mxu0 0.0
        %v2198 = vand.u32 %v2158, 4294901760
        %2199 = vmatpush1.msra.mxu0 %v2198
        %2200 = vmatprep.subr.mxu0 0.0
        %v2201 = vand.u32 %v2159, 4294901760
        %2202 = vmatpush1.msra.mxu0 %v2201
        %2203 = vmatprep.subr.mxu0 0.0
        %v2204 = vand.u32 %v2160, 4294901760
        %2205 = vmatpush1.msra.mxu0 %v2204
        %2206 = vmatprep.subr.mxu0 0.0
        %v2207 = vand.u32 %v2161, 4294901760
        %2208 = vmatpush1.msra.mxu0 %v2207
        %2209 = vmatprep.subr.mxu0 0.0
        %v2210 = vand.u32 %v2162, 4294901760
        %2211 = vmatpush1.msra.mxu0 %v2210
        %2212 = vmatprep.subr.mxu0 0.0
        %v2213 = vand.u32 %v2163, 4294901760
        %2214 = vmatpush1.msra.mxu0 %v2213
        %2215 = vmatprep.subr.mxu0 0.0
        %v2216 = vand.u32 %v2164, 4294901760
        %2217 = vmatpush1.msra.mxu0 %v2216
        %2218 = vmatprep.subr.mxu0 0.0
        %v2219 = vand.u32 %v2165, 4294901760
        %2220 = vmatpush1.msra.mxu0 %v2219
        %2221 = vmatprep.subr.mxu0 0.0
        %2222 = vmatpush1.msra.mxu0 0.0
        %2223 = vmatprep.subr.mxu0 0.0
        %2224 = vmatpush1.msra.mxu0 0.0
        %2225 = vmatprep.subr.mxu0 0.0
        %2226 = vmatpush1.msra.mxu0 0.0
        %2227 = vmatprep.subr.mxu0 0.0
        %2228 = vmatpush1.msra.mxu0 0.0
        %2229 = vmatprep.subr.mxu0 0.0
        %2230 = vmatpush1.msra.mxu0 0.0
        %2231 = vmatprep.subr.mxu0 0.0
        %2232 = vmatpush1.msra.mxu0 0.0
        %2233 = vmatprep.subr.mxu0 0.0
        %2234 = vmatpush1.msra.mxu0 0.0
        %2235 = vmatprep.subr.mxu0 0.0
        %2236 = vmatpush1.msra.mxu0 0.0
        %2237 = vmatprep.subr.mxu0 0.0
        %2238 = vmatpush1.msra.mxu0 0.0
        %2239 = vmatprep.subr.mxu0 0.0
        %2240 = vmatpush1.msra.mxu0 0.0
        %2241 = vmatprep.subr.mxu0 0.0
        %2242 = vmatpush1.msra.mxu0 0.0
        %2243 = vmatprep.subr.mxu0 0.0
        %2244 = vmatpush1.msra.mxu0 0.0
        %2245 = vmatprep.subr.mxu0 0.0
        %2246 = vmatpush1.msra.mxu0 0.0
        %2247 = vmatprep.subr.mxu0 0.0
        %2248 = vmatpush1.msra.mxu0 0.0
        %2249 = vmatprep.subr.mxu0 0.0
        %2250 = vmatpush1.msra.mxu0 0.0
        %2251 = vmatprep.subr.mxu0 0.0
        %2252 = vmatpush1.msra.mxu0 0.0
        %2253 = vmatprep.mubr.f32.mxu0 0.0
        %v2254 = vand.u32 %v2147, 4294901760
        %v2255 = vsub.f32 %v2147, %v2254
        %v2256 = vand.u32 %v2255, 4294901760
        %v2257 = vsub.f32 %v2255, %v2256
        %v2258 = vand.u32 %v2257, 4294901760
        %2259 = vmatmul.mubr.f32.gmra.mrb[0].mxu0 %v2258
        %v2260 = vpop.f32.mrb[0].mxu0
        %v2261 = vadd.f32 %v2171, %v2260
        %v2262 = vpop.f32.mrb[0].mxu0
        %2263 = vdwg.mxu0
        %2264 = vmatprep.subr.mxu0 0.0
        %v2265 = vand.u32 %v2150, 4294901760
        %v2266 = vsub.f32 %v2150, %v2265
        %v2267 = vand.u32 %v2266, 4294901760
        %v2268 = vsub.f32 %v2266, %v2267
        %v2269 = vand.u32 %v2268, 4294901760
        %2270 = vmatpush1.msra.mxu0 %v2269
        %2271 = vmatprep.subr.mxu0 0.0
        %v2272 = vand.u32 %v2151, 4294901760
        %v2273 = vsub.f32 %v2151, %v2272
        %v2274 = vand.u32 %v2273, 4294901760
        %v2275 = vsub.f32 %v2273, %v2274
        %v2276 = vand.u32 %v2275, 4294901760
        %2277 = vmatpush1.msra.mxu0 %v2276
        %2278 = vmatprep.subr.mxu0 0.0
        %v2279 = vand.u32 %v2152, 4294901760
        %v2280 = vsub.f32 %v2152, %v2279
        %v2281 = vand.u32 %v2280, 4294901760
        %v2282 = vsub.f32 %v2280, %v2281
        %v2283 = vand.u32 %v2282, 4294901760
        %2284 = vmatpush1.msra.mxu0 %v2283
        %2285 = vmatprep.subr.mxu0 0.0
        %v2286 = vand.u32 %v2153, 4294901760
        %v2287 = vsub.f32 %v2153, %v2286
        %v2288 = vand.u32 %v2287, 4294901760
        %v2289 = vsub.f32 %v2287, %v2288
        %v2290 = vand.u32 %v2289, 4294901760
        %2291 = vmatpush1.msra.mxu0 %v2290
        %2292 = vmatprep.subr.mxu0 0.0
        %v2293 = vand.u32 %v2154, 4294901760
        %v2294 = vsub.f32 %v2154, %v2293
        %v2295 = vand.u32 %v2294, 4294901760
        %v2296 = vsub.f32 %v2294, %v2295
        %v2297 = vand.u32 %v2296, 4294901760
        %2298 = vmatpush1.msra.mxu0 %v2297
        %2299 = vmatprep.subr.mxu0 0.0
        %v2300 = vand.u32 %v2155, 4294901760
        %v2301 = vsub.f32 %v2155, %v2300
        %v2302 = vand.u32 %v2301, 4294901760
        %v2303 = vsub.f32 %v2301, %v2302
        %v2304 = vand.u32 %v2303, 4294901760
        %2305 = vmatpush1.msra.mxu0 %v2304
        %2306 = vmatprep.subr.mxu0 0.0
        %v2307 = vand.u32 %v2156, 4294901760
        %v2308 = vsub.f32 %v2156, %v2307
        %v2309 = vand.u32 %v2308, 4294901760
        %v2310 = vsub.f32 %v2308, %v2309
        %v2311 = vand.u32 %v2310, 4294901760
        %2312 = vmatpush1.msra.mxu0 %v2311
        %2313 = vmatprep.subr.mxu0 0.0
        %v2314 = vand.u32 %v2157, 4294901760
        %v2315 = vsub.f32 %v2157, %v2314
        %v2316 = vand.u32 %v2315, 4294901760
        %v2317 = vsub.f32 %v2315, %v2316
        %v2318 = vand.u32 %v2317, 4294901760
        %2319 = vmatpush1.msra.mxu0 %v2318
        %2320 = vmatprep.subr.mxu0 0.0
        %v2321 = vand.u32 %v2158, 4294901760
        %v2322 = vsub.f32 %v2158, %v2321
        %v2323 = vand.u32 %v2322, 4294901760
        %v2324 = vsub.f32 %v2322, %v2323
        %v2325 = vand.u32 %v2324, 4294901760
        %2326 = vmatpush1.msra.mxu0 %v2325
        %2327 = vmatprep.subr.mxu0 0.0
        %v2328 = vand.u32 %v2159, 4294901760
        %v2329 = vsub.f32 %v2159, %v2328
        %v2330 = vand.u32 %v2329, 4294901760
        %v2331 = vsub.f32 %v2329, %v2330
        %v2332 = vand.u32 %v2331, 4294901760
        %2333 = vmatpush1.msra.mxu0 %v2332
        %2334 = vmatprep.subr.mxu0 0.0
        %v2335 = vand.u32 %v2160, 4294901760
        %v2336 = vsub.f32 %v2160, %v2335
        %v2337 = vand.u32 %v2336, 4294901760
        %v2338 = vsub.f32 %v2336, %v2337
        %v2339 = vand.u32 %v2338, 4294901760
        %2340 = vmatpush1.msra.mxu0 %v2339
        %2341 = vmatprep.subr.mxu0 0.0
        %v2342 = vand.u32 %v2161, 4294901760
        %v2343 = vsub.f32 %v2161, %v2342
        %v2344 = vand.u32 %v2343, 4294901760
        %v2345 = vsub.f32 %v2343, %v2344
        %v2346 = vand.u32 %v2345, 4294901760
        %2347 = vmatpush1.msra.mxu0 %v2346
        %2348 = vmatprep.subr.mxu0 0.0
        %v2349 = vand.u32 %v2162, 4294901760
        %v2350 = vsub.f32 %v2162, %v2349
        %v2351 = vand.u32 %v2350, 4294901760
        %v2352 = vsub.f32 %v2350, %v2351
        %v2353 = vand.u32 %v2352, 4294901760
        %2354 = vmatpush1.msra.mxu0 %v2353
        %2355 = vmatprep.subr.mxu0 0.0
        %v2356 = vand.u32 %v2163, 4294901760
        %v2357 = vsub.f32 %v2163, %v2356
        %v2358 = vand.u32 %v2357, 4294901760
        %v2359 = vsub.f32 %v2357, %v2358
        %v2360 = vand.u32 %v2359, 4294901760
        %2361 = vmatpush1.msra.mxu0 %v2360
        %2362 = vmatprep.subr.mxu0 0.0
        %v2363 = vand.u32 %v2164, 4294901760
        %v2364 = vsub.f32 %v2164, %v2363
        %v2365 = vand.u32 %v2364, 4294901760
        %v2366 = vsub.f32 %v2364, %v2365
        %v2367 = vand.u32 %v2366, 4294901760
        %2368 = vmatpush1.msra.mxu0 %v2367
        %2369 = vmatprep.subr.mxu0 0.0
        %v2370 = vand.u32 %v2165, 4294901760
        %v2371 = vsub.f32 %v2165, %v2370
        %v2372 = vand.u32 %v2371, 4294901760
        %v2373 = vsub.f32 %v2371, %v2372
        %v2374 = vand.u32 %v2373, 4294901760
        %2375 = vmatpush1.msra.mxu0 %v2374
        %2376 = vmatprep.subr.mxu0 0.0
        %2377 = vmatpush1.msra.mxu0 0.0
        %2378 = vmatprep.subr.mxu0 0.0
        %2379 = vmatpush1.msra.mxu0 0.0
        %2380 = vmatprep.subr.mxu0 0.0
        %2381 = vmatpush1.msra.mxu0 0.0
        %2382 = vmatprep.subr.mxu0 0.0
        %2383 = vmatpush1.msra.mxu0 0.0
        %2384 = vmatprep.subr.mxu0 0.0
        %2385 = vmatpush1.msra.mxu0 0.0
        %2386 = vmatprep.subr.mxu0 0.0
        %2387 = vmatpush1.msra.mxu0 0.0
        %2388 = vmatprep.subr.mxu0 0.0
        %2389 = vmatpush1.msra.mxu0 0.0
        %2390 = vmatprep.subr.mxu0 0.0
        %2391 = vmatpush1.msra.mxu0 0.0
        %2392 = vmatprep.subr.mxu0 0.0
        %2393 = vmatpush1.msra.mxu0 0.0
        %2394 = vmatprep.subr.mxu0 0.0
        %2395 = vmatpush1.msra.mxu0 0.0
        %2396 = vmatprep.subr.mxu0 0.0
        %2397 = vmatpush1.msra.mxu0 0.0
        %2398 = vmatprep.subr.mxu0 0.0
        %2399 = vmatpush1.msra.mxu0 0.0
        %2400 = vmatprep.subr.mxu0 0.0
        %2401 = vmatpush1.msra.mxu0 0.0
        %2402 = vmatprep.subr.mxu0 0.0
        %2403 = vmatpush1.msra.mxu0 0.0
        %2404 = vmatprep.subr.mxu0 0.0
        %2405 = vmatpush1.msra.mxu0 0.0
        %2406 = vmatprep.subr.mxu0 0.0
        %2407 = vmatpush1.msra.mxu0 0.0
        %2408 = vmatprep.mubr.f32.mxu0 0.0
        %v2409 = vand.u32 %v2147, 4294901760
        %2410 = vmatmul.mubr.f32.gmra.mrb[0].mxu0 %v2409
        %v2411 = vpop.f32.mrb[0].mxu0
        %v2412 = vadd.f32 %v2261, %v2411
        %v2413 = vpop.f32.mrb[0].mxu0
        %2414 = vdwg.mxu0
        %2415 = vmatprep.subr.mxu0 0.0
        %v2416 = vand.u32 %v2150, 4294901760
        %v2417 = vsub.f32 %v2150, %v2416
        %2418 = vmatpush1.msra.mxu0 %v2417
        %2419 = vmatprep.subr.mxu0 0.0
        %v2420 = vand.u32 %v2151, 4294901760
        %v2421 = vsub.f32 %v2151, %v2420
        %2422 = vmatpush1.msra.mxu0 %v2421
        %2423 = vmatprep.subr.mxu0 0.0
        %v2424 = vand.u32 %v2152, 4294901760
        %v2425 = vsub.f32 %v2152, %v2424
        %2426 = vmatpush1.msra.mxu0 %v2425
        %2427 = vmatprep.subr.mxu0 0.0
        %v2428 = vand.u32 %v2153, 4294901760
        %v2429 = vsub.f32 %v2153, %v2428
        %2430 = vmatpush1.msra.mxu0 %v2429
        %2431 = vmatprep.subr.mxu0 0.0
        %v2432 = vand.u32 %v2154, 4294901760
        %v2433 = vsub.f32 %v2154, %v2432
        %2434 = vmatpush1.msra.mxu0 %v2433
        %2435 = vmatprep.subr.mxu0 0.0
        %v2436 = vand.u32 %v2155, 4294901760
        %v2437 = vsub.f32 %v2155, %v2436
        %2438 = vmatpush1.msra.mxu0 %v2437
        %2439 = vmatprep.subr.mxu0 0.0
        %v2440 = vand.u32 %v2156, 4294901760
        %v2441 = vsub.f32 %v2156, %v2440
        %2442 = vmatpush1.msra.mxu0 %v2441
        %2443 = vmatprep.subr.mxu0 0.0
        %v2444 = vand.u32 %v2157, 4294901760
        %v2445 = vsub.f32 %v2157, %v2444
        %2446 = vmatpush1.msra.mxu0 %v2445
        %2447 = vmatprep.subr.mxu0 0.0
        %v2448 = vand.u32 %v2158, 4294901760
        %v2449 = vsub.f32 %v2158, %v2448
        %2450 = vmatpush1.msra.mxu0 %v2449
        %2451 = vmatprep.subr.mxu0 0.0
        %v2452 = vand.u32 %v2159, 4294901760
        %v2453 = vsub.f32 %v2159, %v2452
        %2454 = vmatpush1.msra.mxu0 %v2453
        %2455 = vmatprep.subr.mxu0 0.0
        %v2456 = vand.u32 %v2160, 4294901760
        %v2457 = vsub.f32 %v2160, %v2456
        %2458 = vmatpush1.msra.mxu0 %v2457
        %2459 = vmatprep.subr.mxu0 0.0
        %v2460 = vand.u32 %v2161, 4294901760
        %v2461 = vsub.f32 %v2161, %v2460
        %2462 = vmatpush1.msra.mxu0 %v2461
        %2463 = vmatprep.subr.mxu0 0.0
        %v2464 = vand.u32 %v2162, 4294901760
        %v2465 = vsub.f32 %v2162, %v2464
        %2466 = vmatpush1.msra.mxu0 %v2465
        %2467 = vmatprep.subr.mxu0 0.0
        %v2468 = vand.u32 %v2163, 4294901760
        %v2469 = vsub.f32 %v2163, %v2468
        %2470 = vmatpush1.msra.mxu0 %v2469
        %2471 = vmatprep.subr.mxu0 0.0
        %v2472 = vand.u32 %v2164, 4294901760
        %v2473 = vsub.f32 %v2164, %v2472
        %2474 = vmatpush1.msra.mxu0 %v2473
        %2475 = vmatprep.subr.mxu0 0.0
        %v2476 = vand.u32 %v2165, 4294901760
        %v2477 = vsub.f32 %v2165, %v2476
        %2478 = vmatpush1.msra.mxu0 %v2477
        %2479 = vmatprep.subr.mxu0 0.0
        %2480 = vmatpush1.msra.mxu0 0.0
        %2481 = vmatprep.subr.mxu0 0.0
        %2482 = vmatpush1.msra.mxu0 0.0
        %2483 = vmatprep.subr.mxu0 0.0
        %2484 = vmatpush1.msra.mxu0 0.0
        %2485 = vmatprep.subr.mxu0 0.0
        %2486 = vmatpush1.msra.mxu0 0.0
        %2487 = vmatprep.subr.mxu0 0.0
        %2488 = vmatpush1.msra.mxu0 0.0
        %2489 = vmatprep.subr.mxu0 0.0
        %2490 = vmatpush1.msra.mxu0 0.0
        %2491 = vmatprep.subr.mxu0 0.0
        %2492 = vmatpush1.msra.mxu0 0.0
        %2493 = vmatprep.subr.mxu0 0.0
        %2494 = vmatpush1.msra.mxu0 0.0
        %2495 = vmatprep.subr.mxu0 0.0
        %2496 = vmatpush1.msra.mxu0 0.0
        %2497 = vmatprep.subr.mxu0 0.0
        %2498 = vmatpush1.msra.mxu0 0.0
        %2499 = vmatprep.subr.mxu0 0.0
        %2500 = vmatpush1.msra.mxu0 0.0
        %2501 = vmatprep.subr.mxu0 0.0
        %2502 = vmatpush1.msra.mxu0 0.0
        %2503 = vmatprep.subr.mxu0 0.0
        %2504 = vmatpush1.msra.mxu0 0.0
        %2505 = vmatprep.subr.mxu0 0.0
        %2506 = vmatpush1.msra.mxu0 0.0
        %2507 = vmatprep.subr.mxu0 0.0
        %2508 = vmatpush1.msra.mxu0 0.0
        %2509 = vmatprep.subr.mxu0 0.0
        %2510 = vmatpush1.msra.mxu0 0.0
        %2511 = vmatprep.mubr.f32.mxu0 0.0
        %v2512 = vand.u32 %v2147, 4294901760
        %v2513 = vsub.f32 %v2147, %v2512
        %2514 = vmatmul.mubr.f32.gmra.mrb[0].mxu0 %v2513
        %v2515 = vpop.f32.mrb[0].mxu0
        %v2516 = vadd.f32 %v2412, %v2515
        %v2517 = vpop.f32.mrb[0].mxu0
        %2518 = vdwg.mxu0
        %2519 = vmatprep.subr.mxu0 0.0
        %v2520 = vand.u32 %v2150, 4294901760
        %2521 = vmatpush1.msra.mxu0 %v2520
        %2522 = vmatprep.subr.mxu0 0.0
        %v2523 = vand.u32 %v2151, 4294901760
        %2524 = vmatpush1.msra.mxu0 %v2523
        %2525 = vmatprep.subr.mxu0 0.0
        %v2526 = vand.u32 %v2152, 4294901760
        %2527 = vmatpush1.msra.mxu0 %v2526
        %2528 = vmatprep.subr.mxu0 0.0
        %v2529 = vand.u32 %v2153, 4294901760
        %2530 = vmatpush1.msra.mxu0 %v2529
        %2531 = vmatprep.subr.mxu0 0.0
        %v2532 = vand.u32 %v2154, 4294901760
        %2533 = vmatpush1.msra.mxu0 %v2532
        %2534 = vmatprep.subr.mxu0 0.0
        %v2535 = vand.u32 %v2155, 4294901760
        %2536 = vmatpush1.msra.mxu0 %v2535
        %2537 = vmatprep.subr.mxu0 0.0
        %v2538 = vand.u32 %v2156, 4294901760
        %2539 = vmatpush1.msra.mxu0 %v2538
        %2540 = vmatprep.subr.mxu0 0.0
        %v2541 = vand.u32 %v2157, 4294901760
        %2542 = vmatpush1.msra.mxu0 %v2541
        %2543 = vmatprep.subr.mxu0 0.0
        %v2544 = vand.u32 %v2158, 4294901760
        %2545 = vmatpush1.msra.mxu0 %v2544
        %2546 = vmatprep.subr.mxu0 0.0
        %v2547 = vand.u32 %v2159, 4294901760
        %2548 = vmatpush1.msra.mxu0 %v2547
        %2549 = vmatprep.subr.mxu0 0.0
        %v2550 = vand.u32 %v2160, 4294901760
        %2551 = vmatpush1.msra.mxu0 %v2550
        %2552 = vmatprep.subr.mxu0 0.0
        %v2553 = vand.u32 %v2161, 4294901760
        %2554 = vmatpush1.msra.mxu0 %v2553
        %2555 = vmatprep.subr.mxu0 0.0
        %v2556 = vand.u32 %v2162, 4294901760
        %2557 = vmatpush1.msra.mxu0 %v2556
        %2558 = vmatprep.subr.mxu0 0.0
        %v2559 = vand.u32 %v2163, 4294901760
        %2560 = vmatpush1.msra.mxu0 %v2559
        %2561 = vmatprep.subr.mxu0 0.0
        %v2562 = vand.u32 %v2164, 4294901760
        %2563 = vmatpush1.msra.mxu0 %v2562
        %2564 = vmatprep.subr.mxu0 0.0
        %v2565 = vand.u32 %v2165, 4294901760
        %2566 = vmatpush1.msra.mxu0 %v2565
        %2567 = vmatprep.subr.mxu0 0.0
        %2568 = vmatpush1.msra.mxu0 0.0
        %2569 = vmatprep.subr.mxu0 0.0
        %2570 = vmatpush1.msra.mxu0 0.0
        %2571 = vmatprep.subr.mxu0 0.0
        %2572 = vmatpush1.msra.mxu0 0.0
        %2573 = vmatprep.subr.mxu0 0.0
        %2574 = vmatpush1.msra.mxu0 0.0
        %2575 = vmatprep.subr.mxu0 0.0
        %2576 = vmatpush1.msra.mxu0 0.0
        %2577 = vmatprep.subr.mxu0 0.0
        %2578 = vmatpush1.msra.mxu0 0.0
        %2579 = vmatprep.subr.mxu0 0.0
        %2580 = vmatpush1.msra.mxu0 0.0
        %2581 = vmatprep.subr.mxu0 0.0
        %2582 = vmatpush1.msra.mxu0 0.0
        %2583 = vmatprep.subr.mxu0 0.0
        %2584 = vmatpush1.msra.mxu0 0.0
        %2585 = vmatprep.subr.mxu0 0.0
        %2586 = vmatpush1.msra.mxu0 0.0
        %2587 = vmatprep.subr.mxu0 0.0
        %2588 = vmatpush1.msra.mxu0 0.0
        %2589 = vmatprep.subr.mxu0 0.0
        %2590 = vmatpush1.msra.mxu0 0.0
        %2591 = vmatprep.subr.mxu0 0.0
        %2592 = vmatpush1.msra.mxu0 0.0
        %2593 = vmatprep.subr.mxu0 0.0
        %2594 = vmatpush1.msra.mxu0 0.0
        %2595 = vmatprep.subr.mxu0 0.0
        %2596 = vmatpush1.msra.mxu0 0.0
        %2597 = vmatprep.subr.mxu0 0.0
        %2598 = vmatpush1.msra.mxu0 0.0
        %2599 = vmatprep.mubr.f32.mxu0 0.0
        %v2600 = vand.u32 %v2147, 4294901760
        %v2601 = vsub.f32 %v2147, %v2600
        %v2602 = vand.u32 %v2601, 4294901760
        %2603 = vmatmul.mubr.f32.gmra.mrb[0].mxu0 %v2602
        %v2604 = vpop.f32.mrb[0].mxu0
        %v2605 = vadd.f32 %v2516, %v2604
        %v2606 = vpop.f32.mrb[0].mxu0
        %2607 = vdwg.mxu0
        %2608 = vmatprep.subr.mxu0 0.0
        %v2609 = vand.u32 %v2150, 4294901760
        %v2610 = vsub.f32 %v2150, %v2609
        %v2611 = vand.u32 %v2610, 4294901760
        %2612 = vmatpush1.msra.mxu0 %v2611
        %2613 = vmatprep.subr.mxu0 0.0
        %v2614 = vand.u32 %v2151, 4294901760
        %v2615 = vsub.f32 %v2151, %v2614
        %v2616 = vand.u32 %v2615, 4294901760
        %2617 = vmatpush1.msra.mxu0 %v2616
        %2618 = vmatprep.subr.mxu0 0.0
        %v2619 = vand.u32 %v2152, 4294901760
        %v2620 = vsub.f32 %v2152, %v2619
        %v2621 = vand.u32 %v2620, 4294901760
        %2622 = vmatpush1.msra.mxu0 %v2621
        %2623 = vmatprep.subr.mxu0 0.0
        %v2624 = vand.u32 %v2153, 4294901760
        %v2625 = vsub.f32 %v2153, %v2624
        %v2626 = vand.u32 %v2625, 4294901760
        %2627 = vmatpush1.msra.mxu0 %v2626
        %2628 = vmatprep.subr.mxu0 0.0
        %v2629 = vand.u32 %v2154, 4294901760
        %v2630 = vsub.f32 %v2154, %v2629
        %v2631 = vand.u32 %v2630, 4294901760
        %2632 = vmatpush1.msra.mxu0 %v2631
        %2633 = vmatprep.subr.mxu0 0.0
        %v2634 = vand.u32 %v2155, 4294901760
        %v2635 = vsub.f32 %v2155, %v2634
        %v2636 = vand.u32 %v2635, 4294901760
        %2637 = vmatpush1.msra.mxu0 %v2636
        %2638 = vmatprep.subr.mxu0 0.0
        %v2639 = vand.u32 %v2156, 4294901760
        %v2640 = vsub.f32 %v2156, %v2639
        %v2641 = vand.u32 %v2640, 4294901760
        %2642 = vmatpush1.msra.mxu0 %v2641
        %2643 = vmatprep.subr.mxu0 0.0
        %v2644 = vand.u32 %v2157, 4294901760
        %v2645 = vsub.f32 %v2157, %v2644
        %v2646 = vand.u32 %v2645, 4294901760
        %2647 = vmatpush1.msra.mxu0 %v2646
        %2648 = vmatprep.subr.mxu0 0.0
        %v2649 = vand.u32 %v2158, 4294901760
        %v2650 = vsub.f32 %v2158, %v2649
        %v2651 = vand.u32 %v2650, 4294901760
        %2652 = vmatpush1.msra.mxu0 %v2651
        %2653 = vmatprep.subr.mxu0 0.0
        %v2654 = vand.u32 %v2159, 4294901760
        %v2655 = vsub.f32 %v2159, %v2654
        %v2656 = vand.u32 %v2655, 4294901760
        %2657 = vmatpush1.msra.mxu0 %v2656
        %2658 = vmatprep.subr.mxu0 0.0
        %v2659 = vand.u32 %v2160, 4294901760
        %v2660 = vsub.f32 %v2160, %v2659
        %v2661 = vand.u32 %v2660, 4294901760
        %2662 = vmatpush1.msra.mxu0 %v2661
        %2663 = vmatprep.subr.mxu0 0.0
        %v2664 = vand.u32 %v2161, 4294901760
        %v2665 = vsub.f32 %v2161, %v2664
        %v2666 = vand.u32 %v2665, 4294901760
        %2667 = vmatpush1.msra.mxu0 %v2666
        %2668 = vmatprep.subr.mxu0 0.0
        %v2669 = vand.u32 %v2162, 4294901760
        %v2670 = vsub.f32 %v2162, %v2669
        %v2671 = vand.u32 %v2670, 4294901760
        %2672 = vmatpush1.msra.mxu0 %v2671
        %2673 = vmatprep.subr.mxu0 0.0
        %v2674 = vand.u32 %v2163, 4294901760
        %v2675 = vsub.f32 %v2163, %v2674
        %v2676 = vand.u32 %v2675, 4294901760
        %2677 = vmatpush1.msra.mxu0 %v2676
        %2678 = vmatprep.subr.mxu0 0.0
        %v2679 = vand.u32 %v2164, 4294901760
        %v2680 = vsub.f32 %v2164, %v2679
        %v2681 = vand.u32 %v2680, 4294901760
        %2682 = vmatpush1.msra.mxu0 %v2681
        %2683 = vmatprep.subr.mxu0 0.0
        %v2684 = vand.u32 %v2165, 4294901760
        %v2685 = vsub.f32 %v2165, %v2684
        %v2686 = vand.u32 %v2685, 4294901760
        %2687 = vmatpush1.msra.mxu0 %v2686
        %2688 = vmatprep.subr.mxu0 0.0
        %2689 = vmatpush1.msra.mxu0 0.0
        %2690 = vmatprep.subr.mxu0 0.0
        %2691 = vmatpush1.msra.mxu0 0.0
        %2692 = vmatprep.subr.mxu0 0.0
        %2693 = vmatpush1.msra.mxu0 0.0
        %2694 = vmatprep.subr.mxu0 0.0
        %2695 = vmatpush1.msra.mxu0 0.0
        %2696 = vmatprep.subr.mxu0 0.0
        %2697 = vmatpush1.msra.mxu0 0.0
        %2698 = vmatprep.subr.mxu0 0.0
        %2699 = vmatpush1.msra.mxu0 0.0
        %2700 = vmatprep.subr.mxu0 0.0
        %2701 = vmatpush1.msra.mxu0 0.0
        %2702 = vmatprep.subr.mxu0 0.0
        %2703 = vmatpush1.msra.mxu0 0.0
        %2704 = vmatprep.subr.mxu0 0.0
        %2705 = vmatpush1.msra.mxu0 0.0
        %2706 = vmatprep.subr.mxu0 0.0
        %2707 = vmatpush1.msra.mxu0 0.0
        %2708 = vmatprep.subr.mxu0 0.0
        %2709 = vmatpush1.msra.mxu0 0.0
        %2710 = vmatprep.subr.mxu0 0.0
        %2711 = vmatpush1.msra.mxu0 0.0
        %2712 = vmatprep.subr.mxu0 0.0
        %2713 = vmatpush1.msra.mxu0 0.0
        %2714 = vmatprep.subr.mxu0 0.0
        %2715 = vmatpush1.msra.mxu0 0.0
        %2716 = vmatprep.subr.mxu0 0.0
        %2717 = vmatpush1.msra.mxu0 0.0
        %2718 = vmatprep.subr.mxu0 0.0
        %2719 = vmatpush1.msra.mxu0 0.0
        %2720 = vmatprep.mubr.f32.mxu0 0.0
        %v2721 = vand.u32 %v2147, 4294901760
        %2722 = vmatmul.mubr.f32.gmra.mrb[0].mxu0 %v2721
        %v2723 = vpop.f32.mrb[0].mxu0
        %v2724 = vadd.f32 %v2605, %v2723
        %v2725 = vpop.f32.mrb[0].mxu0
        %2726 = vdwg.mxu0
        %2727 = vmatprep.subr.mxu0 0.0
        %v2728 = vand.u32 %v2150, 4294901760
        %2729 = vmatpush1.msra.mxu0 %v2728
        %2730 = vmatprep.subr.mxu0 0.0
        %v2731 = vand.u32 %v2151, 4294901760
        %2732 = vmatpush1.msra.mxu0 %v2731
        %2733 = vmatprep.subr.mxu0 0.0
        %v2734 = vand.u32 %v2152, 4294901760
        %2735 = vmatpush1.msra.mxu0 %v2734
        %2736 = vmatprep.subr.mxu0 0.0
        %v2737 = vand.u32 %v2153, 4294901760
        %2738 = vmatpush1.msra.mxu0 %v2737
        %2739 = vmatprep.subr.mxu0 0.0
        %v2740 = vand.u32 %v2154, 4294901760
        %2741 = vmatpush1.msra.mxu0 %v2740
        %2742 = vmatprep.subr.mxu0 0.0
        %v2743 = vand.u32 %v2155, 4294901760
        %2744 = vmatpush1.msra.mxu0 %v2743
        %2745 = vmatprep.subr.mxu0 0.0
        %v2746 = vand.u32 %v2156, 4294901760
        %2747 = vmatpush1.msra.mxu0 %v2746
        %2748 = vmatprep.subr.mxu0 0.0
        %v2749 = vand.u32 %v2157, 4294901760
        %2750 = vmatpush1.msra.mxu0 %v2749
        %2751 = vmatprep.subr.mxu0 0.0
        %v2752 = vand.u32 %v2158, 4294901760
        %2753 = vmatpush1.msra.mxu0 %v2752
        %2754 = vmatprep.subr.mxu0 0.0
        %v2755 = vand.u32 %v2159, 4294901760
        %2756 = vmatpush1.msra.mxu0 %v2755
        %2757 = vmatprep.subr.mxu0 0.0
        %v2758 = vand.u32 %v2160, 4294901760
        %2759 = vmatpush1.msra.mxu0 %v2758
        %2760 = vmatprep.subr.mxu0 0.0
        %v2761 = vand.u32 %v2161, 4294901760
        %2762 = vmatpush1.msra.mxu0 %v2761
        %2763 = vmatprep.subr.mxu0 0.0
        %v2764 = vand.u32 %v2162, 4294901760
        %2765 = vmatpush1.msra.mxu0 %v2764
        %2766 = vmatprep.subr.mxu0 0.0
        %v2767 = vand.u32 %v2163, 4294901760
        %2768 = vmatpush1.msra.mxu0 %v2767
        %2769 = vmatprep.subr.mxu0 0.0
        %v2770 = vand.u32 %v2164, 4294901760
        %2771 = vmatpush1.msra.mxu0 %v2770
        %2772 = vmatprep.subr.mxu0 0.0
        %v2773 = vand.u32 %v2165, 4294901760
        %2774 = vmatpush1.msra.mxu0 %v2773
        %2775 = vmatprep.subr.mxu0 0.0
        %2776 = vmatpush1.msra.mxu0 0.0
        %2777 = vmatprep.subr.mxu0 0.0
        %2778 = vmatpush1.msra.mxu0 0.0
        %2779 = vmatprep.subr.mxu0 0.0
        %2780 = vmatpush1.msra.mxu0 0.0
        %2781 = vmatprep.subr.mxu0 0.0
        %2782 = vmatpush1.msra.mxu0 0.0
        %2783 = vmatprep.subr.mxu0 0.0
        %2784 = vmatpush1.msra.mxu0 0.0
        %2785 = vmatprep.subr.mxu0 0.0
        %2786 = vmatpush1.msra.mxu0 0.0
        %2787 = vmatprep.subr.mxu0 0.0
        %2788 = vmatpush1.msra.mxu0 0.0
        %2789 = vmatprep.subr.mxu0 0.0
        %2790 = vmatpush1.msra.mxu0 0.0
        %2791 = vmatprep.subr.mxu0 0.0
        %2792 = vmatpush1.msra.mxu0 0.0
        %2793 = vmatprep.subr.mxu0 0.0
        %2794 = vmatpush1.msra.mxu0 0.0
        %2795 = vmatprep.subr.mxu0 0.0
        %2796 = vmatpush1.msra.mxu0 0.0
        %2797 = vmatprep.subr.mxu0 0.0
        %2798 = vmatpush1.msra.mxu0 0.0
        %2799 = vmatprep.subr.mxu0 0.0
        %2800 = vmatpush1.msra.mxu0 0.0
        %2801 = vmatprep.subr.mxu0 0.0
        %2802 = vmatpush1.msra.mxu0 0.0
        %2803 = vmatprep.subr.mxu0 0.0
        %2804 = vmatpush1.msra.mxu0 0.0
        %2805 = vmatprep.subr.mxu0 0.0
        %2806 = vmatpush1.msra.mxu0 0.0
        %2807 = vmatprep.mubr.f32.mxu0 0.0
        %v2808 = vand.u32 %v2147, 4294901760
        %2809 = vmatmul.mubr.f32.gmra.mrb[0].mxu0 %v2808
        %v2810 = vpop.f32.mrb[0].mxu0
        %v2811 = vadd.f32 %v2724, %v2810
        %v2812 = vpop.f32.mrb[0].mxu0
        %2813 = vdwg.mxu0
        %v2814 = vlaneseq
        %vm2815 = vcmp.ge.s32.totalorder %v2814, 0
        %vm2816 = vcmp.lt.s32.totalorder %v2814, 32
        %vm2817 = vmand %vm2815, %vm2816
        %2818 = vst.msk [vmem:[%s255] sm:$0x1] %vm2817, %v2811
        %v2821 = vunpack.c.l.s4 1966171168
        %v2822 = vunpack.c.0.s8 %v2821
        %v2823 = vlaneseq
        %v2824 = vshrl.u32 %v2823, 7
        %v2825 = vsub.s32 %v2822, %v2824
        %v2826 = vrot.slane %v2811, %v2825
        %v2827 = vcombine.high %v2826, %v2826
        %v2829 = vunpack.c.l.s4 1966171168
        %v2830 = vunpack.c.0.s8 %v2829
        %v2831 = vlaneseq
        %v2832 = vshrl.u32 %v2831, 7
        %v2833 = vsub.s32 %v2830, %v2832
        %v2834 = vrot.slane %v2826, %v2833
        %v2836 = vunpack.c.l.s4 1966171168
        %v2837 = vunpack.c.0.s8 %v2836
        %v2838 = vlaneseq
        %v2839 = vshrl.u32 %v2838, 7
        %v2840 = vsub.s32 %v2837, %v2839
        %v2841 = vrot.slane %v2827, %v2840
        %2842 = vrot.lane.b32.xlu0 %v2841, 32
        %v2843 = vpop.permute.xlu0 %2842
        %vm2845 = vcmp.ge.s32.totalorder %v2814, 32
        %vm2846 = vcmp.lt.s32.totalorder %v2814, 64
        %vm2847 = vmand %vm2845, %vm2846
        %2848 = vst.msk [vmem:[%s255] sm:$0x1] %vm2847, %v2843
        %v2849 = vcombine.high %v2834, %v2834
        %2850 = vrot.lane.b32.xlu0 %v2849, 64
        %v2851 = vpop.permute.xlu0 %2850
        %vm2853 = vcmp.ge.s32.totalorder %v2814, 64
        %vm2854 = vcmp.lt.s32.totalorder %v2814, 96
        %vm2855 = vmand %vm2853, %vm2854
        %2856 = vst.msk [vmem:[%s255] sm:$0x1] %vm2855, %v2851
        %v2857 = vcombine.high %v2841, %v2841
        %2858 = vrot.lane.b32.xlu0 %v2857, 96
        %v2859 = vpop.permute.xlu0 %2858
        %vm2861 = vcmp.ge.s32.totalorder %v2814, 96
        %vm2862 = vcmp.lt.s32.totalorder %v2814, 128
        %vm2863 = vmand %vm2861, %vm2862
        %2864 = vst.msk [vmem:[%s255] sm:$0x1] %vm2863, %v2859
        %v2865 = vcombine.high %v2811, %v2811
        %v2867 = vunpack.c.l.s4 1966171168
        %v2868 = vunpack.c.0.s8 %v2867
        %v2869 = vlaneseq
        %v2870 = vshrl.u32 %v2869, 7
        %v2871 = vsub.s32 %v2868, %v2870
        %v2872 = vrot.slane %v2865, %v2871
        %v2874 = vunpack.c.l.s4 1966171168
        %v2875 = vunpack.c.0.s8 %v2874
        %v2876 = vlaneseq
        %v2877 = vshrl.u32 %v2876, 7
        %v2878 = vsub.s32 %v2875, %v2877
        %v2879 = vrot.slane %v2872, %v2878
        %2881 = vst.msk [vmem:[%s255 + $0x1] sm:$0x1] %vm2817, %v2879
        %v2882 = vcombine.high %v2872, %v2872
        %v2884 = vunpack.c.l.s4 1966171168
        %v2885 = vunpack.c.0.s8 %v2884
        %v2886 = vlaneseq
        %v2887 = vshrl.u32 %v2886, 7
        %v2888 = vsub.s32 %v2885, %v2887
        %v2889 = vrot.slane %v2882, %v2888
        %2890 = vrot.lane.b32.xlu0 %v2889, 32
        %v2891 = vpop.permute.xlu0 %2890
        %2893 = vst.msk [vmem:[%s255 + $0x1] sm:$0x1] %vm2847, %v2891
        %v2894 = vcombine.high %v2879, %v2879
        %2895 = vrot.lane.b32.xlu0 %v2894, 64
        %v2896 = vpop.permute.xlu0 %2895
        %2898 = vst.msk [vmem:[%s255 + $0x1] sm:$0x1] %vm2855, %v2896
        %v2899 = vcombine.high %v2889, %v2889
        %2900 = vrot.lane.b32.xlu0 %v2899, 96
        %v2901 = vpop.permute.xlu0 %2900
        %2903 = vst.msk [vmem:[%s255 + $0x1] sm:$0x1] %vm2863, %v2901
        %s2904 = sand.u32 %s164, 1
        %s2905 = scalar_lea.sflag [#allocation3], %s2904
        %s2906 = sand.u32 %s164, 1
        %s2907 = smul.addr %s2906, 2
        %s2908 = scalar_lea.vmem [#allocation2], %s2907
        // Predicated region
        $region45: #{tpu_custom_call.1} parent=43 // pred_check
          %p2909 = pneg %p174
        $region46: #{tpu_custom_call.1} parent=43 // pred_check_branch
          %2911 = sbr.rel (%p2909) target = $region48
        $region47: #{tpu_custom_call.1} parent=43 // pred_region
          %s2913 = ssub.s32 32, 32
          %2914 = vsyncadd %s2905, %s2913
          %s2915 = smul.addr %s20, 2
          %s2916 = smul.addr %s2915, 16
          %s2917 = scalar_lea.hbm %s6, %s2916
          %s2919 = sshll.u32 %s2908, 4
          %s2920 = int_to_ptr.vmem [resolvable:$true] %s2919
          %2922 = dma.vmem_to_hbm [thread:$0]  %s2920, 32, %s2917, %s2905
        $region48: #{tpu_custom_call.1} parent=43 // pred_fallthru
          _
      $region44: #{tpu_custom_call.1} parent=5 // pred_fallthru
        _
      %p2923 = scmp.le.s32.totalorder 2, %s15
      // Predicated region
      $region49: #{tpu_custom_call.1} parent=5 // pred_check
        %p2924 = pneg %p2923
      $region50: #{tpu_custom_call.1} parent=5 // pred_check_branch
        %2926 = sbr.rel (%p2924) target = $region52
      $region51: #{tpu_custom_call.1} parent=5 // pred_region
        %s2927 = ssub.s32 %s15, 2
        // Predicated region
        $region53: #{tpu_custom_call.1} parent=51 // pred_check
          %p2928 = pneg %p180
        $region54: #{tpu_custom_call.1} parent=51 // pred_check_branch
          %2930 = sbr.rel (%p2928) target = $region56
        $region55: #{tpu_custom_call.1} parent=51 // pred_region
          %s2931 = sand.u32 %s165, 1
          %s2932 = scalar_lea.sflag [#allocation3], %s2931
          %s2933 = sand.u32 %s165, 1
          %s2934 = smul.addr %s2933, 2
          %s2935 = scalar_lea.vmem [#allocation2], %s2934
          %2936 = dma.done %s2932, 32
        $region56: #{tpu_custom_call.1} parent=51 // pred_fallthru
          _
      $region52: #{tpu_custom_call.1} parent=5 // pred_fallthru
        _
    $region6: #{tpu_custom_call.1} parent=1 // loop_footer
      %s19 = sadd.s32 1, %s15
    $region7: #{tpu_custom_call.1} parent=1 // loop_footer_branch
      %14 = sbr.rel target = $region3
    $region8: #{tpu_custom_call.1} parent=1 // loop_exit
      _
    %2937 = vsyncpa [#allocation3], 1
    %s2938 = scalar_lea.sflag [#allocation3], 1
    %2939 = vsyncpa %s2938, 1

</llo_original>
